<compile_context>
chip_gen: v6e
topology: v6e:2x2x1
jax: 0.10.0
libtpu: 0.0.40
codegen_flags: <defaults>
</compile_context>

<pallas_src>
import functools

import numpy as np
import jax
import jax.numpy as jnp
from jax import lax
from jax.experimental import pallas as pl
from jax.experimental.pallas import tpu as pltpu


MAX_TILE_B = 128   # images per grid step (batch padded to a multiple of 8 / of this)


# ------------------------------ fused kernel -------------------------------- #

def _lenet_kernel(x_ref, w1b_ref, b1_ref, w2b_ref, b2_ref,
                  wf1_ref, bf1_ref, wf2_ref, bf2_ref, o_ref, *, tb):
    f32 = jnp.float32
    bf16 = jnp.bfloat16

    # ---- conv1: ONE banded matmul, K = 5*28 = 140 (host did the H-only im2col) ----
    # x lanes = dh*28 + w ; y1 rows = (ho, b) ; y1 cols = (wo%2)*256 + (wo//2)*20 + oc
    lhs = x_ref[...].reshape(24 * tb, 140).astype(bf16)
    y1 = jnp.dot(lhs, w1b_ref[...], preferred_element_type=f32) + b1_ref[...]

    # ---- pool1 (2x2) + relu: W-pair = two 128-aligned lane blocks, H-pair = lead split
    p = jnp.maximum(jnp.maximum(y1[:, :256], y1[:, 256:]), 0.0)
    p = p.reshape(12, 2, tb, 256)
    p1 = jnp.maximum(p[:, 0], p[:, 1]).astype(bf16)    # (12, tb, 256), lanes = w1*20 + c

    # ---- conv2: 5 band matmuls, K = 256 each (native v6e/v7x MXU depth) ----
    # y2 cols = (wo2%2)*256 + (wo2//2)*50 + oc ; accumulator initialized with the bias
    y2 = b2_ref[...]
    for dh in range(5):
        lhs2 = p1[dh:dh + 8].reshape(8 * tb, 256)
        y2 = y2 + jnp.dot(lhs2, w2b_ref[dh], preferred_element_type=f32)

    # ---- pool2 (2x2) + relu ----
    p = jnp.maximum(jnp.maximum(y2[:, :256], y2[:, 256:]), 0.0)
    p = p.reshape(4, 2, tb, 256)
    p2 = jnp.maximum(p[:, 0], p[:, 1]).astype(bf16)    # (4, tb, 256), lanes = w2*50 + c

    # ---- fc1 + relu: K split over the 4 pooled rows; PyTorch (c,h,w) flatten is
    #      folded into the host-side wf1 packing ----
    h1 = bf1_ref[...]
    for h in range(4):
        h1 = h1 + jnp.dot(p2[h], wf1_ref[h], preferred_element_type=f32)
    h1 = jnp.maximum(h1, 0.0).astype(bf16)             # (tb, 512) (lanes 500.. are 0)

    # ---- fc2 (output lanes padded to a multiple of 128 -> unmasked stores) ----
    out = jnp.dot(h1, wf2_ref[...], preferred_element_type=f32) + bf2_ref[...]
    o_ref[...] = out.astype(o_ref.dtype)


# ------------------------- host-side weight packing ------------------------- #

def prepare_params(params, wdtype=jnp.bfloat16):
    """Pack PyTorch-layout LeNet params into matmul-ready, VMEM-friendly matrices."""
    w1, b1, w2, b2, wm1, bm1, wm2, bm2 = [np.asarray(p, np.float32) for p in params]
    nc = wm2.shape[0]
    ncp = ((nc + 127) // 128) * 128

    # conv1 merged band weights: input lane k = dh*28 + w
    # output col = (wo % 2) * 256 + (wo // 2) * 20 + oc   (even/odd blocks 128-aligned)
    w1b = np.zeros((140, 512), np.float32)
    b1t = np.zeros((1, 512), np.float32)
    for wo in range(24):
        cols = (wo % 2) * 256 + (wo // 2) * 20 + np.arange(20)
        b1t[0, cols] = b1
        for dh in range(5):
            for dw in range(5):
                w1b[dh * 28 + wo + dw, cols] = w1[:, 0, dh, dw]

    # conv2 band weights: input lanes = w1_idx * 20 + c (pooled-w major, channel minor)
    # output col = (wo2 % 2) * 256 + (wo2 // 2) * 50 + oc
    w2b = np.zeros((5, 256, 512), np.float32)
    b2t = np.zeros((1, 512), np.float32)
    for wo in range(8):
        cols = (wo % 2) * 256 + (wo // 2) * 50 + np.arange(50)
        b2t[0, cols] = b2
        for dh in range(5):
            for dw in range(5):
                rows = (wo + dw) * 20 + np.arange(20)
                w2b[dh, rows[:, None], cols[None, :]] = w2[:, :, dh, dw].T  # (c, oc)

    # fc1: kernel feature layout is p2[h][b][w*50 + c]; PyTorch flatten is c*16 + h*4 + w
    wf1 = np.zeros((4, 256, 512), np.float32)
    for h in range(4):
        for w in range(4):
            rows = w * 50 + np.arange(50)
            wf1[h, rows, :500] = wm1[:, np.arange(50) * 16 + h * 4 + w].T    # (c, 500)
    bf1t = np.zeros((1, 512), np.float32)
    bf1t[0, :500] = bm1

    # fc2: rows padded 500->512, cols padded nc->ncp (lane-dense output)
    wf2 = np.zeros((512, ncp), np.float32)
    wf2[:500, :nc] = wm2.T
    bf2t = np.zeros((1, ncp), np.float32)
    bf2t[0, :nc] = bm2

    return (jnp.asarray(w1b, wdtype), jnp.asarray(b1t, jnp.float32),
            jnp.asarray(w2b, wdtype), jnp.asarray(b2t, jnp.float32),
            jnp.asarray(wf1, wdtype), jnp.asarray(bf1t, jnp.float32),
            jnp.asarray(wf2, wdtype), jnp.asarray(bf2t, jnp.float32))


# -------------------------------- forward ----------------------------------- #

def lenet_forward(x, prepped, num_classes=10):
    """x: (B, 1, 28, 28) float32 -> (B, num_classes)."""
    w1b, b1t, w2b, b2t, wf1, bf1t, wf2, bf2t = prepped
    B = x.shape[0]
    ncp = wf2.shape[1]

    # Biggest batch tile that fits comfortably in VMEM on all generations; shrink
    # (to a multiple of 8) for small batches so tiny runs don't pad to 128.
    tb = min(MAX_TILE_B, ((B + 7) // 8) * 8)
    b_pad = ((B + tb - 1) // tb) * tb

    xs = x[:, 0, :, :]                                  # (B, 28, 28)
    if b_pad != B:
        xs = jnp.pad(xs, ((0, b_pad - B), (0, 0), (0, 0)))
    xs = jnp.transpose(xs, (1, 0, 2))                   # (28, B_pad, 28): h, b, w
    # Host-side H-only im2col: lane = dh*28 + w  ->  conv1 is a single K=140 matmul.
    xs = jnp.concatenate([xs[dh:dh + 24] for dh in range(5)], axis=-1)  # (24, B_pad, 140)

    grid = (b_pad // tb,)
    out = pl.pallas_call(
        functools.partial(_lenet_kernel, tb=tb),
        out_shape=jax.ShapeDtypeStruct((b_pad, ncp), jnp.float32),
        grid=grid,
        in_specs=[
            pl.BlockSpec((24, tb, 140), lambda i: (0, i, 0)),   # im2col'd input tile
            pl.BlockSpec((140, 512), lambda i: (0, 0)),         # conv1 merged bands
            pl.BlockSpec((1, 512), lambda i: (0, 0)),           # conv1 bias (tiled)
            pl.BlockSpec((5, 256, 512), lambda i: (0, 0, 0)),   # conv2 bands
            pl.BlockSpec((1, 512), lambda i: (0, 0)),           # conv2 bias (tiled)
            pl.BlockSpec((4, 256, 512), lambda i: (0, 0, 0)),   # fc1 (re-packed)
            pl.BlockSpec((1, 512), lambda i: (0, 0)),           # fc1 bias
            pl.BlockSpec((512, ncp), lambda i: (0, 0)),         # fc2
            pl.BlockSpec((1, ncp), lambda i: (0, 0)),           # fc2 bias
        ],
        out_specs=pl.BlockSpec((tb, ncp), lambda i: (i, 0)),
        compiler_params=pltpu.CompilerParams(
            dimension_semantics=("parallel",),
            vmem_limit_bytes=48 * 1024 * 1024,   # ~25 MB used at tb=128; safe on v7x
        ),
    )(xs, w1b, b1t, w2b, b2t, wf1, bf1t, wf2, bf2t)
    return out[:B, :num_classes]


# -------------------------- params / reference ------------------------------ #

def init_params(key, num_classes=10):
    ks = jax.random.split(key, 8)
    w1 = jax.random.normal(ks[0], (20, 1, 5, 5), jnp.float32) * (2.0 / (20 * 25)) ** 0.5
    b1 = jax.random.normal(ks[1], (20,), jnp.float32) * 0.1
    w2 = jax.random.normal(ks[2], (50, 20, 5, 5), jnp.float32) * (2.0 / (50 * 25)) ** 0.5
    b2 = jax.random.normal(ks[3], (50,), jnp.float32) * 0.1
    wm1 = jax.random.normal(ks[4], (500, 800), jnp.float32) * 0.02
    bm1 = jnp.zeros((500,), jnp.float32)
    wm2 = jax.random.normal(ks[5], (num_classes, 500), jnp.float32) * 0.02
    bm2 = jnp.zeros((num_classes,), jnp.float32)
    return (w1, b1, w2, b2, wm1, bm1, wm2, bm2)


def lenet_reference(x, params):
    """Independent pure-JAX/XLA reference matching the PyTorch forward."""
    w1, b1, w2, b2, wm1, bm1, wm2, bm2 = params

    def conv(xx, ww, bb):
        dn = lax.conv_dimension_numbers(xx.shape, ww.shape, ('NCHW', 'OIHW', 'NCHW'))
        return lax.conv_general_dilated(xx, ww, (1, 1), 'VALID',
                                        dimension_numbers=dn) + bb[None, :, None, None]

    def pool_relu(xx):
        p = lax.reduce_window(xx, -jnp.inf, lax.max, (1, 1, 2, 2), (1, 1, 2, 2), 'VALID')
        return jnp.maximum(p, 0.0)

    y = pool_relu(conv(x, w1, b1))
    y = pool_relu(conv(y, w2, b2))
    y = y.reshape(y.shape[0], -1)
    y = jnp.maximum(y @ wm1.T + bm1, 0.0)
    return y @ wm2.T + bm2


if __name__ == "__main__":
    key = jax.random.PRNGKey(0)
    kx, kp = jax.random.split(key)
    # LeNet's 800-dim flatten requires 28x28 single-channel input (MNIST-sized)
    x = jax.random.normal(kx, (2, 1, 28, 28), jnp.float32)
    params = init_params(kp, num_classes=10)
    prepped = prepare_params(params)

    fwd = jax.jit(functools.partial(lenet_forward, num_classes=10))
    out = fwd(x, prepped)
    jax.block_until_ready(out)

    ref = lenet_reference(x, params)
    assert out.shape == (2, 10), out.shape
    # bf16-weight MXU path vs XLA f32 reference: allow ~1% (outputs are O(0.1))
    assert jnp.allclose(out, ref, atol=2e-2, rtol=2e-2), (out, ref)
    print("KERNEL_OK")
</pallas_src>

<mosaic_0001>
module attributes {stable_mosaic.version = 11 : i64} {
  func.func @_lenet_kernel(%arg0: i32, %arg1: memref<24x8x140xf32, #tpu.memory_space<vmem>>, %arg2: memref<140x512xbf16, #tpu.memory_space<vmem>>, %arg3: memref<1x512xf32, #tpu.memory_space<vmem>>, %arg4: memref<5x256x512xbf16, #tpu.memory_space<vmem>>, %arg5: memref<1x512xf32, #tpu.memory_space<vmem>>, %arg6: memref<4x256x512xbf16, #tpu.memory_space<vmem>>, %arg7: memref<1x512xf32, #tpu.memory_space<vmem>>, %arg8: memref<512x128xbf16, #tpu.memory_space<vmem>>, %arg9: memref<1x128xf32, #tpu.memory_space<vmem>>, %arg10: memref<8x128xf32, #tpu.memory_space<vmem>>) attributes {dimension_semantics = [#tpu.dimension_semantics<parallel>], iteration_bounds = array<i64: 1>, scalar_prefetch = 0 : i64, scratch_operands = 0 : i64, tpu.core_type = #tpu.core_type<tc>, window_params = [{transform_indices = @transform_0, window_bounds = array<i64: 24, 8, 140>}, {pipeline_mode = #tpu.pipeline_mode<synchronous>, transform_indices = @transform_1, window_bounds = array<i64: 140, 512>}, {pipeline_mode = #tpu.pipeline_mode<synchronous>, transform_indices = @transform_2, window_bounds = array<i64: 1, 512>}, {pipeline_mode = #tpu.pipeline_mode<synchronous>, transform_indices = @transform_3, window_bounds = array<i64: 5, 256, 512>}, {pipeline_mode = #tpu.pipeline_mode<synchronous>, transform_indices = @transform_4, window_bounds = array<i64: 1, 512>}, {pipeline_mode = #tpu.pipeline_mode<synchronous>, transform_indices = @transform_5, window_bounds = array<i64: 4, 256, 512>}, {pipeline_mode = #tpu.pipeline_mode<synchronous>, transform_indices = @transform_6, window_bounds = array<i64: 1, 512>}, {pipeline_mode = #tpu.pipeline_mode<synchronous>, transform_indices = @transform_7, window_bounds = array<i64: 512, 128>}, {pipeline_mode = #tpu.pipeline_mode<synchronous>, transform_indices = @transform_8, window_bounds = array<i64: 1, 128>}, {transform_indices = @transform_9, window_bounds = array<i64: 8, 128>}]} {
    %c0 = arith.constant 0 : index
    %c0_0 = arith.constant 0 : index
    %c0_1 = arith.constant 0 : index
    %0 = vector.load %arg1[%c0, %c0_0, %c0_1] : memref<24x8x140xf32, #tpu.memory_space<vmem>>, vector<24x8x140xf32>
    %1 = vector.shape_cast %0 : vector<24x8x140xf32> to vector<192x140xf32>
    %2 = arith.truncf %1 : vector<192x140xf32> to vector<192x140xbf16>
    %c0_2 = arith.constant 0 : index
    %c0_3 = arith.constant 0 : index
    %3 = vector.load %arg2[%c0_2, %c0_3] : memref<140x512xbf16, #tpu.memory_space<vmem>>, vector<140x512xbf16>
    %cst = arith.constant dense<0.000000e+00> : vector<192x512xf32>
    %4 = tpu.matmul %2, %3, %cst {dimension_numbers = #tpu.dot_dimension_numbers<[1], [0], [0], [1], [0, 0, 1, 1], [], []>} : vector<192x140xbf16>, vector<140x512xbf16>, vector<192x512xf32> -> vector<192x512xf32>
    %c0_4 = arith.constant 0 : index
    %c0_5 = arith.constant 0 : index
    %5 = vector.load %arg3[%c0_4, %c0_5] : memref<1x512xf32, #tpu.memory_space<vmem>>, vector<1x512xf32>
    %6 = vector.broadcast %5 : vector<1x512xf32> to vector<192x512xf32>
    %7 = arith.addf %4, %6 : vector<192x512xf32>
    %8 = vector.extract_strided_slice %7 {offsets = [0, 0], sizes = [192, 256], strides = [1, 1]} : vector<192x512xf32> to vector<192x256xf32>
    %9 = vector.extract_strided_slice %7 {offsets = [0, 256], sizes = [192, 256], strides = [1, 1]} : vector<192x512xf32> to vector<192x256xf32>
    %10 = arith.maximumf %8, %9 : vector<192x256xf32>
    %cst_6 = arith.constant 0.000000e+00 : f32
    %11 = vector.broadcast %cst_6 : f32 to vector<192x256xf32>
    %12 = arith.maximumf %10, %11 : vector<192x256xf32>
    %13 = vector.shape_cast %12 : vector<192x256xf32> to vector<12x2x8x256xf32>
    %14 = vector.extract_strided_slice %13 {offsets = [0, 0, 0, 0], sizes = [12, 1, 8, 256], strides = [1, 1, 1, 1]} : vector<12x2x8x256xf32> to vector<12x1x8x256xf32>
    %15 = vector.shape_cast %14 : vector<12x1x8x256xf32> to vector<12x8x256xf32>
    %16 = vector.extract_strided_slice %13 {offsets = [0, 1, 0, 0], sizes = [12, 1, 8, 256], strides = [1, 1, 1, 1]} : vector<12x2x8x256xf32> to vector<12x1x8x256xf32>
    %17 = vector.shape_cast %16 : vector<12x1x8x256xf32> to vector<12x8x256xf32>
    %18 = arith.maximumf %15, %17 : vector<12x8x256xf32>
    %19 = arith.truncf %18 : vector<12x8x256xf32> to vector<12x8x256xbf16>
    %c0_7 = arith.constant 0 : index
    %c0_8 = arith.constant 0 : index
    %20 = vector.load %arg5[%c0_7, %c0_8] : memref<1x512xf32, #tpu.memory_space<vmem>>, vector<1x512xf32>
    %21 = vector.extract_strided_slice %19 {offsets = [0, 0, 0], sizes = [8, 8, 256], strides = [1, 1, 1]} : vector<12x8x256xbf16> to vector<8x8x256xbf16>
    %22 = vector.shape_cast %21 : vector<8x8x256xbf16> to vector<64x256xbf16>
    %c0_9 = arith.constant 0 : index
    %c0_10 = arith.constant 0 : index
    %c0_11 = arith.constant 0 : index
    %23 = vector.load %arg4[%c0_9, %c0_10, %c0_11] : memref<5x256x512xbf16, #tpu.memory_space<vmem>>, vector<1x256x512xbf16>
    %24 = vector.shape_cast %23 : vector<1x256x512xbf16> to vector<256x512xbf16>
    %cst_12 = arith.constant dense<0.000000e+00> : vector<64x512xf32>
    %25 = tpu.matmul %22, %24, %cst_12 {dimension_numbers = #tpu.dot_dimension_numbers<[1], [0], [0], [1], [0, 0, 1, 1], [], []>} : vector<64x256xbf16>, vector<256x512xbf16>, vector<64x512xf32> -> vector<64x512xf32>
    %26 = vector.broadcast %20 : vector<1x512xf32> to vector<64x512xf32>
    %27 = arith.addf %26, %25 : vector<64x512xf32>
    %28 = vector.extract_strided_slice %19 {offsets = [1, 0, 0], sizes = [8, 8, 256], strides = [1, 1, 1]} : vector<12x8x256xbf16> to vector<8x8x256xbf16>
    %29 = vector.shape_cast %28 : vector<8x8x256xbf16> to vector<64x256xbf16>
    %c1 = arith.constant 1 : index
    %c0_13 = arith.constant 0 : index
    %c0_14 = arith.constant 0 : index
    %30 = vector.load %arg4[%c1, %c0_13, %c0_14] : memref<5x256x512xbf16, #tpu.memory_space<vmem>>, vector<1x256x512xbf16>
    %31 = vector.shape_cast %30 : vector<1x256x512xbf16> to vector<256x512xbf16>
    %cst_15 = arith.constant dense<0.000000e+00> : vector<64x512xf32>
    %32 = tpu.matmul %29, %31, %cst_15 {dimension_numbers = #tpu.dot_dimension_numbers<[1], [0], [0], [1], [0, 0, 1, 1], [], []>} : vector<64x256xbf16>, vector<256x512xbf16>, vector<64x512xf32> -> vector<64x512xf32>
    %33 = arith.addf %27, %32 : vector<64x512xf32>
    %34 = vector.extract_strided_slice %19 {offsets = [2, 0, 0], sizes = [8, 8, 256], strides = [1, 1, 1]} : vector<12x8x256xbf16> to vector<8x8x256xbf16>
    %35 = vector.shape_cast %34 : vector<8x8x256xbf16> to vector<64x256xbf16>
    %c2 = arith.constant 2 : index
    %c0_16 = arith.constant 0 : index
    %c0_17 = arith.constant 0 : index
    %36 = vector.load %arg4[%c2, %c0_16, %c0_17] : memref<5x256x512xbf16, #tpu.memory_space<vmem>>, vector<1x256x512xbf16>
    %37 = vector.shape_cast %36 : vector<1x256x512xbf16> to vector<256x512xbf16>
    %cst_18 = arith.constant dense<0.000000e+00> : vector<64x512xf32>
    %38 = tpu.matmul %35, %37, %cst_18 {dimension_numbers = #tpu.dot_dimension_numbers<[1], [0], [0], [1], [0, 0, 1, 1], [], []>} : vector<64x256xbf16>, vector<256x512xbf16>, vector<64x512xf32> -> vector<64x512xf32>
    %39 = arith.addf %33, %38 : vector<64x512xf32>
    %40 = vector.extract_strided_slice %19 {offsets = [3, 0, 0], sizes = [8, 8, 256], strides = [1, 1, 1]} : vector<12x8x256xbf16> to vector<8x8x256xbf16>
    %41 = vector.shape_cast %40 : vector<8x8x256xbf16> to vector<64x256xbf16>
    %c3 = arith.constant 3 : index
    %c0_19 = arith.constant 0 : index
    %c0_20 = arith.constant 0 : index
    %42 = vector.load %arg4[%c3, %c0_19, %c0_20] : memref<5x256x512xbf16, #tpu.memory_space<vmem>>, vector<1x256x512xbf16>
    %43 = vector.shape_cast %42 : vector<1x256x512xbf16> to vector<256x512xbf16>
    %cst_21 = arith.constant dense<0.000000e+00> : vector<64x512xf32>
    %44 = tpu.matmul %41, %43, %cst_21 {dimension_numbers = #tpu.dot_dimension_numbers<[1], [0], [0], [1], [0, 0, 1, 1], [], []>} : vector<64x256xbf16>, vector<256x512xbf16>, vector<64x512xf32> -> vector<64x512xf32>
    %45 = arith.addf %39, %44 : vector<64x512xf32>
    %46 = vector.extract_strided_slice %19 {offsets = [4, 0, 0], sizes = [8, 8, 256], strides = [1, 1, 1]} : vector<12x8x256xbf16> to vector<8x8x256xbf16>
    %47 = vector.shape_cast %46 : vector<8x8x256xbf16> to vector<64x256xbf16>
    %c4 = arith.constant 4 : index
    %c0_22 = arith.constant 0 : index
    %c0_23 = arith.constant 0 : index
    %48 = vector.load %arg4[%c4, %c0_22, %c0_23] : memref<5x256x512xbf16, #tpu.memory_space<vmem>>, vector<1x256x512xbf16>
    %49 = vector.shape_cast %48 : vector<1x256x512xbf16> to vector<256x512xbf16>
    %cst_24 = arith.constant dense<0.000000e+00> : vector<64x512xf32>
    %50 = tpu.matmul %47, %49, %cst_24 {dimension_numbers = #tpu.dot_dimension_numbers<[1], [0], [0], [1], [0, 0, 1, 1], [], []>} : vector<64x256xbf16>, vector<256x512xbf16>, vector<64x512xf32> -> vector<64x512xf32>
    %51 = arith.addf %45, %50 : vector<64x512xf32>
    %52 = vector.extract_strided_slice %51 {offsets = [0, 0], sizes = [64, 256], strides = [1, 1]} : vector<64x512xf32> to vector<64x256xf32>
    %53 = vector.extract_strided_slice %51 {offsets = [0, 256], sizes = [64, 256], strides = [1, 1]} : vector<64x512xf32> to vector<64x256xf32>
    %54 = arith.maximumf %52, %53 : vector<64x256xf32>
    %cst_25 = arith.constant 0.000000e+00 : f32
    %55 = vector.broadcast %cst_25 : f32 to vector<64x256xf32>
    %56 = arith.maximumf %54, %55 : vector<64x256xf32>
    %57 = vector.shape_cast %56 : vector<64x256xf32> to vector<4x2x8x256xf32>
    %58 = vector.extract_strided_slice %57 {offsets = [0, 0, 0, 0], sizes = [4, 1, 8, 256], strides = [1, 1, 1, 1]} : vector<4x2x8x256xf32> to vector<4x1x8x256xf32>
    %59 = vector.shape_cast %58 : vector<4x1x8x256xf32> to vector<4x8x256xf32>
    %60 = vector.extract_strided_slice %57 {offsets = [0, 1, 0, 0], sizes = [4, 1, 8, 256], strides = [1, 1, 1, 1]} : vector<4x2x8x256xf32> to vector<4x1x8x256xf32>
    %61 = vector.shape_cast %60 : vector<4x1x8x256xf32> to vector<4x8x256xf32>
    %62 = arith.maximumf %59, %61 : vector<4x8x256xf32>
    %63 = arith.truncf %62 : vector<4x8x256xf32> to vector<4x8x256xbf16>
    %c0_26 = arith.constant 0 : index
    %c0_27 = arith.constant 0 : index
    %64 = vector.load %arg7[%c0_26, %c0_27] : memref<1x512xf32, #tpu.memory_space<vmem>>, vector<1x512xf32>
    %65 = vector.extract_strided_slice %63 {offsets = [0, 0, 0], sizes = [1, 8, 256], strides = [1, 1, 1]} : vector<4x8x256xbf16> to vector<1x8x256xbf16>
    %66 = vector.shape_cast %65 : vector<1x8x256xbf16> to vector<8x256xbf16>
    %c0_28 = arith.constant 0 : index
    %c0_29 = arith.constant 0 : index
    %c0_30 = arith.constant 0 : index
    %67 = vector.load %arg6[%c0_28, %c0_29, %c0_30] : memref<4x256x512xbf16, #tpu.memory_space<vmem>>, vector<1x256x512xbf16>
    %68 = vector.shape_cast %67 : vector<1x256x512xbf16> to vector<256x512xbf16>
    %cst_31 = arith.constant dense<0.000000e+00> : vector<8x512xf32>
    %69 = tpu.matmul %66, %68, %cst_31 {dimension_numbers = #tpu.dot_dimension_numbers<[1], [0], [0], [1], [0, 0, 1, 1], [], []>} : vector<8x256xbf16>, vector<256x512xbf16>, vector<8x512xf32> -> vector<8x512xf32>
    %70 = vector.broadcast %64 : vector<1x512xf32> to vector<8x512xf32>
    %71 = arith.addf %70, %69 : vector<8x512xf32>
    %72 = vector.extract_strided_slice %63 {offsets = [1, 0, 0], sizes = [1, 8, 256], strides = [1, 1, 1]} : vector<4x8x256xbf16> to vector<1x8x256xbf16>
    %73 = vector.shape_cast %72 : vector<1x8x256xbf16> to vector<8x256xbf16>
    %c1_32 = arith.constant 1 : index
    %c0_33 = arith.constant 0 : index
    %c0_34 = arith.constant 0 : index
    %74 = vector.load %arg6[%c1_32, %c0_33, %c0_34] : memref<4x256x512xbf16, #tpu.memory_space<vmem>>, vector<1x256x512xbf16>
    %75 = vector.shape_cast %74 : vector<1x256x512xbf16> to vector<256x512xbf16>
    %cst_35 = arith.constant dense<0.000000e+00> : vector<8x512xf32>
    %76 = tpu.matmul %73, %75, %cst_35 {dimension_numbers = #tpu.dot_dimension_numbers<[1], [0], [0], [1], [0, 0, 1, 1], [], []>} : vector<8x256xbf16>, vector<256x512xbf16>, vector<8x512xf32> -> vector<8x512xf32>
    %77 = arith.addf %71, %76 : vector<8x512xf32>
    %78 = vector.extract_strided_slice %63 {offsets = [2, 0, 0], sizes = [1, 8, 256], strides = [1, 1, 1]} : vector<4x8x256xbf16> to vector<1x8x256xbf16>
    %79 = vector.shape_cast %78 : vector<1x8x256xbf16> to vector<8x256xbf16>
    %c2_36 = arith.constant 2 : index
    %c0_37 = arith.constant 0 : index
    %c0_38 = arith.constant 0 : index
    %80 = vector.load %arg6[%c2_36, %c0_37, %c0_38] : memref<4x256x512xbf16, #tpu.memory_space<vmem>>, vector<1x256x512xbf16>
    %81 = vector.shape_cast %80 : vector<1x256x512xbf16> to vector<256x512xbf16>
    %cst_39 = arith.constant dense<0.000000e+00> : vector<8x512xf32>
    %82 = tpu.matmul %79, %81, %cst_39 {dimension_numbers = #tpu.dot_dimension_numbers<[1], [0], [0], [1], [0, 0, 1, 1], [], []>} : vector<8x256xbf16>, vector<256x512xbf16>, vector<8x512xf32> -> vector<8x512xf32>
    %83 = arith.addf %77, %82 : vector<8x512xf32>
    %84 = vector.extract_strided_slice %63 {offsets = [3, 0, 0], sizes = [1, 8, 256], strides = [1, 1, 1]} : vector<4x8x256xbf16> to vector<1x8x256xbf16>
    %85 = vector.shape_cast %84 : vector<1x8x256xbf16> to vector<8x256xbf16>
    %c3_40 = arith.constant 3 : index
    %c0_41 = arith.constant 0 : index
    %c0_42 = arith.constant 0 : index
    %86 = vector.load %arg6[%c3_40, %c0_41, %c0_42] : memref<4x256x512xbf16, #tpu.memory_space<vmem>>, vector<1x256x512xbf16>
    %87 = vector.shape_cast %86 : vector<1x256x512xbf16> to vector<256x512xbf16>
    %cst_43 = arith.constant dense<0.000000e+00> : vector<8x512xf32>
    %88 = tpu.matmul %85, %87, %cst_43 {dimension_numbers = #tpu.dot_dimension_numbers<[1], [0], [0], [1], [0, 0, 1, 1], [], []>} : vector<8x256xbf16>, vector<256x512xbf16>, vector<8x512xf32> -> vector<8x512xf32>
    %89 = arith.addf %83, %88 : vector<8x512xf32>
    %cst_44 = arith.constant 0.000000e+00 : f32
    %90 = vector.broadcast %cst_44 : f32 to vector<8x512xf32>
    %91 = arith.maximumf %89, %90 : vector<8x512xf32>
    %92 = arith.truncf %91 : vector<8x512xf32> to vector<8x512xbf16>
    %c0_45 = arith.constant 0 : index
    %c0_46 = arith.constant 0 : index
    %93 = vector.load %arg8[%c0_45, %c0_46] : memref<512x128xbf16, #tpu.memory_space<vmem>>, vector<512x128xbf16>
    %cst_47 = arith.constant dense<0.000000e+00> : vector<8x128xf32>
    %94 = tpu.matmul %92, %93, %cst_47 {dimension_numbers = #tpu.dot_dimension_numbers<[1], [0], [0], [1], [0, 0, 1, 1], [], []>} : vector<8x512xbf16>, vector<512x128xbf16>, vector<8x128xf32> -> vector<8x128xf32>
    %c0_48 = arith.constant 0 : index
    %c0_49 = arith.constant 0 : index
    %95 = vector.load %arg9[%c0_48, %c0_49] : memref<1x128xf32, #tpu.memory_space<vmem>>, vector<1x128xf32>
    %96 = vector.broadcast %95 : vector<1x128xf32> to vector<8x128xf32>
    %97 = arith.addf %94, %96 : vector<8x128xf32>
    %c0_50 = arith.constant 0 : index
    %c0_51 = arith.constant 0 : index
    %98 = vector.load %arg10[%c0_50, %c0_51] : memref<8x128xf32, #tpu.memory_space<vmem>>, vector<8x128xf32>
    tpu.vector_store %arg10[%c0_50, %c0_51], %97 {strides = array<i32>} : memref<8x128xf32, #tpu.memory_space<vmem>>, vector<8x128xf32>,
    return
  }
  func.func @transform_0(%arg0: i32) -> (i32, i32, i32) {
    %c0_i32 = arith.constant 0 : i32
    %c0_i32_0 = arith.constant 0 : i32
    %c0_i32_1 = arith.constant 0 : i32
    return %c0_i32, %arg0, %c0_i32_0 : i32, i32, i32
  }
  func.func @transform_1(%arg0: i32) -> (i32, i32) {
    %c0_i32 = arith.constant 0 : i32
    %c0_i32_0 = arith.constant 0 : i32
    %c0_i32_1 = arith.constant 0 : i32
    return %c0_i32, %c0_i32_0 : i32, i32
  }
  func.func @transform_2(%arg0: i32) -> (i32, i32) {
    %c0_i32 = arith.constant 0 : i32
    %c0_i32_0 = arith.constant 0 : i32
    %c0_i32_1 = arith.constant 0 : i32
    return %c0_i32, %c0_i32_0 : i32, i32
  }
  func.func @transform_3(%arg0: i32) -> (i32, i32, i32) {
    %c0_i32 = arith.constant 0 : i32
    %c0_i32_0 = arith.constant 0 : i32
    %c0_i32_1 = arith.constant 0 : i32
    %c0_i32_2 = arith.constant 0 : i32
    return %c0_i32, %c0_i32_0, %c0_i32_1 : i32, i32, i32
  }
  func.func @transform_4(%arg0: i32) -> (i32, i32) {
    %c0_i32 = arith.constant 0 : i32
    %c0_i32_0 = arith.constant 0 : i32
    %c0_i32_1 = arith.constant 0 : i32
    return %c0_i32, %c0_i32_0 : i32, i32
  }
  func.func @transform_5(%arg0: i32) -> (i32, i32, i32) {
    %c0_i32 = arith.constant 0 : i32
    %c0_i32_0 = arith.constant 0 : i32
    %c0_i32_1 = arith.constant 0 : i32
    %c0_i32_2 = arith.constant 0 : i32
    return %c0_i32, %c0_i32_0, %c0_i32_1 : i32, i32, i32
  }
  func.func @transform_6(%arg0: i32) -> (i32, i32) {
    %c0_i32 = arith.constant 0 : i32
    %c0_i32_0 = arith.constant 0 : i32
    %c0_i32_1 = arith.constant 0 : i32
    return %c0_i32, %c0_i32_0 : i32, i32
  }
  func.func @transform_7(%arg0: i32) -> (i32, i32) {
    %c0_i32 = arith.constant 0 : i32
    %c0_i32_0 = arith.constant 0 : i32
    %c0_i32_1 = arith.constant 0 : i32
    return %c0_i32, %c0_i32_0 : i32, i32
  }
  func.func @transform_8(%arg0: i32) -> (i32, i32) {
    %c0_i32 = arith.constant 0 : i32
    %c0_i32_0 = arith.constant 0 : i32
    %c0_i32_1 = arith.constant 0 : i32
    return %c0_i32, %c0_i32_0 : i32, i32
  }
  func.func @transform_9(%arg0: i32) -> (i32, i32) {
    %c0_i32 = arith.constant 0 : i32
    %c0_i32_0 = arith.constant 0 : i32
    return %arg0, %c0_i32 : i32, i32
  }
}

</mosaic_0001>

<llo_original>
// kernel: lenet_forward.1
$region0: #{lenet_forward.1}
  #allocation0 [shape = 'u32[]', space=smem, size = 0x4, offset = 0x4, fixed_abs, tag = 'smem constant byte address 0x4 - core index']
  #allocation1 [shape = 'u32[144,128]{1,0:T(1,128)}', space=vmem, size = 0x12000, scoped, tag = 'internal scratch']
  %s0 = inlined_call_operand.vmem [shape: f32[24,8,140], index: 0, kind: input, shape index: {}]
  %s1 = inlined_call_operand.vmem [shape: bf16[140,512], index: 1, kind: input, shape index: {}]
  %s2 = inlined_call_operand.vmem [shape: f32[1,512], index: 2, kind: input, shape index: {}]
  %s3 = inlined_call_operand.vmem [shape: bf16[5,256,512], index: 3, kind: input, shape index: {}]
  %s4 = inlined_call_operand.vmem [shape: f32[1,512], index: 4, kind: input, shape index: {}]
  %s5 = inlined_call_operand.hbm [shape: bf16[4,256,512], index: 5, kind: input, shape index: {}]
  %s6 = inlined_call_operand.vmem [shape: f32[1,512], index: 6, kind: input, shape index: {}]
  %s7 = inlined_call_operand.vmem [shape: bf16[512,128], index: 7, kind: input, shape index: {}]
  %s8 = inlined_call_operand.vmem [shape: f32[1,128], index: 8, kind: input, shape index: {}]
  %s9 = inlined_call_operand.vmem [shape: f32[8,128], index: 9, kind: output, shape index: {}]
  %s10 = sld [smem:[#allocation0]]
  $region50: #{lenet_forward.1} parent=0
    _
  %s12 = ssub.s32 1, %s10
  %s13 = scalar_select 0, %s12, %s10
  $region1: #{lenet_forward.1} parent=0
    #allocation2 [shape = 'u8[1048576]{0}', space=vmem, size = 0x100000, scoped, tag = 'input window, operand 5, single buffered']
    #allocation3 [shape = 's32[1]{0}', space=sflag, size = 0x4, scoped, tag = 'scoped memory for lenet_forward.1']
    %14 = vsyncpa [#allocation3], 0
    // Predicated region
    $region2: #{lenet_forward.1} parent=1 // pred_check
      _
    $region3: #{lenet_forward.1} parent=1 // pred_check_branch
      %16 = sbr.rel (0) target = $region5
    $region4: #{lenet_forward.1} parent=1 // pred_region
      _
    $region5: #{lenet_forward.1} parent=1 // pred_fallthru
      _
    // Predicated region
    $region6: #{lenet_forward.1} parent=1 // pred_check
      _
    $region7: #{lenet_forward.1} parent=1 // pred_check_branch
      %18 = sbr.rel (0) target = $region9
    $region8: #{lenet_forward.1} parent=1 // pred_region
      _
    $region9: #{lenet_forward.1} parent=1 // pred_fallthru
      _
    // Predicated region
    $region10: #{lenet_forward.1} parent=1 // pred_check
      _
    $region11: #{lenet_forward.1} parent=1 // pred_check_branch
      %20 = sbr.rel (0) target = $region13
    $region12: #{lenet_forward.1} parent=1 // pred_region
      _
    $region13: #{lenet_forward.1} parent=1 // pred_fallthru
      _
    // Predicated region
    $region14: #{lenet_forward.1} parent=1 // pred_check
      _
    $region15: #{lenet_forward.1} parent=1 // pred_check_branch
      %22 = sbr.rel (0) target = $region17
    $region16: #{lenet_forward.1} parent=1 // pred_region
      _
    $region17: #{lenet_forward.1} parent=1 // pred_fallthru
      _
    // Predicated region
    $region18: #{lenet_forward.1} parent=1 // pred_check
      _
    $region19: #{lenet_forward.1} parent=1 // pred_check_branch
      %24 = sbr.rel (0) target = $region21
    $region20: #{lenet_forward.1} parent=1 // pred_region
      _
    $region21: #{lenet_forward.1} parent=1 // pred_fallthru
      _
    // Predicated region
    $region22: #{lenet_forward.1} parent=1 // pred_check
      _
    $region23: #{lenet_forward.1} parent=1 // pred_check_branch
      %26 = sbr.rel (0) target = $region25
    $region24: #{lenet_forward.1} parent=1 // pred_region
      %s28 = ssub.s32 32768, 32768
      %29 = vsyncadd [#allocation3], %s28
      %s30 = sshll.u32 [#allocation2], 4
      %s31 = int_to_ptr.vmem [resolvable:$true] %s30
      %36 = dma.hbm_to_vmem [thread:$0]  %s5, 32768, %s31, [#allocation3], 256, 256, 16
    $region25: #{lenet_forward.1} parent=1 // pred_fallthru
      _
    // Predicated region
    $region26: #{lenet_forward.1} parent=1 // pred_check
      _
    $region27: #{lenet_forward.1} parent=1 // pred_check_branch
      %38 = sbr.rel (0) target = $region29
    $region28: #{lenet_forward.1} parent=1 // pred_region
      _
    $region29: #{lenet_forward.1} parent=1 // pred_fallthru
      _
    // Predicated region
    $region30: #{lenet_forward.1} parent=1 // pred_check
      _
    $region31: #{lenet_forward.1} parent=1 // pred_check_branch
      %40 = sbr.rel (0) target = $region33
    $region32: #{lenet_forward.1} parent=1 // pred_region
      _
    $region33: #{lenet_forward.1} parent=1 // pred_fallthru
      _
    // Predicated region
    $region34: #{lenet_forward.1} parent=1 // pred_check
      _
    $region35: #{lenet_forward.1} parent=1 // pred_check_branch
      %42 = sbr.rel (0) target = $region37
    $region36: #{lenet_forward.1} parent=1 // pred_region
      _
    $region37: #{lenet_forward.1} parent=1 // pred_fallthru
      _
    // Predicated region
    $region38: #{lenet_forward.1} parent=1 // pred_check
      _
    $region39: #{lenet_forward.1} parent=1 // pred_check_branch
      %44 = sbr.rel (0) target = $region41
    $region40: #{lenet_forward.1} parent=1 // pred_region
      %45 = dma.done [#allocation3], 32768
    $region41: #{lenet_forward.1} parent=1 // pred_fallthru
      _
    %v47 = vld [vmem:[%s0] sm:$0xff]
    %v48 = vld [vmem:[%s0 + $0x8] sm:$0xff]
    %v49 = vld [vmem:[%s0 + $0x10] sm:$0xff]
    %v50 = vld [vmem:[%s0 + $0x18] sm:$0xff]
    %v51 = vld [vmem:[%s0 + $0x20] sm:$0xff]
    %v52 = vld [vmem:[%s0 + $0x28] sm:$0xff]
    %v53 = vld [vmem:[%s0 + $0x30] sm:$0xff]
    %v54 = vld [vmem:[%s0 + $0x38] sm:$0xff]
    %v55 = vld [vmem:[%s0 + $0x40] sm:$0xff]
    %v56 = vld [vmem:[%s0 + $0x48] sm:$0xff]
    %v57 = vld [vmem:[%s0 + $0x50] sm:$0xff]
    %v58 = vld [vmem:[%s0 + $0x58] sm:$0xff]
    %v59 = vld [vmem:[%s0 + $0x60] sm:$0xff]
    %v60 = vld [vmem:[%s0 + $0x68] sm:$0xff]
    %v61 = vld [vmem:[%s0 + $0x70] sm:$0xff]
    %v62 = vld [vmem:[%s0 + $0x78] sm:$0xff]
    %v63 = vld [vmem:[%s0 + $0x80] sm:$0xff]
    %v64 = vld [vmem:[%s0 + $0x88] sm:$0xff]
    %v65 = vld [vmem:[%s0 + $0x90] sm:$0xff]
    %v66 = vld [vmem:[%s0 + $0x98] sm:$0xff]
    %v67 = vld [vmem:[%s0 + $0xa0] sm:$0xff]
    %v68 = vld [vmem:[%s0 + $0xa8] sm:$0xff]
    %v69 = vld [vmem:[%s0 + $0xb0] sm:$0xff]
    %v70 = vld [vmem:[%s0 + $0xb8] sm:$0xff]
    %v71 = vld [vmem:[%s0 + $0xc0] sm:$0xff]
    %v72 = vld [vmem:[%s0 + $0xc8] sm:$0xff]
    %v73 = vld [vmem:[%s0 + $0xd0] sm:$0xff]
    %v74 = vld [vmem:[%s0 + $0xd8] sm:$0xff]
    %v75 = vld [vmem:[%s0 + $0xe0] sm:$0xff]
    %v76 = vld [vmem:[%s0 + $0xe8] sm:$0xff]
    %v77 = vld [vmem:[%s0 + $0xf0] sm:$0xff]
    %v78 = vld [vmem:[%s0 + $0xf8] sm:$0xff]
    %v79 = vld [vmem:[%s0 + $0x100] sm:$0xff]
    %v80 = vld [vmem:[%s0 + $0x108] sm:$0xff]
    %v81 = vld [vmem:[%s0 + $0x110] sm:$0xff]
    %v82 = vld [vmem:[%s0 + $0x118] sm:$0xff]
    %v83 = vld [vmem:[%s0 + $0x120] sm:$0xff]
    %v84 = vld [vmem:[%s0 + $0x128] sm:$0xff]
    %v85 = vld [vmem:[%s0 + $0x130] sm:$0xff]
    %v86 = vld [vmem:[%s0 + $0x138] sm:$0xff]
    %v87 = vld [vmem:[%s0 + $0x140] sm:$0xff]
    %v88 = vld [vmem:[%s0 + $0x148] sm:$0xff]
    %v89 = vld [vmem:[%s0 + $0x150] sm:$0xff]
    %v90 = vld [vmem:[%s0 + $0x158] sm:$0xff]
    %v91 = vld [vmem:[%s0 + $0x160] sm:$0xff]
    %v92 = vld [vmem:[%s0 + $0x168] sm:$0xff]
    %v93 = vld [vmem:[%s0 + $0x170] sm:$0xff]
    %v94 = vld [vmem:[%s0 + $0x178] sm:$0xff]
    %v95 = vpack.c.bf16 %v49, %v47
    %v96 = vpack.c.bf16 %v50, %v48
    %v97 = vpack.c.bf16 %v53, %v51
    %v98 = vpack.c.bf16 %v54, %v52
    %v99 = vpack.c.bf16 %v57, %v55
    %v100 = vpack.c.bf16 %v58, %v56
    %v101 = vpack.c.bf16 %v61, %v59
    %v102 = vpack.c.bf16 %v62, %v60
    %v103 = vpack.c.bf16 %v65, %v63
    %v104 = vpack.c.bf16 %v66, %v64
    %v105 = vpack.c.bf16 %v69, %v67
    %v106 = vpack.c.bf16 %v70, %v68
    %v107 = vpack.c.bf16 %v73, %v71
    %v108 = vpack.c.bf16 %v74, %v72
    %v109 = vpack.c.bf16 %v77, %v75
    %v110 = vpack.c.bf16 %v78, %v76
    %v111 = vpack.c.bf16 %v81, %v79
    %v112 = vpack.c.bf16 %v82, %v80
    %v113 = vpack.c.bf16 %v85, %v83
    %v114 = vpack.c.bf16 %v86, %v84
    %v115 = vpack.c.bf16 %v89, %v87
    %v116 = vpack.c.bf16 %v90, %v88
    %v117 = vpack.c.bf16 %v93, %v91
    %v118 = vpack.c.bf16 %v94, %v92
    %v119 = vld [vmem:[%s1] sm:$0xff]
    %v120 = vld [vmem:[%s1 + $0x8] sm:$0xff]
    %v121 = vld [vmem:[%s1 + $0x10] sm:$0xff]
    %v122 = vld [vmem:[%s1 + $0x18] sm:$0xff]
    %v123 = vld [vmem:[%s1 + $0x20] sm:$0xff]
    %v124 = vld [vmem:[%s1 + $0x28] sm:$0xff]
    %v125 = vld [vmem:[%s1 + $0x30] sm:$0xff]
    %v126 = vld [vmem:[%s1 + $0x38] sm:$0xff]
    %v127 = vld [vmem:[%s1 + $0x40] sm:$0xff]
    %v128 = vld [vmem:[%s1 + $0x48] sm:$0xff]
    %v129 = vld [vmem:[%s1 + $0x50] sm:$0xff]
    %v130 = vld [vmem:[%s1 + $0x58] sm:$0xff]
    %v131 = vld [vmem:[%s1 + $0x60] sm:$0xff]
    %v132 = vld [vmem:[%s1 + $0x68] sm:$0xff]
    %v133 = vld [vmem:[%s1 + $0x70] sm:$0xff]
    %v134 = vld [vmem:[%s1 + $0x78] sm:$0xff]
    %v135 = vld [vmem:[%s1 + $0x80] sm:$0xff]
    %v136 = vld [vmem:[%s1 + $0x88] sm:$0xff]
    %v137 = vld [vmem:[%s1 + $0x90] sm:$0xff]
    %v138 = vld [vmem:[%s1 + $0x98] sm:$0xff]
    %v139 = vld [vmem:[%s1 + $0xa0] sm:$0xff]
    %v140 = vld [vmem:[%s1 + $0xa8] sm:$0xff]
    %v141 = vld [vmem:[%s1 + $0xb0] sm:$0xff]
    %v142 = vld [vmem:[%s1 + $0xb8] sm:$0xff]
    %v143 = vld [vmem:[%s1 + $0xc0] sm:$0xff]
    %v144 = vld [vmem:[%s1 + $0xc8] sm:$0xff]
    %v145 = vld [vmem:[%s1 + $0xd0] sm:$0xff]
    %v146 = vld [vmem:[%s1 + $0xd8] sm:$0xff]
    %v147 = vld [vmem:[%s1 + $0xe0] sm:$0xff]
    %v148 = vld [vmem:[%s1 + $0xe8] sm:$0xff]
    %v149 = vld [vmem:[%s1 + $0xf0] sm:$0xff]
    %v150 = vld [vmem:[%s1 + $0xf8] sm:$0xff]
    %v151 = vld [vmem:[%s1 + $0x100] sm:$0xff]
    %v152 = vld [vmem:[%s1 + $0x108] sm:$0xff]
    %v153 = vld [vmem:[%s1 + $0x110] sm:$0x33]
    %v154 = vld [vmem:[%s1 + $0x118] sm:$0x33]
    %v155 = vld [vmem:[%s2] sm:$0xf]
    %v157 = vlaneseq
    %v158 = vshrl.u32 %v157, 7
    %v159 = vsub.s32 0, %v158
    %v160 = vrot.slane %v155, %v159
    %v161 = vlaneseq
    %v162 = vshrl.u32 %v161, 7
    %v163 = vsub.s32 1, %v162
    %v164 = vrot.slane %v155, %v163
    %v165 = vlaneseq
    %v166 = vshrl.u32 %v165, 7
    %v167 = vsub.s32 2, %v166
    %v168 = vrot.slane %v155, %v167
    %v169 = vlaneseq
    %v170 = vshrl.u32 %v169, 7
    %v171 = vsub.s32 3, %v170
    %v172 = vrot.slane %v155, %v171
    %v213 = vunpack.c.l.b16 %v119
    %v214 = vunpack.c.h.b16 %v119
    %v215 = vunpack.c.l.b16 %v120
    %v216 = vunpack.c.h.b16 %v120
    %v217 = vunpack.c.l.b16 %v121
    %v218 = vunpack.c.h.b16 %v121
    %v219 = vunpack.c.l.b16 %v122
    %v220 = vunpack.c.h.b16 %v122
    %v221 = vunpack.c.l.b16 %v123
    %v222 = vunpack.c.h.b16 %v123
    %v223 = vunpack.c.l.b16 %v124
    %v224 = vunpack.c.h.b16 %v124
    %v225 = vunpack.c.l.b16 %v125
    %v226 = vunpack.c.h.b16 %v125
    %v227 = vunpack.c.l.b16 %v126
    %v228 = vunpack.c.h.b16 %v126
    %v229 = vunpack.c.l.b16 %v127
    %v230 = vunpack.c.h.b16 %v127
    %v231 = vunpack.c.l.b16 %v128
    %v232 = vunpack.c.h.b16 %v128
    %v233 = vunpack.c.l.b16 %v129
    %v234 = vunpack.c.h.b16 %v129
    %v235 = vunpack.c.l.b16 %v130
    %v236 = vunpack.c.h.b16 %v130
    %v237 = vunpack.c.l.b16 %v131
    %v238 = vunpack.c.h.b16 %v131
    %v239 = vunpack.c.l.b16 %v132
    %v240 = vunpack.c.h.b16 %v132
    %v241 = vunpack.c.l.b16 %v133
    %v242 = vunpack.c.h.b16 %v133
    %v243 = vunpack.c.l.b16 %v134
    %v244 = vunpack.c.h.b16 %v134
    %v245 = vunpack.c.l.b16 %v135
    %v246 = vunpack.c.h.b16 %v135
    %v247 = vunpack.c.l.b16 %v136
    %v248 = vunpack.c.h.b16 %v136
    %v249 = vunpack.c.l.b16 %v137
    %v250 = vunpack.c.h.b16 %v137
    %v251 = vunpack.c.l.b16 %v138
    %v252 = vunpack.c.h.b16 %v138
    %v253 = vunpack.c.l.b16 %v139
    %v254 = vunpack.c.h.b16 %v139
    %v255 = vunpack.c.l.b16 %v140
    %v256 = vunpack.c.h.b16 %v140
    %v257 = vunpack.c.l.b16 %v141
    %v258 = vunpack.c.h.b16 %v141
    %v259 = vunpack.c.l.b16 %v142
    %v260 = vunpack.c.h.b16 %v142
    %v261 = vunpack.c.l.b16 %v143
    %v262 = vunpack.c.h.b16 %v143
    %v263 = vunpack.c.l.b16 %v144
    %v264 = vunpack.c.h.b16 %v144
    %v265 = vunpack.c.l.b16 %v145
    %v266 = vunpack.c.h.b16 %v145
    %v267 = vunpack.c.l.b16 %v146
    %v268 = vunpack.c.h.b16 %v146
    %v269 = vunpack.c.l.b16 %v147
    %v270 = vunpack.c.h.b16 %v147
    %v271 = vunpack.c.l.b16 %v148
    %v272 = vunpack.c.h.b16 %v148
    %v273 = vunpack.c.l.b16 %v149
    %v274 = vunpack.c.h.b16 %v149
    %v275 = vunpack.c.l.b16 %v150
    %v276 = vunpack.c.h.b16 %v150
    %v277 = vunpack.c.l.b16 %v151
    %v278 = vunpack.c.h.b16 %v151
    %v279 = vunpack.c.l.b16 %v152
    %v280 = vunpack.c.h.b16 %v152
    %v281 = vunpack.c.l.b16 %v153
    %v282 = vunpack.c.h.b16 %v153
    %v283 = vunpack.c.l.b16 %v154
    %v284 = vunpack.c.h.b16 %v154
    %v285 = vpack.c.b16 %v217, %v213
    %v286 = vpack.c.b16 %v218, %v214
    %v287 = vpack.c.b16 %v219, %v215
    %v288 = vpack.c.b16 %v220, %v216
    %v289 = vpack.c.b16 %v225, %v221
    %v290 = vpack.c.b16 %v226, %v222
    %v291 = vpack.c.b16 %v227, %v223
    %v292 = vpack.c.b16 %v228, %v224
    %v293 = vpack.c.b16 %v233, %v229
    %v294 = vpack.c.b16 %v234, %v230
    %v295 = vpack.c.b16 %v235, %v231
    %v296 = vpack.c.b16 %v236, %v232
    %v297 = vpack.c.b16 %v241, %v237
    %v298 = vpack.c.b16 %v242, %v238
    %v299 = vpack.c.b16 %v243, %v239
    %v300 = vpack.c.b16 %v244, %v240
    %v301 = vpack.c.b16 %v249, %v245
    %v302 = vpack.c.b16 %v250, %v246
    %v303 = vpack.c.b16 %v251, %v247
    %v304 = vpack.c.b16 %v252, %v248
    %v305 = vpack.c.b16 %v257, %v253
    %v306 = vpack.c.b16 %v258, %v254
    %v307 = vpack.c.b16 %v259, %v255
    %v308 = vpack.c.b16 %v260, %v256
    %v309 = vpack.c.b16 %v265, %v261
    %v310 = vpack.c.b16 %v266, %v262
    %v311 = vpack.c.b16 %v267, %v263
    %v312 = vpack.c.b16 %v268, %v264
    %v313 = vpack.c.b16 %v273, %v269
    %v314 = vpack.c.b16 %v274, %v270
    %v315 = vpack.c.b16 %v275, %v271
    %v316 = vpack.c.b16 %v276, %v272
    %v317 = vpack.c.b16 %v281, %v277
    %v318 = vpack.c.b16 %v282, %v278
    %v319 = vpack.c.b16 %v283, %v279
    %v320 = vpack.c.b16 %v284, %v280
    %vm353 = vcmask 97280
    %v355 = vsel %vm353, %v96, 0
    %v358 = vsel %vm353, %v98, 0
    %v361 = vsel %vm353, %v100, 0
    %v364 = vsel %vm353, %v102, 0
    %v367 = vsel %vm353, %v104, 0
    %v370 = vsel %vm353, %v106, 0
    %v373 = vsel %vm353, %v108, 0
    %v376 = vsel %vm353, %v110, 0
    %v379 = vsel %vm353, %v112, 0
    %v382 = vsel %vm353, %v114, 0
    %v385 = vsel %vm353, %v116, 0
    %v388 = vsel %vm353, %v118, 0
    %vm390 = vcmask 1045504
    %v392 = vsel %vm390, %v317, 0
    %v395 = vsel %vm390, %v318, 0
    %v398 = vsel %vm390, %v319, 0
    %v401 = vsel %vm390, %v320, 0
    %403 = vmatprep.subr.bf16.mxu0 %v314
    %404 = vmatpush1.bf16.msra.mxu0 %v313
    %405 = vmatprep.subr.bf16.mxu0 %v310
    %406 = vmatpush1.bf16.msra.mxu0 %v309
    %407 = vmatprep.subr.bf16.mxu0 %v306
    %408 = vmatpush1.bf16.msra.mxu0 %v305
    %409 = vmatprep.subr.bf16.mxu0 %v302
    %410 = vmatpush1.bf16.msra.mxu0 %v301
    %411 = vmatprep.subr.bf16.mxu0 %v298
    %412 = vmatpush1.bf16.msra.mxu0 %v297
    %413 = vmatprep.subr.bf16.mxu0 %v294
    %414 = vmatpush1.bf16.msra.mxu0 %v293
    %415 = vmatprep.subr.bf16.mxu0 %v290
    %416 = vmatpush1.bf16.msra.mxu0 %v289
    %417 = vmatprep.subr.bf16.mxu0 %v286
    %418 = vmatpush1.bf16.msra.mxu0 %v285
    %419 = vmatprep.subr.bf16.mxu0 0
    %420 = vmatpush2.bf16.msra.mxu0 0
    %421 = vmatprep.subr.bf16.mxu0 0
    %422 = vmatpush2.bf16.msra.mxu0 0
    %423 = vmatprep.subr.bf16.mxu0 0
    %424 = vmatpush2.bf16.msra.mxu0 0
    %425 = vmatprep.subr.bf16.mxu0 0
    %426 = vmatpush2.bf16.msra.mxu0 0
    %427 = vmatprep.subr.bf16.mxu0 0
    %428 = vmatpush2.bf16.msra.mxu0 0
    %429 = vmatprep.subr.bf16.mxu0 0
    %430 = vmatpush2.bf16.msra.mxu0 0
    %431 = vmatprep.subr.bf16.mxu0 0
    %432 = vmatpush2.bf16.msra.mxu0 0
    %433 = vmatprep.subr.bf16.mxu0 %v395
    %434 = vmatpush2.bf16.msra.mxu0 %v392
    %435 = vmatprep.mubr.bf16.mxu0 %v355
    %436 = vmatmul.mubr.bf16.gmra.mxu0 %v95
    %v437 = vpop.f32.mrf.mxu0
    %v438 = vadd.f32 %v160, %v437
    %v439 = vpop.f32.mrf.mxu0
    %v440 = vadd.f32 %v164, %v439
    %v441 = vpop.f32.mrf.mxu0
    %v442 = vadd.f32 %v160, %v441
    %v443 = vpop.f32.mrf.mxu0
    %v444 = vadd.f32 %v164, %v443
    %445 = vmatprep.mubr.bf16.mxu0 %v358
    %446 = vmatmul.mubr.bf16.gmra.mxu0 %v97
    %v447 = vpop.f32.mrf.mxu0
    %v448 = vadd.f32 %v160, %v447
    %v449 = vpop.f32.mrf.mxu0
    %v450 = vadd.f32 %v164, %v449
    %v451 = vpop.f32.mrf.mxu0
    %v452 = vadd.f32 %v160, %v451
    %v453 = vpop.f32.mrf.mxu0
    %v454 = vadd.f32 %v164, %v453
    %455 = vmatprep.mubr.bf16.mxu0 %v361
    %456 = vmatmul.mubr.bf16.gmra.mxu0 %v99
    %v457 = vpop.f32.mrf.mxu0
    %v458 = vadd.f32 %v160, %v457
    %v459 = vpop.f32.mrf.mxu0
    %v460 = vadd.f32 %v164, %v459
    %v461 = vpop.f32.mrf.mxu0
    %v462 = vadd.f32 %v160, %v461
    %v463 = vpop.f32.mrf.mxu0
    %v464 = vadd.f32 %v164, %v463
    %465 = vmatprep.mubr.bf16.mxu0 %v364
    %466 = vmatmul.mubr.bf16.gmra.mxu0 %v101
    %v467 = vpop.f32.mrf.mxu0
    %v468 = vadd.f32 %v160, %v467
    %v469 = vpop.f32.mrf.mxu0
    %v470 = vadd.f32 %v164, %v469
    %v471 = vpop.f32.mrf.mxu0
    %v472 = vadd.f32 %v160, %v471
    %v473 = vpop.f32.mrf.mxu0
    %v474 = vadd.f32 %v164, %v473
    %475 = vmatprep.mubr.bf16.mxu0 %v367
    %476 = vmatmul.mubr.bf16.gmra.mxu0 %v103
    %v477 = vpop.f32.mrf.mxu0
    %v478 = vadd.f32 %v160, %v477
    %v479 = vpop.f32.mrf.mxu0
    %v480 = vadd.f32 %v164, %v479
    %v481 = vpop.f32.mrf.mxu0
    %v482 = vadd.f32 %v160, %v481
    %v483 = vpop.f32.mrf.mxu0
    %v484 = vadd.f32 %v164, %v483
    %485 = vmatprep.mubr.bf16.mxu0 %v370
    %486 = vmatmul.mubr.bf16.gmra.mxu0 %v105
    %v487 = vpop.f32.mrf.mxu0
    %v488 = vadd.f32 %v160, %v487
    %v489 = vpop.f32.mrf.mxu0
    %v490 = vadd.f32 %v164, %v489
    %v491 = vpop.f32.mrf.mxu0
    %v492 = vadd.f32 %v160, %v491
    %v493 = vpop.f32.mrf.mxu0
    %v494 = vadd.f32 %v164, %v493
    %495 = vmatprep.mubr.bf16.mxu0 %v373
    %496 = vmatmul.mubr.bf16.gmra.mxu0 %v107
    %v497 = vpop.f32.mrf.mxu0
    %v498 = vadd.f32 %v160, %v497
    %v499 = vpop.f32.mrf.mxu0
    %v500 = vadd.f32 %v164, %v499
    %v501 = vpop.f32.mrf.mxu0
    %v502 = vadd.f32 %v160, %v501
    %v503 = vpop.f32.mrf.mxu0
    %v504 = vadd.f32 %v164, %v503
    %505 = vmatprep.mubr.bf16.mxu0 %v376
    %506 = vmatmul.mubr.bf16.gmra.mxu0 %v109
    %v507 = vpop.f32.mrf.mxu0
    %v508 = vadd.f32 %v160, %v507
    %v509 = vpop.f32.mrf.mxu0
    %v510 = vadd.f32 %v164, %v509
    %v511 = vpop.f32.mrf.mxu0
    %v512 = vadd.f32 %v160, %v511
    %v513 = vpop.f32.mrf.mxu0
    %v514 = vadd.f32 %v164, %v513
    %515 = vmatprep.mubr.bf16.mxu0 %v379
    %516 = vmatmul.mubr.bf16.gmra.mxu0 %v111
    %v517 = vpop.f32.mrf.mxu0
    %v518 = vadd.f32 %v160, %v517
    %v519 = vpop.f32.mrf.mxu0
    %v520 = vadd.f32 %v164, %v519
    %v521 = vpop.f32.mrf.mxu0
    %v522 = vadd.f32 %v160, %v521
    %v523 = vpop.f32.mrf.mxu0
    %v524 = vadd.f32 %v164, %v523
    %525 = vmatprep.mubr.bf16.mxu0 %v382
    %526 = vmatmul.mubr.bf16.gmra.mxu0 %v113
    %v527 = vpop.f32.mrf.mxu0
    %v528 = vadd.f32 %v160, %v527
    %v529 = vpop.f32.mrf.mxu0
    %v530 = vadd.f32 %v164, %v529
    %v531 = vpop.f32.mrf.mxu0
    %v532 = vadd.f32 %v160, %v531
    %v533 = vpop.f32.mrf.mxu0
    %v534 = vadd.f32 %v164, %v533
    %535 = vmatprep.mubr.bf16.mxu0 %v385
    %536 = vmatmul.mubr.bf16.gmra.mxu0 %v115
    %v537 = vpop.f32.mrf.mxu0
    %v538 = vadd.f32 %v160, %v537
    %v539 = vpop.f32.mrf.mxu0
    %v540 = vadd.f32 %v164, %v539
    %v541 = vpop.f32.mrf.mxu0
    %v542 = vadd.f32 %v160, %v541
    %v543 = vpop.f32.mrf.mxu0
    %v544 = vadd.f32 %v164, %v543
    %545 = vmatprep.mubr.bf16.mxu0 %v388
    %546 = vmatmul.mubr.bf16.gmra.mxu0 %v117
    %v547 = vpop.f32.mrf.mxu0
    %v548 = vadd.f32 %v160, %v547
    %v549 = vpop.f32.mrf.mxu0
    %v550 = vadd.f32 %v164, %v549
    %v551 = vpop.f32.mrf.mxu0
    %v552 = vadd.f32 %v160, %v551
    %v553 = vpop.f32.mrf.mxu0
    %v554 = vadd.f32 %v164, %v553
    %555 = vdwg.mxu0
    %556 = vmatprep.subr.bf16.mxu0 %v316
    %557 = vmatpush1.bf16.msra.mxu0 %v315
    %558 = vmatprep.subr.bf16.mxu0 %v312
    %559 = vmatpush1.bf16.msra.mxu0 %v311
    %560 = vmatprep.subr.bf16.mxu0 %v308
    %561 = vmatpush1.bf16.msra.mxu0 %v307
    %562 = vmatprep.subr.bf16.mxu0 %v304
    %563 = vmatpush1.bf16.msra.mxu0 %v303
    %564 = vmatprep.subr.bf16.mxu0 %v300
    %565 = vmatpush1.bf16.msra.mxu0 %v299
    %566 = vmatprep.subr.bf16.mxu0 %v296
    %567 = vmatpush1.bf16.msra.mxu0 %v295
    %568 = vmatprep.subr.bf16.mxu0 %v292
    %569 = vmatpush1.bf16.msra.mxu0 %v291
    %570 = vmatprep.subr.bf16.mxu0 %v288
    %571 = vmatpush1.bf16.msra.mxu0 %v287
    %572 = vmatprep.subr.bf16.mxu0 0
    %573 = vmatpush2.bf16.msra.mxu0 0
    %574 = vmatprep.subr.bf16.mxu0 0
    %575 = vmatpush2.bf16.msra.mxu0 0
    %576 = vmatprep.subr.bf16.mxu0 0
    %577 = vmatpush2.bf16.msra.mxu0 0
    %578 = vmatprep.subr.bf16.mxu0 0
    %579 = vmatpush2.bf16.msra.mxu0 0
    %580 = vmatprep.subr.bf16.mxu0 0
    %581 = vmatpush2.bf16.msra.mxu0 0
    %582 = vmatprep.subr.bf16.mxu0 0
    %583 = vmatpush2.bf16.msra.mxu0 0
    %584 = vmatprep.subr.bf16.mxu0 0
    %585 = vmatpush2.bf16.msra.mxu0 0
    %586 = vmatprep.subr.bf16.mxu0 %v401
    %587 = vmatpush2.bf16.msra.mxu0 %v398
    %588 = vmatprep.mubr.bf16.mxu0 %v355
    %589 = vmatmul.mubr.bf16.gmra.mxu0 %v95
    %v590 = vpop.f32.mrf.mxu0
    %v591 = vadd.f32 %v168, %v590
    %v592 = vpop.f32.mrf.mxu0
    %v593 = vadd.f32 %v172, %v592
    %v594 = vpop.f32.mrf.mxu0
    %v595 = vadd.f32 %v168, %v594
    %v596 = vpop.f32.mrf.mxu0
    %v597 = vadd.f32 %v172, %v596
    %598 = vmatprep.mubr.bf16.mxu0 %v358
    %599 = vmatmul.mubr.bf16.gmra.mxu0 %v97
    %v600 = vpop.f32.mrf.mxu0
    %v601 = vadd.f32 %v168, %v600
    %v602 = vpop.f32.mrf.mxu0
    %v603 = vadd.f32 %v172, %v602
    %v604 = vpop.f32.mrf.mxu0
    %v605 = vadd.f32 %v168, %v604
    %v606 = vpop.f32.mrf.mxu0
    %v607 = vadd.f32 %v172, %v606
    %608 = vmatprep.mubr.bf16.mxu0 %v361
    %609 = vmatmul.mubr.bf16.gmra.mxu0 %v99
    %v610 = vpop.f32.mrf.mxu0
    %v611 = vadd.f32 %v168, %v610
    %v612 = vpop.f32.mrf.mxu0
    %v613 = vadd.f32 %v172, %v612
    %v614 = vpop.f32.mrf.mxu0
    %v615 = vadd.f32 %v168, %v614
    %v616 = vpop.f32.mrf.mxu0
    %v617 = vadd.f32 %v172, %v616
    %618 = vmatprep.mubr.bf16.mxu0 %v364
    %619 = vmatmul.mubr.bf16.gmra.mxu0 %v101
    %v620 = vpop.f32.mrf.mxu0
    %v621 = vadd.f32 %v168, %v620
    %v622 = vpop.f32.mrf.mxu0
    %v623 = vadd.f32 %v172, %v622
    %v624 = vpop.f32.mrf.mxu0
    %v625 = vadd.f32 %v168, %v624
    %v626 = vpop.f32.mrf.mxu0
    %v627 = vadd.f32 %v172, %v626
    %628 = vmatprep.mubr.bf16.mxu0 %v367
    %629 = vmatmul.mubr.bf16.gmra.mxu0 %v103
    %v630 = vpop.f32.mrf.mxu0
    %v631 = vadd.f32 %v168, %v630
    %v632 = vpop.f32.mrf.mxu0
    %v633 = vadd.f32 %v172, %v632
    %v634 = vpop.f32.mrf.mxu0
    %v635 = vadd.f32 %v168, %v634
    %v636 = vpop.f32.mrf.mxu0
    %v637 = vadd.f32 %v172, %v636
    %638 = vmatprep.mubr.bf16.mxu0 %v370
    %639 = vmatmul.mubr.bf16.gmra.mxu0 %v105
    %v640 = vpop.f32.mrf.mxu0
    %v641 = vadd.f32 %v168, %v640
    %v642 = vpop.f32.mrf.mxu0
    %v643 = vadd.f32 %v172, %v642
    %v644 = vpop.f32.mrf.mxu0
    %v645 = vadd.f32 %v168, %v644
    %v646 = vpop.f32.mrf.mxu0
    %v647 = vadd.f32 %v172, %v646
    %648 = vmatprep.mubr.bf16.mxu0 %v373
    %649 = vmatmul.mubr.bf16.gmra.mxu0 %v107
    %v650 = vpop.f32.mrf.mxu0
    %v651 = vadd.f32 %v168, %v650
    %v652 = vpop.f32.mrf.mxu0
    %v653 = vadd.f32 %v172, %v652
    %v654 = vpop.f32.mrf.mxu0
    %v655 = vadd.f32 %v168, %v654
    %v656 = vpop.f32.mrf.mxu0
    %v657 = vadd.f32 %v172, %v656
    %658 = vmatprep.mubr.bf16.mxu0 %v376
    %659 = vmatmul.mubr.bf16.gmra.mxu0 %v109
    %v660 = vpop.f32.mrf.mxu0
    %v661 = vadd.f32 %v168, %v660
    %v662 = vpop.f32.mrf.mxu0
    %v663 = vadd.f32 %v172, %v662
    %v664 = vpop.f32.mrf.mxu0
    %v665 = vadd.f32 %v168, %v664
    %v666 = vpop.f32.mrf.mxu0
    %v667 = vadd.f32 %v172, %v666
    %668 = vmatprep.mubr.bf16.mxu0 %v379
    %669 = vmatmul.mubr.bf16.gmra.mxu0 %v111
    %v670 = vpop.f32.mrf.mxu0
    %v671 = vadd.f32 %v168, %v670
    %v672 = vpop.f32.mrf.mxu0
    %v673 = vadd.f32 %v172, %v672
    %v674 = vpop.f32.mrf.mxu0
    %v675 = vadd.f32 %v168, %v674
    %v676 = vpop.f32.mrf.mxu0
    %v677 = vadd.f32 %v172, %v676
    %678 = vmatprep.mubr.bf16.mxu0 %v382
    %679 = vmatmul.mubr.bf16.gmra.mxu0 %v113
    %v680 = vpop.f32.mrf.mxu0
    %v681 = vadd.f32 %v168, %v680
    %v682 = vpop.f32.mrf.mxu0
    %v683 = vadd.f32 %v172, %v682
    %v684 = vpop.f32.mrf.mxu0
    %v685 = vadd.f32 %v168, %v684
    %v686 = vpop.f32.mrf.mxu0
    %v687 = vadd.f32 %v172, %v686
    %688 = vmatprep.mubr.bf16.mxu0 %v385
    %689 = vmatmul.mubr.bf16.gmra.mxu0 %v115
    %v690 = vpop.f32.mrf.mxu0
    %v691 = vadd.f32 %v168, %v690
    %v692 = vpop.f32.mrf.mxu0
    %v693 = vadd.f32 %v172, %v692
    %v694 = vpop.f32.mrf.mxu0
    %v695 = vadd.f32 %v168, %v694
    %v696 = vpop.f32.mrf.mxu0
    %v697 = vadd.f32 %v172, %v696
    %698 = vmatprep.mubr.bf16.mxu0 %v388
    %699 = vmatmul.mubr.bf16.gmra.mxu0 %v117
    %v700 = vpop.f32.mrf.mxu0
    %v701 = vadd.f32 %v168, %v700
    %v702 = vpop.f32.mrf.mxu0
    %v703 = vadd.f32 %v172, %v702
    %v704 = vpop.f32.mrf.mxu0
    %v705 = vadd.f32 %v168, %v704
    %v706 = vpop.f32.mrf.mxu0
    %v707 = vadd.f32 %v172, %v706
    %708 = vdwg.mxu0
    %v709 = vmax.f32 %v438, %v591
    %v710 = vmax.f32 %v440, %v593
    %v711 = vmax.f32 %v442, %v595
    %v712 = vmax.f32 %v444, %v597
    %v713 = vmax.f32 %v448, %v601
    %v714 = vmax.f32 %v450, %v603
    %v715 = vmax.f32 %v452, %v605
    %v716 = vmax.f32 %v454, %v607
    %v717 = vmax.f32 %v458, %v611
    %v718 = vmax.f32 %v460, %v613
    %v719 = vmax.f32 %v462, %v615
    %v720 = vmax.f32 %v464, %v617
    %v721 = vmax.f32 %v468, %v621
    %v722 = vmax.f32 %v470, %v623
    %v723 = vmax.f32 %v472, %v625
    %v724 = vmax.f32 %v474, %v627
    %v725 = vmax.f32 %v478, %v631
    %v726 = vmax.f32 %v480, %v633
    %v727 = vmax.f32 %v482, %v635
    %v728 = vmax.f32 %v484, %v637
    %v729 = vmax.f32 %v488, %v641
    %v730 = vmax.f32 %v490, %v643
    %v731 = vmax.f32 %v492, %v645
    %v732 = vmax.f32 %v494, %v647
    %v733 = vmax.f32 %v498, %v651
    %v734 = vmax.f32 %v500, %v653
    %v735 = vmax.f32 %v502, %v655
    %v736 = vmax.f32 %v504, %v657
    %v737 = vmax.f32 %v508, %v661
    %v738 = vmax.f32 %v510, %v663
    %v739 = vmax.f32 %v512, %v665
    %v740 = vmax.f32 %v514, %v667
    %v741 = vmax.f32 %v518, %v671
    %v742 = vmax.f32 %v520, %v673
    %v743 = vmax.f32 %v522, %v675
    %v744 = vmax.f32 %v524, %v677
    %v745 = vmax.f32 %v528, %v681
    %v746 = vmax.f32 %v530, %v683
    %v747 = vmax.f32 %v532, %v685
    %v748 = vmax.f32 %v534, %v687
    %v749 = vmax.f32 %v538, %v691
    %v750 = vmax.f32 %v540, %v693
    %v751 = vmax.f32 %v542, %v695
    %v752 = vmax.f32 %v544, %v697
    %v753 = vmax.f32 %v548, %v701
    %v754 = vmax.f32 %v550, %v703
    %v755 = vmax.f32 %v552, %v705
    %v756 = vmax.f32 %v554, %v707
    %v757 = vmax.f32 %v709, 0.0
    %v758 = vmax.f32 %v710, 0.0
    %v759 = vmax.f32 %v711, 0.0
    %v760 = vmax.f32 %v712, 0.0
    %v761 = vmax.f32 %v713, 0.0
    %v762 = vmax.f32 %v714, 0.0
    %v763 = vmax.f32 %v715, 0.0
    %v764 = vmax.f32 %v716, 0.0
    %v765 = vmax.f32 %v717, 0.0
    %v766 = vmax.f32 %v718, 0.0
    %v767 = vmax.f32 %v719, 0.0
    %v768 = vmax.f32 %v720, 0.0
    %v769 = vmax.f32 %v721, 0.0
    %v770 = vmax.f32 %v722, 0.0
    %v771 = vmax.f32 %v723, 0.0
    %v772 = vmax.f32 %v724, 0.0
    %v773 = vmax.f32 %v725, 0.0
    %v774 = vmax.f32 %v726, 0.0
    %v775 = vmax.f32 %v727, 0.0
    %v776 = vmax.f32 %v728, 0.0
    %v777 = vmax.f32 %v729, 0.0
    %v778 = vmax.f32 %v730, 0.0
    %v779 = vmax.f32 %v731, 0.0
    %v780 = vmax.f32 %v732, 0.0
    %v781 = vmax.f32 %v733, 0.0
    %v782 = vmax.f32 %v734, 0.0
    %v783 = vmax.f32 %v735, 0.0
    %v784 = vmax.f32 %v736, 0.0
    %v785 = vmax.f32 %v737, 0.0
    %v786 = vmax.f32 %v738, 0.0
    %v787 = vmax.f32 %v739, 0.0
    %v788 = vmax.f32 %v740, 0.0
    %v789 = vmax.f32 %v741, 0.0
    %v790 = vmax.f32 %v742, 0.0
    %v791 = vmax.f32 %v743, 0.0
    %v792 = vmax.f32 %v744, 0.0
    %v793 = vmax.f32 %v745, 0.0
    %v794 = vmax.f32 %v746, 0.0
    %v795 = vmax.f32 %v747, 0.0
    %v796 = vmax.f32 %v748, 0.0
    %v797 = vmax.f32 %v749, 0.0
    %v798 = vmax.f32 %v750, 0.0
    %v799 = vmax.f32 %v751, 0.0
    %v800 = vmax.f32 %v752, 0.0
    %v801 = vmax.f32 %v753, 0.0
    %v802 = vmax.f32 %v754, 0.0
    %v803 = vmax.f32 %v755, 0.0
    %v804 = vmax.f32 %v756, 0.0
    %v805 = vmax.f32 %v757, %v759
    %v806 = vmax.f32 %v758, %v760
    %v807 = vmax.f32 %v761, %v763
    %v808 = vmax.f32 %v762, %v764
    %v809 = vmax.f32 %v765, %v767
    %v810 = vmax.f32 %v766, %v768
    %v811 = vmax.f32 %v769, %v771
    %v812 = vmax.f32 %v770, %v772
    %v813 = vmax.f32 %v773, %v775
    %v814 = vmax.f32 %v774, %v776
    %v815 = vmax.f32 %v777, %v779
    %v816 = vmax.f32 %v778, %v780
    %v817 = vmax.f32 %v781, %v783
    %v818 = vmax.f32 %v782, %v784
    %v819 = vmax.f32 %v785, %v787
    %v820 = vmax.f32 %v786, %v788
    %v821 = vmax.f32 %v789, %v791
    %v822 = vmax.f32 %v790, %v792
    %v823 = vmax.f32 %v793, %v795
    %v824 = vmax.f32 %v794, %v796
    %v825 = vmax.f32 %v797, %v799
    %v826 = vmax.f32 %v798, %v800
    %v827 = vmax.f32 %v801, %v803
    %v828 = vmax.f32 %v802, %v804
    %v829 = vpack.c.bf16 %v805, %v805
    %v830 = vpack.c.bf16 %v806, %v806
    %v831 = vpack.c.bf16 %v807, %v807
    %v832 = vpack.c.bf16 %v808, %v808
    %v833 = vpack.c.bf16 %v809, %v809
    %v834 = vpack.c.bf16 %v810, %v810
    %v835 = vpack.c.bf16 %v811, %v811
    %v836 = vpack.c.bf16 %v812, %v812
    %v837 = vpack.c.bf16 %v813, %v813
    %v838 = vpack.c.bf16 %v814, %v814
    %v839 = vpack.c.bf16 %v815, %v815
    %v840 = vpack.c.bf16 %v816, %v816
    %v841 = vpack.c.bf16 %v817, %v817
    %v842 = vpack.c.bf16 %v818, %v818
    %v843 = vpack.c.bf16 %v819, %v819
    %v844 = vpack.c.bf16 %v820, %v820
    %v845 = vpack.c.bf16 %v821, %v821
    %v846 = vpack.c.bf16 %v822, %v822
    %v847 = vpack.c.bf16 %v823, %v823
    %v848 = vpack.c.bf16 %v824, %v824
    %v849 = vpack.c.bf16 %v825, %v825
    %v850 = vpack.c.bf16 %v826, %v826
    %v851 = vpack.c.bf16 %v827, %v827
    %v852 = vpack.c.bf16 %v828, %v828
    %v853 = vld [vmem:[%s4] sm:$0xf]
    %v870 = vunpack.c.l.b16 %v829
    %v871 = vunpack.c.l.b16 %v830
    %v872 = vunpack.c.l.b16 %v831
    %v873 = vunpack.c.l.b16 %v832
    %v874 = vunpack.c.l.b16 %v833
    %v875 = vunpack.c.l.b16 %v834
    %v876 = vunpack.c.l.b16 %v835
    %v877 = vunpack.c.l.b16 %v836
    %v878 = vunpack.c.l.b16 %v837
    %v879 = vunpack.c.l.b16 %v838
    %v880 = vunpack.c.l.b16 %v839
    %v881 = vunpack.c.l.b16 %v840
    %v882 = vunpack.c.l.b16 %v841
    %v883 = vunpack.c.l.b16 %v842
    %v884 = vunpack.c.l.b16 %v843
    %v885 = vunpack.c.l.b16 %v844
    %v886 = vld [vmem:[%s3] sm:$0xff]
    %v887 = vld [vmem:[%s3 + $0x8] sm:$0xff]
    %v888 = vld [vmem:[%s3 + $0x10] sm:$0xff]
    %v889 = vld [vmem:[%s3 + $0x18] sm:$0xff]
    %v890 = vld [vmem:[%s3 + $0x20] sm:$0xff]
    %v891 = vld [vmem:[%s3 + $0x28] sm:$0xff]
    %v892 = vld [vmem:[%s3 + $0x30] sm:$0xff]
    %v893 = vld [vmem:[%s3 + $0x38] sm:$0xff]
    %v894 = vld [vmem:[%s3 + $0x40] sm:$0xff]
    %v895 = vld [vmem:[%s3 + $0x48] sm:$0xff]
    %v896 = vld [vmem:[%s3 + $0x50] sm:$0xff]
    %v897 = vld [vmem:[%s3 + $0x58] sm:$0xff]
    %v898 = vld [vmem:[%s3 + $0x60] sm:$0xff]
    %v899 = vld [vmem:[%s3 + $0x68] sm:$0xff]
    %v900 = vld [vmem:[%s3 + $0x70] sm:$0xff]
    %v901 = vld [vmem:[%s3 + $0x78] sm:$0xff]
    %v902 = vld [vmem:[%s3 + $0x80] sm:$0xff]
    %v903 = vld [vmem:[%s3 + $0x88] sm:$0xff]
    %v904 = vld [vmem:[%s3 + $0x90] sm:$0xff]
    %v905 = vld [vmem:[%s3 + $0x98] sm:$0xff]
    %v906 = vld [vmem:[%s3 + $0xa0] sm:$0xff]
    %v907 = vld [vmem:[%s3 + $0xa8] sm:$0xff]
    %v908 = vld [vmem:[%s3 + $0xb0] sm:$0xff]
    %v909 = vld [vmem:[%s3 + $0xb8] sm:$0xff]
    %v910 = vld [vmem:[%s3 + $0xc0] sm:$0xff]
    %v911 = vld [vmem:[%s3 + $0xc8] sm:$0xff]
    %v912 = vld [vmem:[%s3 + $0xd0] sm:$0xff]
    %v913 = vld [vmem:[%s3 + $0xd8] sm:$0xff]
    %v914 = vld [vmem:[%s3 + $0xe0] sm:$0xff]
    %v915 = vld [vmem:[%s3 + $0xe8] sm:$0xff]
    %v916 = vld [vmem:[%s3 + $0xf0] sm:$0xff]
    %v917 = vld [vmem:[%s3 + $0xf8] sm:$0xff]
    %v918 = vld [vmem:[%s3 + $0x100] sm:$0xff]
    %v919 = vld [vmem:[%s3 + $0x108] sm:$0xff]
    %v920 = vld [vmem:[%s3 + $0x110] sm:$0xff]
    %v921 = vld [vmem:[%s3 + $0x118] sm:$0xff]
    %v922 = vld [vmem:[%s3 + $0x120] sm:$0xff]
    %v923 = vld [vmem:[%s3 + $0x128] sm:$0xff]
    %v924 = vld [vmem:[%s3 + $0x130] sm:$0xff]
    %v925 = vld [vmem:[%s3 + $0x138] sm:$0xff]
    %v926 = vld [vmem:[%s3 + $0x140] sm:$0xff]
    %v927 = vld [vmem:[%s3 + $0x148] sm:$0xff]
    %v928 = vld [vmem:[%s3 + $0x150] sm:$0xff]
    %v929 = vld [vmem:[%s3 + $0x158] sm:$0xff]
    %v930 = vld [vmem:[%s3 + $0x160] sm:$0xff]
    %v931 = vld [vmem:[%s3 + $0x168] sm:$0xff]
    %v932 = vld [vmem:[%s3 + $0x170] sm:$0xff]
    %v933 = vld [vmem:[%s3 + $0x178] sm:$0xff]
    %v934 = vld [vmem:[%s3 + $0x180] sm:$0xff]
    %v935 = vld [vmem:[%s3 + $0x188] sm:$0xff]
    %v936 = vld [vmem:[%s3 + $0x190] sm:$0xff]
    %v937 = vld [vmem:[%s3 + $0x198] sm:$0xff]
    %v938 = vld [vmem:[%s3 + $0x1a0] sm:$0xff]
    %v939 = vld [vmem:[%s3 + $0x1a8] sm:$0xff]
    %v940 = vld [vmem:[%s3 + $0x1b0] sm:$0xff]
    %v941 = vld [vmem:[%s3 + $0x1b8] sm:$0xff]
    %v942 = vld [vmem:[%s3 + $0x1c0] sm:$0xff]
    %v943 = vld [vmem:[%s3 + $0x1c8] sm:$0xff]
    %v944 = vld [vmem:[%s3 + $0x1d0] sm:$0xff]
    %v945 = vld [vmem:[%s3 + $0x1d8] sm:$0xff]
    %v946 = vld [vmem:[%s3 + $0x1e0] sm:$0xff]
    %v947 = vld [vmem:[%s3 + $0x1e8] sm:$0xff]
    %v948 = vld [vmem:[%s3 + $0x1f0] sm:$0xff]
    %v949 = vld [vmem:[%s3 + $0x1f8] sm:$0xff]
    %v950 = vpack.c.b16 %v872, %v870
    %v951 = vpack.c.b16 %v873, %v871
    %v952 = vpack.c.b16 %v876, %v874
    %v953 = vpack.c.b16 %v877, %v875
    %v954 = vpack.c.b16 %v880, %v878
    %v955 = vpack.c.b16 %v881, %v879
    %v956 = vpack.c.b16 %v884, %v882
    %v957 = vpack.c.b16 %v885, %v883
    %v1030 = vunpack.c.l.b16 %v886
    %v1031 = vunpack.c.h.b16 %v886
    %v1032 = vunpack.c.l.b16 %v887
    %v1033 = vunpack.c.h.b16 %v887
    %v1034 = vunpack.c.l.b16 %v888
    %v1035 = vunpack.c.h.b16 %v888
    %v1036 = vunpack.c.l.b16 %v889
    %v1037 = vunpack.c.h.b16 %v889
    %v1038 = vunpack.c.l.b16 %v890
    %v1039 = vunpack.c.h.b16 %v890
    %v1040 = vunpack.c.l.b16 %v891
    %v1041 = vunpack.c.h.b16 %v891
    %v1042 = vunpack.c.l.b16 %v892
    %v1043 = vunpack.c.h.b16 %v892
    %v1044 = vunpack.c.l.b16 %v893
    %v1045 = vunpack.c.h.b16 %v893
    %v1046 = vunpack.c.l.b16 %v894
    %v1047 = vunpack.c.h.b16 %v894
    %v1048 = vunpack.c.l.b16 %v895
    %v1049 = vunpack.c.h.b16 %v895
    %v1050 = vunpack.c.l.b16 %v896
    %v1051 = vunpack.c.h.b16 %v896
    %v1052 = vunpack.c.l.b16 %v897
    %v1053 = vunpack.c.h.b16 %v897
    %v1054 = vunpack.c.l.b16 %v898
    %v1055 = vunpack.c.h.b16 %v898
    %v1056 = vunpack.c.l.b16 %v899
    %v1057 = vunpack.c.h.b16 %v899
    %v1058 = vunpack.c.l.b16 %v900
    %v1059 = vunpack.c.h.b16 %v900
    %v1060 = vunpack.c.l.b16 %v901
    %v1061 = vunpack.c.h.b16 %v901
    %v1062 = vunpack.c.l.b16 %v902
    %v1063 = vunpack.c.h.b16 %v902
    %v1064 = vunpack.c.l.b16 %v903
    %v1065 = vunpack.c.h.b16 %v903
    %v1066 = vunpack.c.l.b16 %v904
    %v1067 = vunpack.c.h.b16 %v904
    %v1068 = vunpack.c.l.b16 %v905
    %v1069 = vunpack.c.h.b16 %v905
    %v1070 = vunpack.c.l.b16 %v906
    %v1071 = vunpack.c.h.b16 %v906
    %v1072 = vunpack.c.l.b16 %v907
    %v1073 = vunpack.c.h.b16 %v907
    %v1074 = vunpack.c.l.b16 %v908
    %v1075 = vunpack.c.h.b16 %v908
    %v1076 = vunpack.c.l.b16 %v909
    %v1077 = vunpack.c.h.b16 %v909
    %v1078 = vunpack.c.l.b16 %v910
    %v1079 = vunpack.c.h.b16 %v910
    %v1080 = vunpack.c.l.b16 %v911
    %v1081 = vunpack.c.h.b16 %v911
    %v1082 = vunpack.c.l.b16 %v912
    %v1083 = vunpack.c.h.b16 %v912
    %v1084 = vunpack.c.l.b16 %v913
    %v1085 = vunpack.c.h.b16 %v913
    %v1086 = vunpack.c.l.b16 %v914
    %v1087 = vunpack.c.h.b16 %v914
    %v1088 = vunpack.c.l.b16 %v915
    %v1089 = vunpack.c.h.b16 %v915
    %v1090 = vunpack.c.l.b16 %v916
    %v1091 = vunpack.c.h.b16 %v916
    %v1092 = vunpack.c.l.b16 %v917
    %v1093 = vunpack.c.h.b16 %v917
    %v1094 = vunpack.c.l.b16 %v918
    %v1095 = vunpack.c.h.b16 %v918
    %v1096 = vunpack.c.l.b16 %v919
    %v1097 = vunpack.c.h.b16 %v919
    %v1098 = vunpack.c.l.b16 %v920
    %v1099 = vunpack.c.h.b16 %v920
    %v1100 = vunpack.c.l.b16 %v921
    %v1101 = vunpack.c.h.b16 %v921
    %v1102 = vunpack.c.l.b16 %v922
    %v1103 = vunpack.c.h.b16 %v922
    %v1104 = vunpack.c.l.b16 %v923
    %v1105 = vunpack.c.h.b16 %v923
    %v1106 = vunpack.c.l.b16 %v924
    %v1107 = vunpack.c.h.b16 %v924
    %v1108 = vunpack.c.l.b16 %v925
    %v1109 = vunpack.c.h.b16 %v925
    %v1110 = vunpack.c.l.b16 %v926
    %v1111 = vunpack.c.h.b16 %v926
    %v1112 = vunpack.c.l.b16 %v927
    %v1113 = vunpack.c.h.b16 %v927
    %v1114 = vunpack.c.l.b16 %v928
    %v1115 = vunpack.c.h.b16 %v928
    %v1116 = vunpack.c.l.b16 %v929
    %v1117 = vunpack.c.h.b16 %v929
    %v1118 = vunpack.c.l.b16 %v930
    %v1119 = vunpack.c.h.b16 %v930
    %v1120 = vunpack.c.l.b16 %v931
    %v1121 = vunpack.c.h.b16 %v931
    %v1122 = vunpack.c.l.b16 %v932
    %v1123 = vunpack.c.h.b16 %v932
    %v1124 = vunpack.c.l.b16 %v933
    %v1125 = vunpack.c.h.b16 %v933
    %v1126 = vunpack.c.l.b16 %v934
    %v1127 = vunpack.c.h.b16 %v934
    %v1128 = vunpack.c.l.b16 %v935
    %v1129 = vunpack.c.h.b16 %v935
    %v1130 = vunpack.c.l.b16 %v936
    %v1131 = vunpack.c.h.b16 %v936
    %v1132 = vunpack.c.l.b16 %v937
    %v1133 = vunpack.c.h.b16 %v937
    %v1134 = vunpack.c.l.b16 %v938
    %v1135 = vunpack.c.h.b16 %v938
    %v1136 = vunpack.c.l.b16 %v939
    %v1137 = vunpack.c.h.b16 %v939
    %v1138 = vunpack.c.l.b16 %v940
    %v1139 = vunpack.c.h.b16 %v940
    %v1140 = vunpack.c.l.b16 %v941
    %v1141 = vunpack.c.h.b16 %v941
    %v1142 = vunpack.c.l.b16 %v942
    %v1143 = vunpack.c.h.b16 %v942
    %v1144 = vunpack.c.l.b16 %v943
    %v1145 = vunpack.c.h.b16 %v943
    %v1146 = vunpack.c.l.b16 %v944
    %v1147 = vunpack.c.h.b16 %v944
    %v1148 = vunpack.c.l.b16 %v945
    %v1149 = vunpack.c.h.b16 %v945
    %v1150 = vunpack.c.l.b16 %v946
    %v1151 = vunpack.c.h.b16 %v946
    %v1152 = vunpack.c.l.b16 %v947
    %v1153 = vunpack.c.h.b16 %v947
    %v1154 = vunpack.c.l.b16 %v948
    %v1155 = vunpack.c.h.b16 %v948
    %v1156 = vunpack.c.l.b16 %v949
    %v1157 = vunpack.c.h.b16 %v949
    %v1158 = vpack.c.b16 %v1034, %v1030
    %v1159 = vpack.c.b16 %v1035, %v1031
    %v1160 = vpack.c.b16 %v1036, %v1032
    %v1161 = vpack.c.b16 %v1037, %v1033
    %v1162 = vpack.c.b16 %v1042, %v1038
    %v1163 = vpack.c.b16 %v1043, %v1039
    %v1164 = vpack.c.b16 %v1044, %v1040
    %v1165 = vpack.c.b16 %v1045, %v1041
    %v1166 = vpack.c.b16 %v1050, %v1046
    %v1167 = vpack.c.b16 %v1051, %v1047
    %v1168 = vpack.c.b16 %v1052, %v1048
    %v1169 = vpack.c.b16 %v1053, %v1049
    %v1170 = vpack.c.b16 %v1058, %v1054
    %v1171 = vpack.c.b16 %v1059, %v1055
    %v1172 = vpack.c.b16 %v1060, %v1056
    %v1173 = vpack.c.b16 %v1061, %v1057
    %v1174 = vpack.c.b16 %v1066, %v1062
    %v1175 = vpack.c.b16 %v1067, %v1063
    %v1176 = vpack.c.b16 %v1068, %v1064
    %v1177 = vpack.c.b16 %v1069, %v1065
    %v1178 = vpack.c.b16 %v1074, %v1070
    %v1179 = vpack.c.b16 %v1075, %v1071
    %v1180 = vpack.c.b16 %v1076, %v1072
    %v1181 = vpack.c.b16 %v1077, %v1073
    %v1182 = vpack.c.b16 %v1082, %v1078
    %v1183 = vpack.c.b16 %v1083, %v1079
    %v1184 = vpack.c.b16 %v1084, %v1080
    %v1185 = vpack.c.b16 %v1085, %v1081
    %v1186 = vpack.c.b16 %v1090, %v1086
    %v1187 = vpack.c.b16 %v1091, %v1087
    %v1188 = vpack.c.b16 %v1092, %v1088
    %v1189 = vpack.c.b16 %v1093, %v1089
    %v1190 = vpack.c.b16 %v1098, %v1094
    %v1191 = vpack.c.b16 %v1099, %v1095
    %v1192 = vpack.c.b16 %v1100, %v1096
    %v1193 = vpack.c.b16 %v1101, %v1097
    %v1194 = vpack.c.b16 %v1106, %v1102
    %v1195 = vpack.c.b16 %v1107, %v1103
    %v1196 = vpack.c.b16 %v1108, %v1104
    %v1197 = vpack.c.b16 %v1109, %v1105
    %v1198 = vpack.c.b16 %v1114, %v1110
    %v1199 = vpack.c.b16 %v1115, %v1111
    %v1200 = vpack.c.b16 %v1116, %v1112
    %v1201 = vpack.c.b16 %v1117, %v1113
    %v1202 = vpack.c.b16 %v1122, %v1118
    %v1203 = vpack.c.b16 %v1123, %v1119
    %v1204 = vpack.c.b16 %v1124, %v1120
    %v1205 = vpack.c.b16 %v1125, %v1121
    %v1206 = vpack.c.b16 %v1130, %v1126
    %v1207 = vpack.c.b16 %v1131, %v1127
    %v1208 = vpack.c.b16 %v1132, %v1128
    %v1209 = vpack.c.b16 %v1133, %v1129
    %v1210 = vpack.c.b16 %v1138, %v1134
    %v1211 = vpack.c.b16 %v1139, %v1135
    %v1212 = vpack.c.b16 %v1140, %v1136
    %v1213 = vpack.c.b16 %v1141, %v1137
    %v1214 = vpack.c.b16 %v1146, %v1142
    %v1215 = vpack.c.b16 %v1147, %v1143
    %v1216 = vpack.c.b16 %v1148, %v1144
    %v1217 = vpack.c.b16 %v1149, %v1145
    %v1218 = vpack.c.b16 %v1154, %v1150
    %v1219 = vpack.c.b16 %v1155, %v1151
    %v1220 = vpack.c.b16 %v1156, %v1152
    %v1221 = vpack.c.b16 %v1157, %v1153
    %1286 = vmatprep.subr.bf16.mxu0 %v1187
    %1287 = vmatpush1.bf16.msra.mxu0 %v1186
    %1288 = vmatprep.subr.bf16.mxu0 %v1183
    %1289 = vmatpush1.bf16.msra.mxu0 %v1182
    %1290 = vmatprep.subr.bf16.mxu0 %v1179
    %1291 = vmatpush1.bf16.msra.mxu0 %v1178
    %1292 = vmatprep.subr.bf16.mxu0 %v1175
    %1293 = vmatpush1.bf16.msra.mxu0 %v1174
    %1294 = vmatprep.subr.bf16.mxu0 %v1171
    %1295 = vmatpush1.bf16.msra.mxu0 %v1170
    %1296 = vmatprep.subr.bf16.mxu0 %v1167
    %1297 = vmatpush1.bf16.msra.mxu0 %v1166
    %1298 = vmatprep.subr.bf16.mxu0 %v1163
    %1299 = vmatpush1.bf16.msra.mxu0 %v1162
    %1300 = vmatprep.subr.bf16.mxu0 %v1159
    %1301 = vmatpush1.bf16.msra.mxu0 %v1158
    %1302 = vmatprep.subr.bf16.mxu0 %v1219
    %1303 = vmatpush2.bf16.msra.mxu0 %v1218
    %1304 = vmatprep.subr.bf16.mxu0 %v1215
    %1305 = vmatpush2.bf16.msra.mxu0 %v1214
    %1306 = vmatprep.subr.bf16.mxu0 %v1211
    %1307 = vmatpush2.bf16.msra.mxu0 %v1210
    %1308 = vmatprep.subr.bf16.mxu0 %v1207
    %1309 = vmatpush2.bf16.msra.mxu0 %v1206
    %1310 = vmatprep.subr.bf16.mxu0 %v1203
    %1311 = vmatpush2.bf16.msra.mxu0 %v1202
    %1312 = vmatprep.subr.bf16.mxu0 %v1199
    %1313 = vmatpush2.bf16.msra.mxu0 %v1198
    %1314 = vmatprep.subr.bf16.mxu0 %v1195
    %1315 = vmatpush2.bf16.msra.mxu0 %v1194
    %1316 = vmatprep.subr.bf16.mxu0 %v1191
    %1317 = vmatpush2.bf16.msra.mxu0 %v1190
    %1318 = vmatprep.mubr.bf16.mxu0 %v951
    %1319 = vmatmul.mubr.bf16.gmra.mxu0 %v950
    %v1320 = vpop.f32.mrf.mxu0
    %v1321 = vadd.f32 0.0, %v1320
    %v1322 = vpop.f32.mrf.mxu0
    %v1323 = vadd.f32 0.0, %v1322
    %v1324 = vpop.f32.mrf.mxu0
    %v1325 = vadd.f32 0.0, %v1324
    %v1326 = vpop.f32.mrf.mxu0
    %v1327 = vadd.f32 0.0, %v1326
    %1328 = vmatprep.mubr.bf16.mxu0 %v953
    %1329 = vmatmul.mubr.bf16.gmra.mxu0 %v952
    %v1330 = vpop.f32.mrf.mxu0
    %v1331 = vadd.f32 0.0, %v1330
    %v1332 = vpop.f32.mrf.mxu0
    %v1333 = vadd.f32 0.0, %v1332
    %v1334 = vpop.f32.mrf.mxu0
    %v1335 = vadd.f32 0.0, %v1334
    %v1336 = vpop.f32.mrf.mxu0
    %v1337 = vadd.f32 0.0, %v1336
    %1338 = vmatprep.mubr.bf16.mxu0 %v955
    %1339 = vmatmul.mubr.bf16.gmra.mxu0 %v954
    %v1340 = vpop.f32.mrf.mxu0
    %v1341 = vadd.f32 0.0, %v1340
    %v1342 = vpop.f32.mrf.mxu0
    %v1343 = vadd.f32 0.0, %v1342
    %v1344 = vpop.f32.mrf.mxu0
    %v1345 = vadd.f32 0.0, %v1344
    %v1346 = vpop.f32.mrf.mxu0
    %v1347 = vadd.f32 0.0, %v1346
    %1348 = vmatprep.mubr.bf16.mxu0 %v957
    %1349 = vmatmul.mubr.bf16.gmra.mxu0 %v956
    %v1350 = vpop.f32.mrf.mxu0
    %v1351 = vadd.f32 0.0, %v1350
    %v1352 = vpop.f32.mrf.mxu0
    %v1353 = vadd.f32 0.0, %v1352
    %v1354 = vpop.f32.mrf.mxu0
    %v1355 = vadd.f32 0.0, %v1354
    %v1356 = vpop.f32.mrf.mxu0
    %v1357 = vadd.f32 0.0, %v1356
    %1358 = vdwg.mxu0
    %1359 = vmatprep.subr.bf16.mxu0 %v1189
    %1360 = vmatpush1.bf16.msra.mxu0 %v1188
    %1361 = vmatprep.subr.bf16.mxu0 %v1185
    %1362 = vmatpush1.bf16.msra.mxu0 %v1184
    %1363 = vmatprep.subr.bf16.mxu0 %v1181
    %1364 = vmatpush1.bf16.msra.mxu0 %v1180
    %1365 = vmatprep.subr.bf16.mxu0 %v1177
    %1366 = vmatpush1.bf16.msra.mxu0 %v1176
    %1367 = vmatprep.subr.bf16.mxu0 %v1173
    %1368 = vmatpush1.bf16.msra.mxu0 %v1172
    %1369 = vmatprep.subr.bf16.mxu0 %v1169
    %1370 = vmatpush1.bf16.msra.mxu0 %v1168
    %1371 = vmatprep.subr.bf16.mxu0 %v1165
    %1372 = vmatpush1.bf16.msra.mxu0 %v1164
    %1373 = vmatprep.subr.bf16.mxu0 %v1161
    %1374 = vmatpush1.bf16.msra.mxu0 %v1160
    %1375 = vmatprep.subr.bf16.mxu0 %v1221
    %1376 = vmatpush2.bf16.msra.mxu0 %v1220
    %1377 = vmatprep.subr.bf16.mxu0 %v1217
    %1378 = vmatpush2.bf16.msra.mxu0 %v1216
    %1379 = vmatprep.subr.bf16.mxu0 %v1213
    %1380 = vmatpush2.bf16.msra.mxu0 %v1212
    %1381 = vmatprep.subr.bf16.mxu0 %v1209
    %1382 = vmatpush2.bf16.msra.mxu0 %v1208
    %1383 = vmatprep.subr.bf16.mxu0 %v1205
    %1384 = vmatpush2.bf16.msra.mxu0 %v1204
    %1385 = vmatprep.subr.bf16.mxu0 %v1201
    %1386 = vmatpush2.bf16.msra.mxu0 %v1200
    %1387 = vmatprep.subr.bf16.mxu0 %v1197
    %1388 = vmatpush2.bf16.msra.mxu0 %v1196
    %1389 = vmatprep.subr.bf16.mxu0 %v1193
    %1390 = vmatpush2.bf16.msra.mxu0 %v1192
    %1391 = vmatprep.mubr.bf16.mxu0 %v951
    %1392 = vmatmul.mubr.bf16.gmra.mxu0 %v950
    %v1393 = vpop.f32.mrf.mxu0
    %v1394 = vadd.f32 0.0, %v1393
    %v1395 = vpop.f32.mrf.mxu0
    %v1396 = vadd.f32 0.0, %v1395
    %v1397 = vpop.f32.mrf.mxu0
    %v1398 = vadd.f32 0.0, %v1397
    %v1399 = vpop.f32.mrf.mxu0
    %v1400 = vadd.f32 0.0, %v1399
    %1401 = vmatprep.mubr.bf16.mxu0 %v953
    %1402 = vmatmul.mubr.bf16.gmra.mxu0 %v952
    %v1403 = vpop.f32.mrf.mxu0
    %v1404 = vadd.f32 0.0, %v1403
    %v1405 = vpop.f32.mrf.mxu0
    %v1406 = vadd.f32 0.0, %v1405
    %v1407 = vpop.f32.mrf.mxu0
    %v1408 = vadd.f32 0.0, %v1407
    %v1409 = vpop.f32.mrf.mxu0
    %v1410 = vadd.f32 0.0, %v1409
    %1411 = vmatprep.mubr.bf16.mxu0 %v955
    %1412 = vmatmul.mubr.bf16.gmra.mxu0 %v954
    %v1413 = vpop.f32.mrf.mxu0
    %v1414 = vadd.f32 0.0, %v1413
    %v1415 = vpop.f32.mrf.mxu0
    %v1416 = vadd.f32 0.0, %v1415
    %v1417 = vpop.f32.mrf.mxu0
    %v1418 = vadd.f32 0.0, %v1417
    %v1419 = vpop.f32.mrf.mxu0
    %v1420 = vadd.f32 0.0, %v1419
    %1421 = vmatprep.mubr.bf16.mxu0 %v957
    %1422 = vmatmul.mubr.bf16.gmra.mxu0 %v956
    %v1423 = vpop.f32.mrf.mxu0
    %v1424 = vadd.f32 0.0, %v1423
    %v1425 = vpop.f32.mrf.mxu0
    %v1426 = vadd.f32 0.0, %v1425
    %v1427 = vpop.f32.mrf.mxu0
    %v1428 = vadd.f32 0.0, %v1427
    %v1429 = vpop.f32.mrf.mxu0
    %v1430 = vadd.f32 0.0, %v1429
    %1431 = vdwg.mxu0
    %v1433 = vlaneseq
    %v1434 = vshrl.u32 %v1433, 7
    %v1435 = vsub.s32 0, %v1434
    %v1436 = vrot.slane %v853, %v1435
    %v1437 = vlaneseq
    %v1438 = vshrl.u32 %v1437, 7
    %v1439 = vsub.s32 1, %v1438
    %v1440 = vrot.slane %v853, %v1439
    %v1441 = vlaneseq
    %v1442 = vshrl.u32 %v1441, 7
    %v1443 = vsub.s32 2, %v1442
    %v1444 = vrot.slane %v853, %v1443
    %v1445 = vlaneseq
    %v1446 = vshrl.u32 %v1445, 7
    %v1447 = vsub.s32 3, %v1446
    %v1448 = vrot.slane %v853, %v1447
    %v1453 = vadd.f32 %v1436, %v1321
    %v1454 = vadd.f32 %v1440, %v1323
    %v1455 = vadd.f32 %v1444, %v1394
    %v1456 = vadd.f32 %v1448, %v1396
    %v1457 = vadd.f32 %v1436, %v1325
    %v1458 = vadd.f32 %v1440, %v1327
    %v1459 = vadd.f32 %v1444, %v1398
    %v1460 = vadd.f32 %v1448, %v1400
    %v1461 = vadd.f32 %v1436, %v1331
    %v1462 = vadd.f32 %v1440, %v1333
    %v1463 = vadd.f32 %v1444, %v1404
    %v1464 = vadd.f32 %v1448, %v1406
    %v1465 = vadd.f32 %v1436, %v1335
    %v1466 = vadd.f32 %v1440, %v1337
    %v1467 = vadd.f32 %v1444, %v1408
    %v1468 = vadd.f32 %v1448, %v1410
    %v1469 = vadd.f32 %v1436, %v1341
    %v1470 = vadd.f32 %v1440, %v1343
    %v1471 = vadd.f32 %v1444, %v1414
    %v1472 = vadd.f32 %v1448, %v1416
    %v1473 = vadd.f32 %v1436, %v1345
    %v1474 = vadd.f32 %v1440, %v1347
    %v1475 = vadd.f32 %v1444, %v1418
    %v1476 = vadd.f32 %v1448, %v1420
    %v1477 = vadd.f32 %v1436, %v1351
    %v1478 = vadd.f32 %v1440, %v1353
    %v1479 = vadd.f32 %v1444, %v1424
    %v1480 = vadd.f32 %v1448, %v1426
    %v1481 = vadd.f32 %v1436, %v1355
    %v1482 = vadd.f32 %v1440, %v1357
    %v1483 = vadd.f32 %v1444, %v1428
    %v1484 = vadd.f32 %v1448, %v1430
    %v1487 = vunpack.c.l.b16 %v845
    %v1488 = vunpack.c.l.b16 %v846
    %s1489 = scalar_lea.vmem %s3, 512
    %v1490 = vld [vmem:[%s1489] sm:$0xff]
    %v1491 = vld [vmem:[%s1489 + $0x8] sm:$0xff]
    %v1492 = vld [vmem:[%s1489 + $0x10] sm:$0xff]
    %v1493 = vld [vmem:[%s1489 + $0x18] sm:$0xff]
    %v1494 = vld [vmem:[%s1489 + $0x20] sm:$0xff]
    %v1495 = vld [vmem:[%s1489 + $0x28] sm:$0xff]
    %v1496 = vld [vmem:[%s1489 + $0x30] sm:$0xff]
    %v1497 = vld [vmem:[%s1489 + $0x38] sm:$0xff]
    %v1498 = vld [vmem:[%s1489 + $0x40] sm:$0xff]
    %v1499 = vld [vmem:[%s1489 + $0x48] sm:$0xff]
    %v1500 = vld [vmem:[%s1489 + $0x50] sm:$0xff]
    %v1501 = vld [vmem:[%s1489 + $0x58] sm:$0xff]
    %v1502 = vld [vmem:[%s1489 + $0x60] sm:$0xff]
    %v1503 = vld [vmem:[%s1489 + $0x68] sm:$0xff]
    %v1504 = vld [vmem:[%s1489 + $0x70] sm:$0xff]
    %v1505 = vld [vmem:[%s1489 + $0x78] sm:$0xff]
    %v1506 = vld [vmem:[%s1489 + $0x80] sm:$0xff]
    %v1507 = vld [vmem:[%s1489 + $0x88] sm:$0xff]
    %v1508 = vld [vmem:[%s1489 + $0x90] sm:$0xff]
    %v1509 = vld [vmem:[%s1489 + $0x98] sm:$0xff]
    %v1510 = vld [vmem:[%s1489 + $0xa0] sm:$0xff]
    %v1511 = vld [vmem:[%s1489 + $0xa8] sm:$0xff]
    %v1512 = vld [vmem:[%s1489 + $0xb0] sm:$0xff]
    %v1513 = vld [vmem:[%s1489 + $0xb8] sm:$0xff]
    %v1514 = vld [vmem:[%s1489 + $0xc0] sm:$0xff]
    %v1515 = vld [vmem:[%s1489 + $0xc8] sm:$0xff]
    %v1516 = vld [vmem:[%s1489 + $0xd0] sm:$0xff]
    %v1517 = vld [vmem:[%s1489 + $0xd8] sm:$0xff]
    %v1518 = vld [vmem:[%s1489 + $0xe0] sm:$0xff]
    %v1519 = vld [vmem:[%s1489 + $0xe8] sm:$0xff]
    %v1520 = vld [vmem:[%s1489 + $0xf0] sm:$0xff]
    %v1521 = vld [vmem:[%s1489 + $0xf8] sm:$0xff]
    %v1522 = vld [vmem:[%s1489 + $0x100] sm:$0xff]
    %v1523 = vld [vmem:[%s1489 + $0x108] sm:$0xff]
    %v1524 = vld [vmem:[%s1489 + $0x110] sm:$0xff]
    %v1525 = vld [vmem:[%s1489 + $0x118] sm:$0xff]
    %v1526 = vld [vmem:[%s1489 + $0x120] sm:$0xff]
    %v1527 = vld [vmem:[%s1489 + $0x128] sm:$0xff]
    %v1528 = vld [vmem:[%s1489 + $0x130] sm:$0xff]
    %v1529 = vld [vmem:[%s1489 + $0x138] sm:$0xff]
    %v1530 = vld [vmem:[%s1489 + $0x140] sm:$0xff]
    %v1531 = vld [vmem:[%s1489 + $0x148] sm:$0xff]
    %v1532 = vld [vmem:[%s1489 + $0x150] sm:$0xff]
    %v1533 = vld [vmem:[%s1489 + $0x158] sm:$0xff]
    %v1534 = vld [vmem:[%s1489 + $0x160] sm:$0xff]
    %v1535 = vld [vmem:[%s1489 + $0x168] sm:$0xff]
    %v1536 = vld [vmem:[%s1489 + $0x170] sm:$0xff]
    %v1537 = vld [vmem:[%s1489 + $0x178] sm:$0xff]
    %v1538 = vld [vmem:[%s1489 + $0x180] sm:$0xff]
    %v1539 = vld [vmem:[%s1489 + $0x188] sm:$0xff]
    %v1540 = vld [vmem:[%s1489 + $0x190] sm:$0xff]
    %v1541 = vld [vmem:[%s1489 + $0x198] sm:$0xff]
    %v1542 = vld [vmem:[%s1489 + $0x1a0] sm:$0xff]
    %v1543 = vld [vmem:[%s1489 + $0x1a8] sm:$0xff]
    %v1544 = vld [vmem:[%s1489 + $0x1b0] sm:$0xff]
    %v1545 = vld [vmem:[%s1489 + $0x1b8] sm:$0xff]
    %v1546 = vld [vmem:[%s1489 + $0x1c0] sm:$0xff]
    %v1547 = vld [vmem:[%s1489 + $0x1c8] sm:$0xff]
    %v1548 = vld [vmem:[%s1489 + $0x1d0] sm:$0xff]
    %v1549 = vld [vmem:[%s1489 + $0x1d8] sm:$0xff]
    %v1550 = vld [vmem:[%s1489 + $0x1e0] sm:$0xff]
    %v1551 = vld [vmem:[%s1489 + $0x1e8] sm:$0xff]
    %v1552 = vld [vmem:[%s1489 + $0x1f0] sm:$0xff]
    %v1553 = vld [vmem:[%s1489 + $0x1f8] sm:$0xff]
    %v1554 = vpack.c.b16 %v874, %v872
    %v1555 = vpack.c.b16 %v875, %v873
    %v1556 = vpack.c.b16 %v878, %v876
    %v1557 = vpack.c.b16 %v879, %v877
    %v1558 = vpack.c.b16 %v882, %v880
    %v1559 = vpack.c.b16 %v883, %v881
    %v1560 = vpack.c.b16 %v1487, %v884
    %v1561 = vpack.c.b16 %v1488, %v885
    %v1634 = vunpack.c.l.b16 %v1490
    %v1635 = vunpack.c.h.b16 %v1490
    %v1636 = vunpack.c.l.b16 %v1491
    %v1637 = vunpack.c.h.b16 %v1491
    %v1638 = vunpack.c.l.b16 %v1492
    %v1639 = vunpack.c.h.b16 %v1492
    %v1640 = vunpack.c.l.b16 %v1493
    %v1641 = vunpack.c.h.b16 %v1493
    %v1642 = vunpack.c.l.b16 %v1494
    %v1643 = vunpack.c.h.b16 %v1494
    %v1644 = vunpack.c.l.b16 %v1495
    %v1645 = vunpack.c.h.b16 %v1495
    %v1646 = vunpack.c.l.b16 %v1496
    %v1647 = vunpack.c.h.b16 %v1496
    %v1648 = vunpack.c.l.b16 %v1497
    %v1649 = vunpack.c.h.b16 %v1497
    %v1650 = vunpack.c.l.b16 %v1498
    %v1651 = vunpack.c.h.b16 %v1498
    %v1652 = vunpack.c.l.b16 %v1499
    %v1653 = vunpack.c.h.b16 %v1499
    %v1654 = vunpack.c.l.b16 %v1500
    %v1655 = vunpack.c.h.b16 %v1500
    %v1656 = vunpack.c.l.b16 %v1501
    %v1657 = vunpack.c.h.b16 %v1501
    %v1658 = vunpack.c.l.b16 %v1502
    %v1659 = vunpack.c.h.b16 %v1502
    %v1660 = vunpack.c.l.b16 %v1503
    %v1661 = vunpack.c.h.b16 %v1503
    %v1662 = vunpack.c.l.b16 %v1504
    %v1663 = vunpack.c.h.b16 %v1504
    %v1664 = vunpack.c.l.b16 %v1505
    %v1665 = vunpack.c.h.b16 %v1505
    %v1666 = vunpack.c.l.b16 %v1506
    %v1667 = vunpack.c.h.b16 %v1506
    %v1668 = vunpack.c.l.b16 %v1507
    %v1669 = vunpack.c.h.b16 %v1507
    %v1670 = vunpack.c.l.b16 %v1508
    %v1671 = vunpack.c.h.b16 %v1508
    %v1672 = vunpack.c.l.b16 %v1509
    %v1673 = vunpack.c.h.b16 %v1509
    %v1674 = vunpack.c.l.b16 %v1510
    %v1675 = vunpack.c.h.b16 %v1510
    %v1676 = vunpack.c.l.b16 %v1511
    %v1677 = vunpack.c.h.b16 %v1511
    %v1678 = vunpack.c.l.b16 %v1512
    %v1679 = vunpack.c.h.b16 %v1512
    %v1680 = vunpack.c.l.b16 %v1513
    %v1681 = vunpack.c.h.b16 %v1513
    %v1682 = vunpack.c.l.b16 %v1514
    %v1683 = vunpack.c.h.b16 %v1514
    %v1684 = vunpack.c.l.b16 %v1515
    %v1685 = vunpack.c.h.b16 %v1515
    %v1686 = vunpack.c.l.b16 %v1516
    %v1687 = vunpack.c.h.b16 %v1516
    %v1688 = vunpack.c.l.b16 %v1517
    %v1689 = vunpack.c.h.b16 %v1517
    %v1690 = vunpack.c.l.b16 %v1518
    %v1691 = vunpack.c.h.b16 %v1518
    %v1692 = vunpack.c.l.b16 %v1519
    %v1693 = vunpack.c.h.b16 %v1519
    %v1694 = vunpack.c.l.b16 %v1520
    %v1695 = vunpack.c.h.b16 %v1520
    %v1696 = vunpack.c.l.b16 %v1521
    %v1697 = vunpack.c.h.b16 %v1521
    %v1698 = vunpack.c.l.b16 %v1522
    %v1699 = vunpack.c.h.b16 %v1522
    %v1700 = vunpack.c.l.b16 %v1523
    %v1701 = vunpack.c.h.b16 %v1523
    %v1702 = vunpack.c.l.b16 %v1524
    %v1703 = vunpack.c.h.b16 %v1524
    %v1704 = vunpack.c.l.b16 %v1525
    %v1705 = vunpack.c.h.b16 %v1525
    %v1706 = vunpack.c.l.b16 %v1526
    %v1707 = vunpack.c.h.b16 %v1526
    %v1708 = vunpack.c.l.b16 %v1527
    %v1709 = vunpack.c.h.b16 %v1527
    %v1710 = vunpack.c.l.b16 %v1528
    %v1711 = vunpack.c.h.b16 %v1528
    %v1712 = vunpack.c.l.b16 %v1529
    %v1713 = vunpack.c.h.b16 %v1529
    %v1714 = vunpack.c.l.b16 %v1530
    %v1715 = vunpack.c.h.b16 %v1530
    %v1716 = vunpack.c.l.b16 %v1531
    %v1717 = vunpack.c.h.b16 %v1531
    %v1718 = vunpack.c.l.b16 %v1532
    %v1719 = vunpack.c.h.b16 %v1532
    %v1720 = vunpack.c.l.b16 %v1533
    %v1721 = vunpack.c.h.b16 %v1533
    %v1722 = vunpack.c.l.b16 %v1534
    %v1723 = vunpack.c.h.b16 %v1534
    %v1724 = vunpack.c.l.b16 %v1535
    %v1725 = vunpack.c.h.b16 %v1535
    %v1726 = vunpack.c.l.b16 %v1536
    %v1727 = vunpack.c.h.b16 %v1536
    %v1728 = vunpack.c.l.b16 %v1537
    %v1729 = vunpack.c.h.b16 %v1537
    %v1730 = vunpack.c.l.b16 %v1538
    %v1731 = vunpack.c.h.b16 %v1538
    %v1732 = vunpack.c.l.b16 %v1539
    %v1733 = vunpack.c.h.b16 %v1539
    %v1734 = vunpack.c.l.b16 %v1540
    %v1735 = vunpack.c.h.b16 %v1540
    %v1736 = vunpack.c.l.b16 %v1541
    %v1737 = vunpack.c.h.b16 %v1541
    %v1738 = vunpack.c.l.b16 %v1542
    %v1739 = vunpack.c.h.b16 %v1542
    %v1740 = vunpack.c.l.b16 %v1543
    %v1741 = vunpack.c.h.b16 %v1543
    %v1742 = vunpack.c.l.b16 %v1544
    %v1743 = vunpack.c.h.b16 %v1544
    %v1744 = vunpack.c.l.b16 %v1545
    %v1745 = vunpack.c.h.b16 %v1545
    %v1746 = vunpack.c.l.b16 %v1546
    %v1747 = vunpack.c.h.b16 %v1546
    %v1748 = vunpack.c.l.b16 %v1547
    %v1749 = vunpack.c.h.b16 %v1547
    %v1750 = vunpack.c.l.b16 %v1548
    %v1751 = vunpack.c.h.b16 %v1548
    %v1752 = vunpack.c.l.b16 %v1549
    %v1753 = vunpack.c.h.b16 %v1549
    %v1754 = vunpack.c.l.b16 %v1550
    %v1755 = vunpack.c.h.b16 %v1550
    %v1756 = vunpack.c.l.b16 %v1551
    %v1757 = vunpack.c.h.b16 %v1551
    %v1758 = vunpack.c.l.b16 %v1552
    %v1759 = vunpack.c.h.b16 %v1552
    %v1760 = vunpack.c.l.b16 %v1553
    %v1761 = vunpack.c.h.b16 %v1553
    %v1762 = vpack.c.b16 %v1638, %v1634
    %v1763 = vpack.c.b16 %v1639, %v1635
    %v1764 = vpack.c.b16 %v1640, %v1636
    %v1765 = vpack.c.b16 %v1641, %v1637
    %v1766 = vpack.c.b16 %v1646, %v1642
    %v1767 = vpack.c.b16 %v1647, %v1643
    %v1768 = vpack.c.b16 %v1648, %v1644
    %v1769 = vpack.c.b16 %v1649, %v1645
    %v1770 = vpack.c.b16 %v1654, %v1650
    %v1771 = vpack.c.b16 %v1655, %v1651
    %v1772 = vpack.c.b16 %v1656, %v1652
    %v1773 = vpack.c.b16 %v1657, %v1653
    %v1774 = vpack.c.b16 %v1662, %v1658
    %v1775 = vpack.c.b16 %v1663, %v1659
    %v1776 = vpack.c.b16 %v1664, %v1660
    %v1777 = vpack.c.b16 %v1665, %v1661
    %v1778 = vpack.c.b16 %v1670, %v1666
    %v1779 = vpack.c.b16 %v1671, %v1667
    %v1780 = vpack.c.b16 %v1672, %v1668
    %v1781 = vpack.c.b16 %v1673, %v1669
    %v1782 = vpack.c.b16 %v1678, %v1674
    %v1783 = vpack.c.b16 %v1679, %v1675
    %v1784 = vpack.c.b16 %v1680, %v1676
    %v1785 = vpack.c.b16 %v1681, %v1677
    %v1786 = vpack.c.b16 %v1686, %v1682
    %v1787 = vpack.c.b16 %v1687, %v1683
    %v1788 = vpack.c.b16 %v1688, %v1684
    %v1789 = vpack.c.b16 %v1689, %v1685
    %v1790 = vpack.c.b16 %v1694, %v1690
    %v1791 = vpack.c.b16 %v1695, %v1691
    %v1792 = vpack.c.b16 %v1696, %v1692
    %v1793 = vpack.c.b16 %v1697, %v1693
    %v1794 = vpack.c.b16 %v1702, %v1698
    %v1795 = vpack.c.b16 %v1703, %v1699
    %v1796 = vpack.c.b16 %v1704, %v1700
    %v1797 = vpack.c.b16 %v1705, %v1701
    %v1798 = vpack.c.b16 %v1710, %v1706
    %v1799 = vpack.c.b16 %v1711, %v1707
    %v1800 = vpack.c.b16 %v1712, %v1708
    %v1801 = vpack.c.b16 %v1713, %v1709
    %v1802 = vpack.c.b16 %v1718, %v1714
    %v1803 = vpack.c.b16 %v1719, %v1715
    %v1804 = vpack.c.b16 %v1720, %v1716
    %v1805 = vpack.c.b16 %v1721, %v1717
    %v1806 = vpack.c.b16 %v1726, %v1722
    %v1807 = vpack.c.b16 %v1727, %v1723
    %v1808 = vpack.c.b16 %v1728, %v1724
    %v1809 = vpack.c.b16 %v1729, %v1725
    %v1810 = vpack.c.b16 %v1734, %v1730
    %v1811 = vpack.c.b16 %v1735, %v1731
    %v1812 = vpack.c.b16 %v1736, %v1732
    %v1813 = vpack.c.b16 %v1737, %v1733
    %v1814 = vpack.c.b16 %v1742, %v1738
    %v1815 = vpack.c.b16 %v1743, %v1739
    %v1816 = vpack.c.b16 %v1744, %v1740
    %v1817 = vpack.c.b16 %v1745, %v1741
    %v1818 = vpack.c.b16 %v1750, %v1746
    %v1819 = vpack.c.b16 %v1751, %v1747
    %v1820 = vpack.c.b16 %v1752, %v1748
    %v1821 = vpack.c.b16 %v1753, %v1749
    %v1822 = vpack.c.b16 %v1758, %v1754
    %v1823 = vpack.c.b16 %v1759, %v1755
    %v1824 = vpack.c.b16 %v1760, %v1756
    %v1825 = vpack.c.b16 %v1761, %v1757
    %1890 = vmatprep.subr.bf16.mxu0 %v1791
    %1891 = vmatpush1.bf16.msra.mxu0 %v1790
    %1892 = vmatprep.subr.bf16.mxu0 %v1787
    %1893 = vmatpush1.bf16.msra.mxu0 %v1786
    %1894 = vmatprep.subr.bf16.mxu0 %v1783
    %1895 = vmatpush1.bf16.msra.mxu0 %v1782
    %1896 = vmatprep.subr.bf16.mxu0 %v1779
    %1897 = vmatpush1.bf16.msra.mxu0 %v1778
    %1898 = vmatprep.subr.bf16.mxu0 %v1775
    %1899 = vmatpush1.bf16.msra.mxu0 %v1774
    %1900 = vmatprep.subr.bf16.mxu0 %v1771
    %1901 = vmatpush1.bf16.msra.mxu0 %v1770
    %1902 = vmatprep.subr.bf16.mxu0 %v1767
    %1903 = vmatpush1.bf16.msra.mxu0 %v1766
    %1904 = vmatprep.subr.bf16.mxu0 %v1763
    %1905 = vmatpush1.bf16.msra.mxu0 %v1762
    %1906 = vmatprep.subr.bf16.mxu0 %v1823
    %1907 = vmatpush2.bf16.msra.mxu0 %v1822
    %1908 = vmatprep.subr.bf16.mxu0 %v1819
    %1909 = vmatpush2.bf16.msra.mxu0 %v1818
    %1910 = vmatprep.subr.bf16.mxu0 %v1815
    %1911 = vmatpush2.bf16.msra.mxu0 %v1814
    %1912 = vmatprep.subr.bf16.mxu0 %v1811
    %1913 = vmatpush2.bf16.msra.mxu0 %v1810
    %1914 = vmatprep.subr.bf16.mxu0 %v1807
    %1915 = vmatpush2.bf16.msra.mxu0 %v1806
    %1916 = vmatprep.subr.bf16.mxu0 %v1803
    %1917 = vmatpush2.bf16.msra.mxu0 %v1802
    %1918 = vmatprep.subr.bf16.mxu0 %v1799
    %1919 = vmatpush2.bf16.msra.mxu0 %v1798
    %1920 = vmatprep.subr.bf16.mxu0 %v1795
    %1921 = vmatpush2.bf16.msra.mxu0 %v1794
    %1922 = vmatprep.mubr.bf16.mxu0 %v1555
    %1923 = vmatmul.mubr.bf16.gmra.mxu0 %v1554
    %v1924 = vpop.f32.mrf.mxu0
    %v1925 = vadd.f32 0.0, %v1924
    %v1926 = vpop.f32.mrf.mxu0
    %v1927 = vadd.f32 0.0, %v1926
    %v1928 = vpop.f32.mrf.mxu0
    %v1929 = vadd.f32 0.0, %v1928
    %v1930 = vpop.f32.mrf.mxu0
    %v1931 = vadd.f32 0.0, %v1930
    %1932 = vmatprep.mubr.bf16.mxu0 %v1557
    %1933 = vmatmul.mubr.bf16.gmra.mxu0 %v1556
    %v1934 = vpop.f32.mrf.mxu0
    %v1935 = vadd.f32 0.0, %v1934
    %v1936 = vpop.f32.mrf.mxu0
    %v1937 = vadd.f32 0.0, %v1936
    %v1938 = vpop.f32.mrf.mxu0
    %v1939 = vadd.f32 0.0, %v1938
    %v1940 = vpop.f32.mrf.mxu0
    %v1941 = vadd.f32 0.0, %v1940
    %1942 = vmatprep.mubr.bf16.mxu0 %v1559
    %1943 = vmatmul.mubr.bf16.gmra.mxu0 %v1558
    %v1944 = vpop.f32.mrf.mxu0
    %v1945 = vadd.f32 0.0, %v1944
    %v1946 = vpop.f32.mrf.mxu0
    %v1947 = vadd.f32 0.0, %v1946
    %v1948 = vpop.f32.mrf.mxu0
    %v1949 = vadd.f32 0.0, %v1948
    %v1950 = vpop.f32.mrf.mxu0
    %v1951 = vadd.f32 0.0, %v1950
    %1952 = vmatprep.mubr.bf16.mxu0 %v1561
    %1953 = vmatmul.mubr.bf16.gmra.mxu0 %v1560
    %v1954 = vpop.f32.mrf.mxu0
    %v1955 = vadd.f32 0.0, %v1954
    %v1956 = vpop.f32.mrf.mxu0
    %v1957 = vadd.f32 0.0, %v1956
    %v1958 = vpop.f32.mrf.mxu0
    %v1959 = vadd.f32 0.0, %v1958
    %v1960 = vpop.f32.mrf.mxu0
    %v1961 = vadd.f32 0.0, %v1960
    %1962 = vdwg.mxu0
    %1963 = vmatprep.subr.bf16.mxu0 %v1793
    %1964 = vmatpush1.bf16.msra.mxu0 %v1792
    %1965 = vmatprep.subr.bf16.mxu0 %v1789
    %1966 = vmatpush1.bf16.msra.mxu0 %v1788
    %1967 = vmatprep.subr.bf16.mxu0 %v1785
    %1968 = vmatpush1.bf16.msra.mxu0 %v1784
    %1969 = vmatprep.subr.bf16.mxu0 %v1781
    %1970 = vmatpush1.bf16.msra.mxu0 %v1780
    %1971 = vmatprep.subr.bf16.mxu0 %v1777
    %1972 = vmatpush1.bf16.msra.mxu0 %v1776
    %1973 = vmatprep.subr.bf16.mxu0 %v1773
    %1974 = vmatpush1.bf16.msra.mxu0 %v1772
    %1975 = vmatprep.subr.bf16.mxu0 %v1769
    %1976 = vmatpush1.bf16.msra.mxu0 %v1768
    %1977 = vmatprep.subr.bf16.mxu0 %v1765
    %1978 = vmatpush1.bf16.msra.mxu0 %v1764
    %1979 = vmatprep.subr.bf16.mxu0 %v1825
    %1980 = vmatpush2.bf16.msra.mxu0 %v1824
    %1981 = vmatprep.subr.bf16.mxu0 %v1821
    %1982 = vmatpush2.bf16.msra.mxu0 %v1820
    %1983 = vmatprep.subr.bf16.mxu0 %v1817
    %1984 = vmatpush2.bf16.msra.mxu0 %v1816
    %1985 = vmatprep.subr.bf16.mxu0 %v1813
    %1986 = vmatpush2.bf16.msra.mxu0 %v1812
    %1987 = vmatprep.subr.bf16.mxu0 %v1809
    %1988 = vmatpush2.bf16.msra.mxu0 %v1808
    %1989 = vmatprep.subr.bf16.mxu0 %v1805
    %1990 = vmatpush2.bf16.msra.mxu0 %v1804
    %1991 = vmatprep.subr.bf16.mxu0 %v1801
    %1992 = vmatpush2.bf16.msra.mxu0 %v1800
    %1993 = vmatprep.subr.bf16.mxu0 %v1797
    %1994 = vmatpush2.bf16.msra.mxu0 %v1796
    %1995 = vmatprep.mubr.bf16.mxu0 %v1555
    %1996 = vmatmul.mubr.bf16.gmra.mxu0 %v1554
    %v1997 = vpop.f32.mrf.mxu0
    %v1998 = vadd.f32 0.0, %v1997
    %v1999 = vpop.f32.mrf.mxu0
    %v2000 = vadd.f32 0.0, %v1999
    %v2001 = vpop.f32.mrf.mxu0
    %v2002 = vadd.f32 0.0, %v2001
    %v2003 = vpop.f32.mrf.mxu0
    %v2004 = vadd.f32 0.0, %v2003
    %2005 = vmatprep.mubr.bf16.mxu0 %v1557
    %2006 = vmatmul.mubr.bf16.gmra.mxu0 %v1556
    %v2007 = vpop.f32.mrf.mxu0
    %v2008 = vadd.f32 0.0, %v2007
    %v2009 = vpop.f32.mrf.mxu0
    %v2010 = vadd.f32 0.0, %v2009
    %v2011 = vpop.f32.mrf.mxu0
    %v2012 = vadd.f32 0.0, %v2011
    %v2013 = vpop.f32.mrf.mxu0
    %v2014 = vadd.f32 0.0, %v2013
    %2015 = vmatprep.mubr.bf16.mxu0 %v1559
    %2016 = vmatmul.mubr.bf16.gmra.mxu0 %v1558
    %v2017 = vpop.f32.mrf.mxu0
    %v2018 = vadd.f32 0.0, %v2017
    %v2019 = vpop.f32.mrf.mxu0
    %v2020 = vadd.f32 0.0, %v2019
    %v2021 = vpop.f32.mrf.mxu0
    %v2022 = vadd.f32 0.0, %v2021
    %v2023 = vpop.f32.mrf.mxu0
    %v2024 = vadd.f32 0.0, %v2023
    %2025 = vmatprep.mubr.bf16.mxu0 %v1561
    %2026 = vmatmul.mubr.bf16.gmra.mxu0 %v1560
    %v2027 = vpop.f32.mrf.mxu0
    %v2028 = vadd.f32 0.0, %v2027
    %v2029 = vpop.f32.mrf.mxu0
    %v2030 = vadd.f32 0.0, %v2029
    %v2031 = vpop.f32.mrf.mxu0
    %v2032 = vadd.f32 0.0, %v2031
    %v2033 = vpop.f32.mrf.mxu0
    %v2034 = vadd.f32 0.0, %v2033
    %2035 = vdwg.mxu0
    %v2036 = vadd.f32 %v1453, %v1925
    %v2037 = vadd.f32 %v1454, %v1927
    %v2038 = vadd.f32 %v1455, %v1998
    %v2039 = vadd.f32 %v1456, %v2000
    %v2040 = vadd.f32 %v1457, %v1929
    %v2041 = vadd.f32 %v1458, %v1931
    %v2042 = vadd.f32 %v1459, %v2002
    %v2043 = vadd.f32 %v1460, %v2004
    %v2044 = vadd.f32 %v1461, %v1935
    %v2045 = vadd.f32 %v1462, %v1937
    %v2046 = vadd.f32 %v1463, %v2008
    %v2047 = vadd.f32 %v1464, %v2010
    %v2048 = vadd.f32 %v1465, %v1939
    %v2049 = vadd.f32 %v1466, %v1941
    %v2050 = vadd.f32 %v1467, %v2012
    %v2051 = vadd.f32 %v1468, %v2014
    %v2052 = vadd.f32 %v1469, %v1945
    %v2053 = vadd.f32 %v1470, %v1947
    %v2054 = vadd.f32 %v1471, %v2018
    %v2055 = vadd.f32 %v1472, %v2020
    %v2056 = vadd.f32 %v1473, %v1949
    %v2057 = vadd.f32 %v1474, %v1951
    %v2058 = vadd.f32 %v1475, %v2022
    %v2059 = vadd.f32 %v1476, %v2024
    %v2060 = vadd.f32 %v1477, %v1955
    %v2061 = vadd.f32 %v1478, %v1957
    %v2062 = vadd.f32 %v1479, %v2028
    %v2063 = vadd.f32 %v1480, %v2030
    %v2064 = vadd.f32 %v1481, %v1959
    %v2065 = vadd.f32 %v1482, %v1961
    %v2066 = vadd.f32 %v1483, %v2032
    %v2067 = vadd.f32 %v1484, %v2034
    %v2070 = vunpack.c.l.b16 %v847
    %v2071 = vunpack.c.l.b16 %v848
    %s2072 = scalar_lea.vmem %s3, 1024
    %v2073 = vld [vmem:[%s2072] sm:$0xff]
    %v2074 = vld [vmem:[%s2072 + $0x8] sm:$0xff]
    %v2075 = vld [vmem:[%s2072 + $0x10] sm:$0xff]
    %v2076 = vld [vmem:[%s2072 + $0x18] sm:$0xff]
    %v2077 = vld [vmem:[%s2072 + $0x20] sm:$0xff]
    %v2078 = vld [vmem:[%s2072 + $0x28] sm:$0xff]
    %v2079 = vld [vmem:[%s2072 + $0x30] sm:$0xff]
    %v2080 = vld [vmem:[%s2072 + $0x38] sm:$0xff]
    %v2081 = vld [vmem:[%s2072 + $0x40] sm:$0xff]
    %v2082 = vld [vmem:[%s2072 + $0x48] sm:$0xff]
    %v2083 = vld [vmem:[%s2072 + $0x50] sm:$0xff]
    %v2084 = vld [vmem:[%s2072 + $0x58] sm:$0xff]
    %v2085 = vld [vmem:[%s2072 + $0x60] sm:$0xff]
    %v2086 = vld [vmem:[%s2072 + $0x68] sm:$0xff]
    %v2087 = vld [vmem:[%s2072 + $0x70] sm:$0xff]
    %v2088 = vld [vmem:[%s2072 + $0x78] sm:$0xff]
    %v2089 = vld [vmem:[%s2072 + $0x80] sm:$0xff]
    %v2090 = vld [vmem:[%s2072 + $0x88] sm:$0xff]
    %v2091 = vld [vmem:[%s2072 + $0x90] sm:$0xff]
    %v2092 = vld [vmem:[%s2072 + $0x98] sm:$0xff]
    %v2093 = vld [vmem:[%s2072 + $0xa0] sm:$0xff]
    %v2094 = vld [vmem:[%s2072 + $0xa8] sm:$0xff]
    %v2095 = vld [vmem:[%s2072 + $0xb0] sm:$0xff]
    %v2096 = vld [vmem:[%s2072 + $0xb8] sm:$0xff]
    %v2097 = vld [vmem:[%s2072 + $0xc0] sm:$0xff]
    %v2098 = vld [vmem:[%s2072 + $0xc8] sm:$0xff]
    %v2099 = vld [vmem:[%s2072 + $0xd0] sm:$0xff]
    %v2100 = vld [vmem:[%s2072 + $0xd8] sm:$0xff]
    %v2101 = vld [vmem:[%s2072 + $0xe0] sm:$0xff]
    %v2102 = vld [vmem:[%s2072 + $0xe8] sm:$0xff]
    %v2103 = vld [vmem:[%s2072 + $0xf0] sm:$0xff]
    %v2104 = vld [vmem:[%s2072 + $0xf8] sm:$0xff]
    %v2105 = vld [vmem:[%s2072 + $0x100] sm:$0xff]
    %v2106 = vld [vmem:[%s2072 + $0x108] sm:$0xff]
    %v2107 = vld [vmem:[%s2072 + $0x110] sm:$0xff]
    %v2108 = vld [vmem:[%s2072 + $0x118] sm:$0xff]
    %v2109 = vld [vmem:[%s2072 + $0x120] sm:$0xff]
    %v2110 = vld [vmem:[%s2072 + $0x128] sm:$0xff]
    %v2111 = vld [vmem:[%s2072 + $0x130] sm:$0xff]
    %v2112 = vld [vmem:[%s2072 + $0x138] sm:$0xff]
    %v2113 = vld [vmem:[%s2072 + $0x140] sm:$0xff]
    %v2114 = vld [vmem:[%s2072 + $0x148] sm:$0xff]
    %v2115 = vld [vmem:[%s2072 + $0x150] sm:$0xff]
    %v2116 = vld [vmem:[%s2072 + $0x158] sm:$0xff]
    %v2117 = vld [vmem:[%s2072 + $0x160] sm:$0xff]
    %v2118 = vld [vmem:[%s2072 + $0x168] sm:$0xff]
    %v2119 = vld [vmem:[%s2072 + $0x170] sm:$0xff]
    %v2120 = vld [vmem:[%s2072 + $0x178] sm:$0xff]
    %v2121 = vld [vmem:[%s2072 + $0x180] sm:$0xff]
    %v2122 = vld [vmem:[%s2072 + $0x188] sm:$0xff]
    %v2123 = vld [vmem:[%s2072 + $0x190] sm:$0xff]
    %v2124 = vld [vmem:[%s2072 + $0x198] sm:$0xff]
    %v2125 = vld [vmem:[%s2072 + $0x1a0] sm:$0xff]
    %v2126 = vld [vmem:[%s2072 + $0x1a8] sm:$0xff]
    %v2127 = vld [vmem:[%s2072 + $0x1b0] sm:$0xff]
    %v2128 = vld [vmem:[%s2072 + $0x1b8] sm:$0xff]
    %v2129 = vld [vmem:[%s2072 + $0x1c0] sm:$0xff]
    %v2130 = vld [vmem:[%s2072 + $0x1c8] sm:$0xff]
    %v2131 = vld [vmem:[%s2072 + $0x1d0] sm:$0xff]
    %v2132 = vld [vmem:[%s2072 + $0x1d8] sm:$0xff]
    %v2133 = vld [vmem:[%s2072 + $0x1e0] sm:$0xff]
    %v2134 = vld [vmem:[%s2072 + $0x1e8] sm:$0xff]
    %v2135 = vld [vmem:[%s2072 + $0x1f0] sm:$0xff]
    %v2136 = vld [vmem:[%s2072 + $0x1f8] sm:$0xff]
    %v2137 = vpack.c.b16 %v2070, %v1487
    %v2138 = vpack.c.b16 %v2071, %v1488
    %v2205 = vunpack.c.l.b16 %v2073
    %v2206 = vunpack.c.h.b16 %v2073
    %v2207 = vunpack.c.l.b16 %v2074
    %v2208 = vunpack.c.h.b16 %v2074
    %v2209 = vunpack.c.l.b16 %v2075
    %v2210 = vunpack.c.h.b16 %v2075
    %v2211 = vunpack.c.l.b16 %v2076
    %v2212 = vunpack.c.h.b16 %v2076
    %v2213 = vunpack.c.l.b16 %v2077
    %v2214 = vunpack.c.h.b16 %v2077
    %v2215 = vunpack.c.l.b16 %v2078
    %v2216 = vunpack.c.h.b16 %v2078
    %v2217 = vunpack.c.l.b16 %v2079
    %v2218 = vunpack.c.h.b16 %v2079
    %v2219 = vunpack.c.l.b16 %v2080
    %v2220 = vunpack.c.h.b16 %v2080
    %v2221 = vunpack.c.l.b16 %v2081
    %v2222 = vunpack.c.h.b16 %v2081
    %v2223 = vunpack.c.l.b16 %v2082
    %v2224 = vunpack.c.h.b16 %v2082
    %v2225 = vunpack.c.l.b16 %v2083
    %v2226 = vunpack.c.h.b16 %v2083
    %v2227 = vunpack.c.l.b16 %v2084
    %v2228 = vunpack.c.h.b16 %v2084
    %v2229 = vunpack.c.l.b16 %v2085
    %v2230 = vunpack.c.h.b16 %v2085
    %v2231 = vunpack.c.l.b16 %v2086
    %v2232 = vunpack.c.h.b16 %v2086
    %v2233 = vunpack.c.l.b16 %v2087
    %v2234 = vunpack.c.h.b16 %v2087
    %v2235 = vunpack.c.l.b16 %v2088
    %v2236 = vunpack.c.h.b16 %v2088
    %v2237 = vunpack.c.l.b16 %v2089
    %v2238 = vunpack.c.h.b16 %v2089
    %v2239 = vunpack.c.l.b16 %v2090
    %v2240 = vunpack.c.h.b16 %v2090
    %v2241 = vunpack.c.l.b16 %v2091
    %v2242 = vunpack.c.h.b16 %v2091
    %v2243 = vunpack.c.l.b16 %v2092
    %v2244 = vunpack.c.h.b16 %v2092
    %v2245 = vunpack.c.l.b16 %v2093
    %v2246 = vunpack.c.h.b16 %v2093
    %v2247 = vunpack.c.l.b16 %v2094
    %v2248 = vunpack.c.h.b16 %v2094
    %v2249 = vunpack.c.l.b16 %v2095
    %v2250 = vunpack.c.h.b16 %v2095
    %v2251 = vunpack.c.l.b16 %v2096
    %v2252 = vunpack.c.h.b16 %v2096
    %v2253 = vunpack.c.l.b16 %v2097
    %v2254 = vunpack.c.h.b16 %v2097
    %v2255 = vunpack.c.l.b16 %v2098
    %v2256 = vunpack.c.h.b16 %v2098
    %v2257 = vunpack.c.l.b16 %v2099
    %v2258 = vunpack.c.h.b16 %v2099
    %v2259 = vunpack.c.l.b16 %v2100
    %v2260 = vunpack.c.h.b16 %v2100
    %v2261 = vunpack.c.l.b16 %v2101
    %v2262 = vunpack.c.h.b16 %v2101
    %v2263 = vunpack.c.l.b16 %v2102
    %v2264 = vunpack.c.h.b16 %v2102
    %v2265 = vunpack.c.l.b16 %v2103
    %v2266 = vunpack.c.h.b16 %v2103
    %v2267 = vunpack.c.l.b16 %v2104
    %v2268 = vunpack.c.h.b16 %v2104
    %v2269 = vunpack.c.l.b16 %v2105
    %v2270 = vunpack.c.h.b16 %v2105
    %v2271 = vunpack.c.l.b16 %v2106
    %v2272 = vunpack.c.h.b16 %v2106
    %v2273 = vunpack.c.l.b16 %v2107
    %v2274 = vunpack.c.h.b16 %v2107
    %v2275 = vunpack.c.l.b16 %v2108
    %v2276 = vunpack.c.h.b16 %v2108
    %v2277 = vunpack.c.l.b16 %v2109
    %v2278 = vunpack.c.h.b16 %v2109
    %v2279 = vunpack.c.l.b16 %v2110
    %v2280 = vunpack.c.h.b16 %v2110
    %v2281 = vunpack.c.l.b16 %v2111
    %v2282 = vunpack.c.h.b16 %v2111
    %v2283 = vunpack.c.l.b16 %v2112
    %v2284 = vunpack.c.h.b16 %v2112
    %v2285 = vunpack.c.l.b16 %v2113
    %v2286 = vunpack.c.h.b16 %v2113
    %v2287 = vunpack.c.l.b16 %v2114
    %v2288 = vunpack.c.h.b16 %v2114
    %v2289 = vunpack.c.l.b16 %v2115
    %v2290 = vunpack.c.h.b16 %v2115
    %v2291 = vunpack.c.l.b16 %v2116
    %v2292 = vunpack.c.h.b16 %v2116
    %v2293 = vunpack.c.l.b16 %v2117
    %v2294 = vunpack.c.h.b16 %v2117
    %v2295 = vunpack.c.l.b16 %v2118
    %v2296 = vunpack.c.h.b16 %v2118
    %v2297 = vunpack.c.l.b16 %v2119
    %v2298 = vunpack.c.h.b16 %v2119
    %v2299 = vunpack.c.l.b16 %v2120
    %v2300 = vunpack.c.h.b16 %v2120
    %v2301 = vunpack.c.l.b16 %v2121
    %v2302 = vunpack.c.h.b16 %v2121
    %v2303 = vunpack.c.l.b16 %v2122
    %v2304 = vunpack.c.h.b16 %v2122
    %v2305 = vunpack.c.l.b16 %v2123
    %v2306 = vunpack.c.h.b16 %v2123
    %v2307 = vunpack.c.l.b16 %v2124
    %v2308 = vunpack.c.h.b16 %v2124
    %v2309 = vunpack.c.l.b16 %v2125
    %v2310 = vunpack.c.h.b16 %v2125
    %v2311 = vunpack.c.l.b16 %v2126
    %v2312 = vunpack.c.h.b16 %v2126
    %v2313 = vunpack.c.l.b16 %v2127
    %v2314 = vunpack.c.h.b16 %v2127
    %v2315 = vunpack.c.l.b16 %v2128
    %v2316 = vunpack.c.h.b16 %v2128
    %v2317 = vunpack.c.l.b16 %v2129
    %v2318 = vunpack.c.h.b16 %v2129
    %v2319 = vunpack.c.l.b16 %v2130
    %v2320 = vunpack.c.h.b16 %v2130
    %v2321 = vunpack.c.l.b16 %v2131
    %v2322 = vunpack.c.h.b16 %v2131
    %v2323 = vunpack.c.l.b16 %v2132
    %v2324 = vunpack.c.h.b16 %v2132
    %v2325 = vunpack.c.l.b16 %v2133
    %v2326 = vunpack.c.h.b16 %v2133
    %v2327 = vunpack.c.l.b16 %v2134
    %v2328 = vunpack.c.h.b16 %v2134
    %v2329 = vunpack.c.l.b16 %v2135
    %v2330 = vunpack.c.h.b16 %v2135
    %v2331 = vunpack.c.l.b16 %v2136
    %v2332 = vunpack.c.h.b16 %v2136
    %v2333 = vpack.c.b16 %v2209, %v2205
    %v2334 = vpack.c.b16 %v2210, %v2206
    %v2335 = vpack.c.b16 %v2211, %v2207
    %v2336 = vpack.c.b16 %v2212, %v2208
    %v2337 = vpack.c.b16 %v2217, %v2213
    %v2338 = vpack.c.b16 %v2218, %v2214
    %v2339 = vpack.c.b16 %v2219, %v2215
    %v2340 = vpack.c.b16 %v2220, %v2216
    %v2341 = vpack.c.b16 %v2225, %v2221
    %v2342 = vpack.c.b16 %v2226, %v2222
    %v2343 = vpack.c.b16 %v2227, %v2223
    %v2344 = vpack.c.b16 %v2228, %v2224
    %v2345 = vpack.c.b16 %v2233, %v2229
    %v2346 = vpack.c.b16 %v2234, %v2230
    %v2347 = vpack.c.b16 %v2235, %v2231
    %v2348 = vpack.c.b16 %v2236, %v2232
    %v2349 = vpack.c.b16 %v2241, %v2237
    %v2350 = vpack.c.b16 %v2242, %v2238
    %v2351 = vpack.c.b16 %v2243, %v2239
    %v2352 = vpack.c.b16 %v2244, %v2240
    %v2353 = vpack.c.b16 %v2249, %v2245
    %v2354 = vpack.c.b16 %v2250, %v2246
    %v2355 = vpack.c.b16 %v2251, %v2247
    %v2356 = vpack.c.b16 %v2252, %v2248
    %v2357 = vpack.c.b16 %v2257, %v2253
    %v2358 = vpack.c.b16 %v2258, %v2254
    %v2359 = vpack.c.b16 %v2259, %v2255
    %v2360 = vpack.c.b16 %v2260, %v2256
    %v2361 = vpack.c.b16 %v2265, %v2261
    %v2362 = vpack.c.b16 %v2266, %v2262
    %v2363 = vpack.c.b16 %v2267, %v2263
    %v2364 = vpack.c.b16 %v2268, %v2264
    %v2365 = vpack.c.b16 %v2273, %v2269
    %v2366 = vpack.c.b16 %v2274, %v2270
    %v2367 = vpack.c.b16 %v2275, %v2271
    %v2368 = vpack.c.b16 %v2276, %v2272
    %v2369 = vpack.c.b16 %v2281, %v2277
    %v2370 = vpack.c.b16 %v2282, %v2278
    %v2371 = vpack.c.b16 %v2283, %v2279
    %v2372 = vpack.c.b16 %v2284, %v2280
    %v2373 = vpack.c.b16 %v2289, %v2285
    %v2374 = vpack.c.b16 %v2290, %v2286
    %v2375 = vpack.c.b16 %v2291, %v2287
    %v2376 = vpack.c.b16 %v2292, %v2288
    %v2377 = vpack.c.b16 %v2297, %v2293
    %v2378 = vpack.c.b16 %v2298, %v2294
    %v2379 = vpack.c.b16 %v2299, %v2295
    %v2380 = vpack.c.b16 %v2300, %v2296
    %v2381 = vpack.c.b16 %v2305, %v2301
    %v2382 = vpack.c.b16 %v2306, %v2302
    %v2383 = vpack.c.b16 %v2307, %v2303
    %v2384 = vpack.c.b16 %v2308, %v2304
    %v2385 = vpack.c.b16 %v2313, %v2309
    %v2386 = vpack.c.b16 %v2314, %v2310
    %v2387 = vpack.c.b16 %v2315, %v2311
    %v2388 = vpack.c.b16 %v2316, %v2312
    %v2389 = vpack.c.b16 %v2321, %v2317
    %v2390 = vpack.c.b16 %v2322, %v2318
    %v2391 = vpack.c.b16 %v2323, %v2319
    %v2392 = vpack.c.b16 %v2324, %v2320
    %v2393 = vpack.c.b16 %v2329, %v2325
    %v2394 = vpack.c.b16 %v2330, %v2326
    %v2395 = vpack.c.b16 %v2331, %v2327
    %v2396 = vpack.c.b16 %v2332, %v2328
    %2461 = vmatprep.subr.bf16.mxu0 %v2362
    %2462 = vmatpush1.bf16.msra.mxu0 %v2361
    %2463 = vmatprep.subr.bf16.mxu0 %v2358
    %2464 = vmatpush1.bf16.msra.mxu0 %v2357
    %2465 = vmatprep.subr.bf16.mxu0 %v2354
    %2466 = vmatpush1.bf16.msra.mxu0 %v2353
    %2467 = vmatprep.subr.bf16.mxu0 %v2350
    %2468 = vmatpush1.bf16.msra.mxu0 %v2349
    %2469 = vmatprep.subr.bf16.mxu0 %v2346
    %2470 = vmatpush1.bf16.msra.mxu0 %v2345
    %2471 = vmatprep.subr.bf16.mxu0 %v2342
    %2472 = vmatpush1.bf16.msra.mxu0 %v2341
    %2473 = vmatprep.subr.bf16.mxu0 %v2338
    %2474 = vmatpush1.bf16.msra.mxu0 %v2337
    %2475 = vmatprep.subr.bf16.mxu0 %v2334
    %2476 = vmatpush1.bf16.msra.mxu0 %v2333
    %2477 = vmatprep.subr.bf16.mxu0 %v2394
    %2478 = vmatpush2.bf16.msra.mxu0 %v2393
    %2479 = vmatprep.subr.bf16.mxu0 %v2390
    %2480 = vmatpush2.bf16.msra.mxu0 %v2389
    %2481 = vmatprep.subr.bf16.mxu0 %v2386
    %2482 = vmatpush2.bf16.msra.mxu0 %v2385
    %2483 = vmatprep.subr.bf16.mxu0 %v2382
    %2484 = vmatpush2.bf16.msra.mxu0 %v2381
    %2485 = vmatprep.subr.bf16.mxu0 %v2378
    %2486 = vmatpush2.bf16.msra.mxu0 %v2377
    %2487 = vmatprep.subr.bf16.mxu0 %v2374
    %2488 = vmatpush2.bf16.msra.mxu0 %v2373
    %2489 = vmatprep.subr.bf16.mxu0 %v2370
    %2490 = vmatpush2.bf16.msra.mxu0 %v2369
    %2491 = vmatprep.subr.bf16.mxu0 %v2366
    %2492 = vmatpush2.bf16.msra.mxu0 %v2365
    %2493 = vmatprep.mubr.bf16.mxu0 %v953
    %2494 = vmatmul.mubr.bf16.gmra.mxu0 %v952
    %v2495 = vpop.f32.mrf.mxu0
    %v2496 = vadd.f32 0.0, %v2495
    %v2497 = vpop.f32.mrf.mxu0
    %v2498 = vadd.f32 0.0, %v2497
    %v2499 = vpop.f32.mrf.mxu0
    %v2500 = vadd.f32 0.0, %v2499
    %v2501 = vpop.f32.mrf.mxu0
    %v2502 = vadd.f32 0.0, %v2501
    %2503 = vmatprep.mubr.bf16.mxu0 %v955
    %2504 = vmatmul.mubr.bf16.gmra.mxu0 %v954
    %v2505 = vpop.f32.mrf.mxu0
    %v2506 = vadd.f32 0.0, %v2505
    %v2507 = vpop.f32.mrf.mxu0
    %v2508 = vadd.f32 0.0, %v2507
    %v2509 = vpop.f32.mrf.mxu0
    %v2510 = vadd.f32 0.0, %v2509
    %v2511 = vpop.f32.mrf.mxu0
    %v2512 = vadd.f32 0.0, %v2511
    %2513 = vmatprep.mubr.bf16.mxu0 %v957
    %2514 = vmatmul.mubr.bf16.gmra.mxu0 %v956
    %v2515 = vpop.f32.mrf.mxu0
    %v2516 = vadd.f32 0.0, %v2515
    %v2517 = vpop.f32.mrf.mxu0
    %v2518 = vadd.f32 0.0, %v2517
    %v2519 = vpop.f32.mrf.mxu0
    %v2520 = vadd.f32 0.0, %v2519
    %v2521 = vpop.f32.mrf.mxu0
    %v2522 = vadd.f32 0.0, %v2521
    %2523 = vmatprep.mubr.bf16.mxu0 %v2138
    %2524 = vmatmul.mubr.bf16.gmra.mxu0 %v2137
    %v2525 = vpop.f32.mrf.mxu0
    %v2526 = vadd.f32 0.0, %v2525
    %v2527 = vpop.f32.mrf.mxu0
    %v2528 = vadd.f32 0.0, %v2527
    %v2529 = vpop.f32.mrf.mxu0
    %v2530 = vadd.f32 0.0, %v2529
    %v2531 = vpop.f32.mrf.mxu0
    %v2532 = vadd.f32 0.0, %v2531
    %2533 = vdwg.mxu0
    %2534 = vmatprep.subr.bf16.mxu0 %v2364
    %2535 = vmatpush1.bf16.msra.mxu0 %v2363
    %2536 = vmatprep.subr.bf16.mxu0 %v2360
    %2537 = vmatpush1.bf16.msra.mxu0 %v2359
    %2538 = vmatprep.subr.bf16.mxu0 %v2356
    %2539 = vmatpush1.bf16.msra.mxu0 %v2355
    %2540 = vmatprep.subr.bf16.mxu0 %v2352
    %2541 = vmatpush1.bf16.msra.mxu0 %v2351
    %2542 = vmatprep.subr.bf16.mxu0 %v2348
    %2543 = vmatpush1.bf16.msra.mxu0 %v2347
    %2544 = vmatprep.subr.bf16.mxu0 %v2344
    %2545 = vmatpush1.bf16.msra.mxu0 %v2343
    %2546 = vmatprep.subr.bf16.mxu0 %v2340
    %2547 = vmatpush1.bf16.msra.mxu0 %v2339
    %2548 = vmatprep.subr.bf16.mxu0 %v2336
    %2549 = vmatpush1.bf16.msra.mxu0 %v2335
    %2550 = vmatprep.subr.bf16.mxu0 %v2396
    %2551 = vmatpush2.bf16.msra.mxu0 %v2395
    %2552 = vmatprep.subr.bf16.mxu0 %v2392
    %2553 = vmatpush2.bf16.msra.mxu0 %v2391
    %2554 = vmatprep.subr.bf16.mxu0 %v2388
    %2555 = vmatpush2.bf16.msra.mxu0 %v2387
    %2556 = vmatprep.subr.bf16.mxu0 %v2384
    %2557 = vmatpush2.bf16.msra.mxu0 %v2383
    %2558 = vmatprep.subr.bf16.mxu0 %v2380
    %2559 = vmatpush2.bf16.msra.mxu0 %v2379
    %2560 = vmatprep.subr.bf16.mxu0 %v2376
    %2561 = vmatpush2.bf16.msra.mxu0 %v2375
    %2562 = vmatprep.subr.bf16.mxu0 %v2372
    %2563 = vmatpush2.bf16.msra.mxu0 %v2371
    %2564 = vmatprep.subr.bf16.mxu0 %v2368
    %2565 = vmatpush2.bf16.msra.mxu0 %v2367
    %2566 = vmatprep.mubr.bf16.mxu0 %v953
    %2567 = vmatmul.mubr.bf16.gmra.mxu0 %v952
    %v2568 = vpop.f32.mrf.mxu0
    %v2569 = vadd.f32 0.0, %v2568
    %v2570 = vpop.f32.mrf.mxu0
    %v2571 = vadd.f32 0.0, %v2570
    %v2572 = vpop.f32.mrf.mxu0
    %v2573 = vadd.f32 0.0, %v2572
    %v2574 = vpop.f32.mrf.mxu0
    %v2575 = vadd.f32 0.0, %v2574
    %2576 = vmatprep.mubr.bf16.mxu0 %v955
    %2577 = vmatmul.mubr.bf16.gmra.mxu0 %v954
    %v2578 = vpop.f32.mrf.mxu0
    %v2579 = vadd.f32 0.0, %v2578
    %v2580 = vpop.f32.mrf.mxu0
    %v2581 = vadd.f32 0.0, %v2580
    %v2582 = vpop.f32.mrf.mxu0
    %v2583 = vadd.f32 0.0, %v2582
    %v2584 = vpop.f32.mrf.mxu0
    %v2585 = vadd.f32 0.0, %v2584
    %2586 = vmatprep.mubr.bf16.mxu0 %v957
    %2587 = vmatmul.mubr.bf16.gmra.mxu0 %v956
    %v2588 = vpop.f32.mrf.mxu0
    %v2589 = vadd.f32 0.0, %v2588
    %v2590 = vpop.f32.mrf.mxu0
    %v2591 = vadd.f32 0.0, %v2590
    %v2592 = vpop.f32.mrf.mxu0
    %v2593 = vadd.f32 0.0, %v2592
    %v2594 = vpop.f32.mrf.mxu0
    %v2595 = vadd.f32 0.0, %v2594
    %2596 = vmatprep.mubr.bf16.mxu0 %v2138
    %2597 = vmatmul.mubr.bf16.gmra.mxu0 %v2137
    %v2598 = vpop.f32.mrf.mxu0
    %v2599 = vadd.f32 0.0, %v2598
    %v2600 = vpop.f32.mrf.mxu0
    %v2601 = vadd.f32 0.0, %v2600
    %v2602 = vpop.f32.mrf.mxu0
    %v2603 = vadd.f32 0.0, %v2602
    %v2604 = vpop.f32.mrf.mxu0
    %v2605 = vadd.f32 0.0, %v2604
    %2606 = vdwg.mxu0
    %v2607 = vadd.f32 %v2036, %v2496
    %v2608 = vadd.f32 %v2037, %v2498
    %v2609 = vadd.f32 %v2038, %v2569
    %v2610 = vadd.f32 %v2039, %v2571
    %v2611 = vadd.f32 %v2040, %v2500
    %v2612 = vadd.f32 %v2041, %v2502
    %v2613 = vadd.f32 %v2042, %v2573
    %v2614 = vadd.f32 %v2043, %v2575
    %v2615 = vadd.f32 %v2044, %v2506
    %v2616 = vadd.f32 %v2045, %v2508
    %v2617 = vadd.f32 %v2046, %v2579
    %v2618 = vadd.f32 %v2047, %v2581
    %v2619 = vadd.f32 %v2048, %v2510
    %v2620 = vadd.f32 %v2049, %v2512
    %v2621 = vadd.f32 %v2050, %v2583
    %v2622 = vadd.f32 %v2051, %v2585
    %v2623 = vadd.f32 %v2052, %v2516
    %v2624 = vadd.f32 %v2053, %v2518
    %v2625 = vadd.f32 %v2054, %v2589
    %v2626 = vadd.f32 %v2055, %v2591
    %v2627 = vadd.f32 %v2056, %v2520
    %v2628 = vadd.f32 %v2057, %v2522
    %v2629 = vadd.f32 %v2058, %v2593
    %v2630 = vadd.f32 %v2059, %v2595
    %v2631 = vadd.f32 %v2060, %v2526
    %v2632 = vadd.f32 %v2061, %v2528
    %v2633 = vadd.f32 %v2062, %v2599
    %v2634 = vadd.f32 %v2063, %v2601
    %v2635 = vadd.f32 %v2064, %v2530
    %v2636 = vadd.f32 %v2065, %v2532
    %v2637 = vadd.f32 %v2066, %v2603
    %v2638 = vadd.f32 %v2067, %v2605
    %v2641 = vunpack.c.l.b16 %v849
    %v2642 = vunpack.c.l.b16 %v850
    %s2643 = scalar_lea.vmem %s3, 1536
    %v2644 = vld [vmem:[%s2643] sm:$0xff]
    %v2645 = vld [vmem:[%s2643 + $0x8] sm:$0xff]
    %v2646 = vld [vmem:[%s2643 + $0x10] sm:$0xff]
    %v2647 = vld [vmem:[%s2643 + $0x18] sm:$0xff]
    %v2648 = vld [vmem:[%s2643 + $0x20] sm:$0xff]
    %v2649 = vld [vmem:[%s2643 + $0x28] sm:$0xff]
    %v2650 = vld [vmem:[%s2643 + $0x30] sm:$0xff]
    %v2651 = vld [vmem:[%s2643 + $0x38] sm:$0xff]
    %v2652 = vld [vmem:[%s2643 + $0x40] sm:$0xff]
    %v2653 = vld [vmem:[%s2643 + $0x48] sm:$0xff]
    %v2654 = vld [vmem:[%s2643 + $0x50] sm:$0xff]
    %v2655 = vld [vmem:[%s2643 + $0x58] sm:$0xff]
    %v2656 = vld [vmem:[%s2643 + $0x60] sm:$0xff]
    %v2657 = vld [vmem:[%s2643 + $0x68] sm:$0xff]
    %v2658 = vld [vmem:[%s2643 + $0x70] sm:$0xff]
    %v2659 = vld [vmem:[%s2643 + $0x78] sm:$0xff]
    %v2660 = vld [vmem:[%s2643 + $0x80] sm:$0xff]
    %v2661 = vld [vmem:[%s2643 + $0x88] sm:$0xff]
    %v2662 = vld [vmem:[%s2643 + $0x90] sm:$0xff]
    %v2663 = vld [vmem:[%s2643 + $0x98] sm:$0xff]
    %v2664 = vld [vmem:[%s2643 + $0xa0] sm:$0xff]
    %v2665 = vld [vmem:[%s2643 + $0xa8] sm:$0xff]
    %v2666 = vld [vmem:[%s2643 + $0xb0] sm:$0xff]
    %v2667 = vld [vmem:[%s2643 + $0xb8] sm:$0xff]
    %v2668 = vld [vmem:[%s2643 + $0xc0] sm:$0xff]
    %v2669 = vld [vmem:[%s2643 + $0xc8] sm:$0xff]
    %v2670 = vld [vmem:[%s2643 + $0xd0] sm:$0xff]
    %v2671 = vld [vmem:[%s2643 + $0xd8] sm:$0xff]
    %v2672 = vld [vmem:[%s2643 + $0xe0] sm:$0xff]
    %v2673 = vld [vmem:[%s2643 + $0xe8] sm:$0xff]
    %v2674 = vld [vmem:[%s2643 + $0xf0] sm:$0xff]
    %v2675 = vld [vmem:[%s2643 + $0xf8] sm:$0xff]
    %v2676 = vld [vmem:[%s2643 + $0x100] sm:$0xff]
    %v2677 = vld [vmem:[%s2643 + $0x108] sm:$0xff]
    %v2678 = vld [vmem:[%s2643 + $0x110] sm:$0xff]
    %v2679 = vld [vmem:[%s2643 + $0x118] sm:$0xff]
    %v2680 = vld [vmem:[%s2643 + $0x120] sm:$0xff]
    %v2681 = vld [vmem:[%s2643 + $0x128] sm:$0xff]
    %v2682 = vld [vmem:[%s2643 + $0x130] sm:$0xff]
    %v2683 = vld [vmem:[%s2643 + $0x138] sm:$0xff]
    %v2684 = vld [vmem:[%s2643 + $0x140] sm:$0xff]
    %v2685 = vld [vmem:[%s2643 + $0x148] sm:$0xff]
    %v2686 = vld [vmem:[%s2643 + $0x150] sm:$0xff]
    %v2687 = vld [vmem:[%s2643 + $0x158] sm:$0xff]
    %v2688 = vld [vmem:[%s2643 + $0x160] sm:$0xff]
    %v2689 = vld [vmem:[%s2643 + $0x168] sm:$0xff]
    %v2690 = vld [vmem:[%s2643 + $0x170] sm:$0xff]
    %v2691 = vld [vmem:[%s2643 + $0x178] sm:$0xff]
    %v2692 = vld [vmem:[%s2643 + $0x180] sm:$0xff]
    %v2693 = vld [vmem:[%s2643 + $0x188] sm:$0xff]
    %v2694 = vld [vmem:[%s2643 + $0x190] sm:$0xff]
    %v2695 = vld [vmem:[%s2643 + $0x198] sm:$0xff]
    %v2696 = vld [vmem:[%s2643 + $0x1a0] sm:$0xff]
    %v2697 = vld [vmem:[%s2643 + $0x1a8] sm:$0xff]
    %v2698 = vld [vmem:[%s2643 + $0x1b0] sm:$0xff]
    %v2699 = vld [vmem:[%s2643 + $0x1b8] sm:$0xff]
    %v2700 = vld [vmem:[%s2643 + $0x1c0] sm:$0xff]
    %v2701 = vld [vmem:[%s2643 + $0x1c8] sm:$0xff]
    %v2702 = vld [vmem:[%s2643 + $0x1d0] sm:$0xff]
    %v2703 = vld [vmem:[%s2643 + $0x1d8] sm:$0xff]
    %v2704 = vld [vmem:[%s2643 + $0x1e0] sm:$0xff]
    %v2705 = vld [vmem:[%s2643 + $0x1e8] sm:$0xff]
    %v2706 = vld [vmem:[%s2643 + $0x1f0] sm:$0xff]
    %v2707 = vld [vmem:[%s2643 + $0x1f8] sm:$0xff]
    %v2708 = vpack.c.b16 %v2641, %v2070
    %v2709 = vpack.c.b16 %v2642, %v2071
    %v2776 = vunpack.c.l.b16 %v2644
    %v2777 = vunpack.c.h.b16 %v2644
    %v2778 = vunpack.c.l.b16 %v2645
    %v2779 = vunpack.c.h.b16 %v2645
    %v2780 = vunpack.c.l.b16 %v2646
    %v2781 = vunpack.c.h.b16 %v2646
    %v2782 = vunpack.c.l.b16 %v2647
    %v2783 = vunpack.c.h.b16 %v2647
    %v2784 = vunpack.c.l.b16 %v2648
    %v2785 = vunpack.c.h.b16 %v2648
    %v2786 = vunpack.c.l.b16 %v2649
    %v2787 = vunpack.c.h.b16 %v2649
    %v2788 = vunpack.c.l.b16 %v2650
    %v2789 = vunpack.c.h.b16 %v2650
    %v2790 = vunpack.c.l.b16 %v2651
    %v2791 = vunpack.c.h.b16 %v2651
    %v2792 = vunpack.c.l.b16 %v2652
    %v2793 = vunpack.c.h.b16 %v2652
    %v2794 = vunpack.c.l.b16 %v2653
    %v2795 = vunpack.c.h.b16 %v2653
    %v2796 = vunpack.c.l.b16 %v2654
    %v2797 = vunpack.c.h.b16 %v2654
    %v2798 = vunpack.c.l.b16 %v2655
    %v2799 = vunpack.c.h.b16 %v2655
    %v2800 = vunpack.c.l.b16 %v2656
    %v2801 = vunpack.c.h.b16 %v2656
    %v2802 = vunpack.c.l.b16 %v2657
    %v2803 = vunpack.c.h.b16 %v2657
    %v2804 = vunpack.c.l.b16 %v2658
    %v2805 = vunpack.c.h.b16 %v2658
    %v2806 = vunpack.c.l.b16 %v2659
    %v2807 = vunpack.c.h.b16 %v2659
    %v2808 = vunpack.c.l.b16 %v2660
    %v2809 = vunpack.c.h.b16 %v2660
    %v2810 = vunpack.c.l.b16 %v2661
    %v2811 = vunpack.c.h.b16 %v2661
    %v2812 = vunpack.c.l.b16 %v2662
    %v2813 = vunpack.c.h.b16 %v2662
    %v2814 = vunpack.c.l.b16 %v2663
    %v2815 = vunpack.c.h.b16 %v2663
    %v2816 = vunpack.c.l.b16 %v2664
    %v2817 = vunpack.c.h.b16 %v2664
    %v2818 = vunpack.c.l.b16 %v2665
    %v2819 = vunpack.c.h.b16 %v2665
    %v2820 = vunpack.c.l.b16 %v2666
    %v2821 = vunpack.c.h.b16 %v2666
    %v2822 = vunpack.c.l.b16 %v2667
    %v2823 = vunpack.c.h.b16 %v2667
    %v2824 = vunpack.c.l.b16 %v2668
    %v2825 = vunpack.c.h.b16 %v2668
    %v2826 = vunpack.c.l.b16 %v2669
    %v2827 = vunpack.c.h.b16 %v2669
    %v2828 = vunpack.c.l.b16 %v2670
    %v2829 = vunpack.c.h.b16 %v2670
    %v2830 = vunpack.c.l.b16 %v2671
    %v2831 = vunpack.c.h.b16 %v2671
    %v2832 = vunpack.c.l.b16 %v2672
    %v2833 = vunpack.c.h.b16 %v2672
    %v2834 = vunpack.c.l.b16 %v2673
    %v2835 = vunpack.c.h.b16 %v2673
    %v2836 = vunpack.c.l.b16 %v2674
    %v2837 = vunpack.c.h.b16 %v2674
    %v2838 = vunpack.c.l.b16 %v2675
    %v2839 = vunpack.c.h.b16 %v2675
    %v2840 = vunpack.c.l.b16 %v2676
    %v2841 = vunpack.c.h.b16 %v2676
    %v2842 = vunpack.c.l.b16 %v2677
    %v2843 = vunpack.c.h.b16 %v2677
    %v2844 = vunpack.c.l.b16 %v2678
    %v2845 = vunpack.c.h.b16 %v2678
    %v2846 = vunpack.c.l.b16 %v2679
    %v2847 = vunpack.c.h.b16 %v2679
    %v2848 = vunpack.c.l.b16 %v2680
    %v2849 = vunpack.c.h.b16 %v2680
    %v2850 = vunpack.c.l.b16 %v2681
    %v2851 = vunpack.c.h.b16 %v2681
    %v2852 = vunpack.c.l.b16 %v2682
    %v2853 = vunpack.c.h.b16 %v2682
    %v2854 = vunpack.c.l.b16 %v2683
    %v2855 = vunpack.c.h.b16 %v2683
    %v2856 = vunpack.c.l.b16 %v2684
    %v2857 = vunpack.c.h.b16 %v2684
    %v2858 = vunpack.c.l.b16 %v2685
    %v2859 = vunpack.c.h.b16 %v2685
    %v2860 = vunpack.c.l.b16 %v2686
    %v2861 = vunpack.c.h.b16 %v2686
    %v2862 = vunpack.c.l.b16 %v2687
    %v2863 = vunpack.c.h.b16 %v2687
    %v2864 = vunpack.c.l.b16 %v2688
    %v2865 = vunpack.c.h.b16 %v2688
    %v2866 = vunpack.c.l.b16 %v2689
    %v2867 = vunpack.c.h.b16 %v2689
    %v2868 = vunpack.c.l.b16 %v2690
    %v2869 = vunpack.c.h.b16 %v2690
    %v2870 = vunpack.c.l.b16 %v2691
    %v2871 = vunpack.c.h.b16 %v2691
    %v2872 = vunpack.c.l.b16 %v2692
    %v2873 = vunpack.c.h.b16 %v2692
    %v2874 = vunpack.c.l.b16 %v2693
    %v2875 = vunpack.c.h.b16 %v2693
    %v2876 = vunpack.c.l.b16 %v2694
    %v2877 = vunpack.c.h.b16 %v2694
    %v2878 = vunpack.c.l.b16 %v2695
    %v2879 = vunpack.c.h.b16 %v2695
    %v2880 = vunpack.c.l.b16 %v2696
    %v2881 = vunpack.c.h.b16 %v2696
    %v2882 = vunpack.c.l.b16 %v2697
    %v2883 = vunpack.c.h.b16 %v2697
    %v2884 = vunpack.c.l.b16 %v2698
    %v2885 = vunpack.c.h.b16 %v2698
    %v2886 = vunpack.c.l.b16 %v2699
    %v2887 = vunpack.c.h.b16 %v2699
    %v2888 = vunpack.c.l.b16 %v2700
    %v2889 = vunpack.c.h.b16 %v2700
    %v2890 = vunpack.c.l.b16 %v2701
    %v2891 = vunpack.c.h.b16 %v2701
    %v2892 = vunpack.c.l.b16 %v2702
    %v2893 = vunpack.c.h.b16 %v2702
    %v2894 = vunpack.c.l.b16 %v2703
    %v2895 = vunpack.c.h.b16 %v2703
    %v2896 = vunpack.c.l.b16 %v2704
    %v2897 = vunpack.c.h.b16 %v2704
    %v2898 = vunpack.c.l.b16 %v2705
    %v2899 = vunpack.c.h.b16 %v2705
    %v2900 = vunpack.c.l.b16 %v2706
    %v2901 = vunpack.c.h.b16 %v2706
    %v2902 = vunpack.c.l.b16 %v2707
    %v2903 = vunpack.c.h.b16 %v2707
    %v2904 = vpack.c.b16 %v2780, %v2776
    %v2905 = vpack.c.b16 %v2781, %v2777
    %v2906 = vpack.c.b16 %v2782, %v2778
    %v2907 = vpack.c.b16 %v2783, %v2779
    %v2908 = vpack.c.b16 %v2788, %v2784
    %v2909 = vpack.c.b16 %v2789, %v2785
    %v2910 = vpack.c.b16 %v2790, %v2786
    %v2911 = vpack.c.b16 %v2791, %v2787
    %v2912 = vpack.c.b16 %v2796, %v2792
    %v2913 = vpack.c.b16 %v2797, %v2793
    %v2914 = vpack.c.b16 %v2798, %v2794
    %v2915 = vpack.c.b16 %v2799, %v2795
    %v2916 = vpack.c.b16 %v2804, %v2800
    %v2917 = vpack.c.b16 %v2805, %v2801
    %v2918 = vpack.c.b16 %v2806, %v2802
    %v2919 = vpack.c.b16 %v2807, %v2803
    %v2920 = vpack.c.b16 %v2812, %v2808
    %v2921 = vpack.c.b16 %v2813, %v2809
    %v2922 = vpack.c.b16 %v2814, %v2810
    %v2923 = vpack.c.b16 %v2815, %v2811
    %v2924 = vpack.c.b16 %v2820, %v2816
    %v2925 = vpack.c.b16 %v2821, %v2817
    %v2926 = vpack.c.b16 %v2822, %v2818
    %v2927 = vpack.c.b16 %v2823, %v2819
    %v2928 = vpack.c.b16 %v2828, %v2824
    %v2929 = vpack.c.b16 %v2829, %v2825
    %v2930 = vpack.c.b16 %v2830, %v2826
    %v2931 = vpack.c.b16 %v2831, %v2827
    %v2932 = vpack.c.b16 %v2836, %v2832
    %v2933 = vpack.c.b16 %v2837, %v2833
    %v2934 = vpack.c.b16 %v2838, %v2834
    %v2935 = vpack.c.b16 %v2839, %v2835
    %v2936 = vpack.c.b16 %v2844, %v2840
    %v2937 = vpack.c.b16 %v2845, %v2841
    %v2938 = vpack.c.b16 %v2846, %v2842
    %v2939 = vpack.c.b16 %v2847, %v2843
    %v2940 = vpack.c.b16 %v2852, %v2848
    %v2941 = vpack.c.b16 %v2853, %v2849
    %v2942 = vpack.c.b16 %v2854, %v2850
    %v2943 = vpack.c.b16 %v2855, %v2851
    %v2944 = vpack.c.b16 %v2860, %v2856
    %v2945 = vpack.c.b16 %v2861, %v2857
    %v2946 = vpack.c.b16 %v2862, %v2858
    %v2947 = vpack.c.b16 %v2863, %v2859
    %v2948 = vpack.c.b16 %v2868, %v2864
    %v2949 = vpack.c.b16 %v2869, %v2865
    %v2950 = vpack.c.b16 %v2870, %v2866
    %v2951 = vpack.c.b16 %v2871, %v2867
    %v2952 = vpack.c.b16 %v2876, %v2872
    %v2953 = vpack.c.b16 %v2877, %v2873
    %v2954 = vpack.c.b16 %v2878, %v2874
    %v2955 = vpack.c.b16 %v2879, %v2875
    %v2956 = vpack.c.b16 %v2884, %v2880
    %v2957 = vpack.c.b16 %v2885, %v2881
    %v2958 = vpack.c.b16 %v2886, %v2882
    %v2959 = vpack.c.b16 %v2887, %v2883
    %v2960 = vpack.c.b16 %v2892, %v2888
    %v2961 = vpack.c.b16 %v2893, %v2889
    %v2962 = vpack.c.b16 %v2894, %v2890
    %v2963 = vpack.c.b16 %v2895, %v2891
    %v2964 = vpack.c.b16 %v2900, %v2896
    %v2965 = vpack.c.b16 %v2901, %v2897
    %v2966 = vpack.c.b16 %v2902, %v2898
    %v2967 = vpack.c.b16 %v2903, %v2899
    %3032 = vmatprep.subr.bf16.mxu0 %v2933
    %3033 = vmatpush1.bf16.msra.mxu0 %v2932
    %3034 = vmatprep.subr.bf16.mxu0 %v2929
    %3035 = vmatpush1.bf16.msra.mxu0 %v2928
    %3036 = vmatprep.subr.bf16.mxu0 %v2925
    %3037 = vmatpush1.bf16.msra.mxu0 %v2924
    %3038 = vmatprep.subr.bf16.mxu0 %v2921
    %3039 = vmatpush1.bf16.msra.mxu0 %v2920
    %3040 = vmatprep.subr.bf16.mxu0 %v2917
    %3041 = vmatpush1.bf16.msra.mxu0 %v2916
    %3042 = vmatprep.subr.bf16.mxu0 %v2913
    %3043 = vmatpush1.bf16.msra.mxu0 %v2912
    %3044 = vmatprep.subr.bf16.mxu0 %v2909
    %3045 = vmatpush1.bf16.msra.mxu0 %v2908
    %3046 = vmatprep.subr.bf16.mxu0 %v2905
    %3047 = vmatpush1.bf16.msra.mxu0 %v2904
    %3048 = vmatprep.subr.bf16.mxu0 %v2965
    %3049 = vmatpush2.bf16.msra.mxu0 %v2964
    %3050 = vmatprep.subr.bf16.mxu0 %v2961
    %3051 = vmatpush2.bf16.msra.mxu0 %v2960
    %3052 = vmatprep.subr.bf16.mxu0 %v2957
    %3053 = vmatpush2.bf16.msra.mxu0 %v2956
    %3054 = vmatprep.subr.bf16.mxu0 %v2953
    %3055 = vmatpush2.bf16.msra.mxu0 %v2952
    %3056 = vmatprep.subr.bf16.mxu0 %v2949
    %3057 = vmatpush2.bf16.msra.mxu0 %v2948
    %3058 = vmatprep.subr.bf16.mxu0 %v2945
    %3059 = vmatpush2.bf16.msra.mxu0 %v2944
    %3060 = vmatprep.subr.bf16.mxu0 %v2941
    %3061 = vmatpush2.bf16.msra.mxu0 %v2940
    %3062 = vmatprep.subr.bf16.mxu0 %v2937
    %3063 = vmatpush2.bf16.msra.mxu0 %v2936
    %3064 = vmatprep.mubr.bf16.mxu0 %v1557
    %3065 = vmatmul.mubr.bf16.gmra.mxu0 %v1556
    %v3066 = vpop.f32.mrf.mxu0
    %v3067 = vadd.f32 0.0, %v3066
    %v3068 = vpop.f32.mrf.mxu0
    %v3069 = vadd.f32 0.0, %v3068
    %v3070 = vpop.f32.mrf.mxu0
    %v3071 = vadd.f32 0.0, %v3070
    %v3072 = vpop.f32.mrf.mxu0
    %v3073 = vadd.f32 0.0, %v3072
    %3074 = vmatprep.mubr.bf16.mxu0 %v1559
    %3075 = vmatmul.mubr.bf16.gmra.mxu0 %v1558
    %v3076 = vpop.f32.mrf.mxu0
    %v3077 = vadd.f32 0.0, %v3076
    %v3078 = vpop.f32.mrf.mxu0
    %v3079 = vadd.f32 0.0, %v3078
    %v3080 = vpop.f32.mrf.mxu0
    %v3081 = vadd.f32 0.0, %v3080
    %v3082 = vpop.f32.mrf.mxu0
    %v3083 = vadd.f32 0.0, %v3082
    %3084 = vmatprep.mubr.bf16.mxu0 %v1561
    %3085 = vmatmul.mubr.bf16.gmra.mxu0 %v1560
    %v3086 = vpop.f32.mrf.mxu0
    %v3087 = vadd.f32 0.0, %v3086
    %v3088 = vpop.f32.mrf.mxu0
    %v3089 = vadd.f32 0.0, %v3088
    %v3090 = vpop.f32.mrf.mxu0
    %v3091 = vadd.f32 0.0, %v3090
    %v3092 = vpop.f32.mrf.mxu0
    %v3093 = vadd.f32 0.0, %v3092
    %3094 = vmatprep.mubr.bf16.mxu0 %v2709
    %3095 = vmatmul.mubr.bf16.gmra.mxu0 %v2708
    %v3096 = vpop.f32.mrf.mxu0
    %v3097 = vadd.f32 0.0, %v3096
    %v3098 = vpop.f32.mrf.mxu0
    %v3099 = vadd.f32 0.0, %v3098
    %v3100 = vpop.f32.mrf.mxu0
    %v3101 = vadd.f32 0.0, %v3100
    %v3102 = vpop.f32.mrf.mxu0
    %v3103 = vadd.f32 0.0, %v3102
    %3104 = vdwg.mxu0
    %3105 = vmatprep.subr.bf16.mxu0 %v2935
    %3106 = vmatpush1.bf16.msra.mxu0 %v2934
    %3107 = vmatprep.subr.bf16.mxu0 %v2931
    %3108 = vmatpush1.bf16.msra.mxu0 %v2930
    %3109 = vmatprep.subr.bf16.mxu0 %v2927
    %3110 = vmatpush1.bf16.msra.mxu0 %v2926
    %3111 = vmatprep.subr.bf16.mxu0 %v2923
    %3112 = vmatpush1.bf16.msra.mxu0 %v2922
    %3113 = vmatprep.subr.bf16.mxu0 %v2919
    %3114 = vmatpush1.bf16.msra.mxu0 %v2918
    %3115 = vmatprep.subr.bf16.mxu0 %v2915
    %3116 = vmatpush1.bf16.msra.mxu0 %v2914
    %3117 = vmatprep.subr.bf16.mxu0 %v2911
    %3118 = vmatpush1.bf16.msra.mxu0 %v2910
    %3119 = vmatprep.subr.bf16.mxu0 %v2907
    %3120 = vmatpush1.bf16.msra.mxu0 %v2906
    %3121 = vmatprep.subr.bf16.mxu0 %v2967
    %3122 = vmatpush2.bf16.msra.mxu0 %v2966
    %3123 = vmatprep.subr.bf16.mxu0 %v2963
    %3124 = vmatpush2.bf16.msra.mxu0 %v2962
    %3125 = vmatprep.subr.bf16.mxu0 %v2959
    %3126 = vmatpush2.bf16.msra.mxu0 %v2958
    %3127 = vmatprep.subr.bf16.mxu0 %v2955
    %3128 = vmatpush2.bf16.msra.mxu0 %v2954
    %3129 = vmatprep.subr.bf16.mxu0 %v2951
    %3130 = vmatpush2.bf16.msra.mxu0 %v2950
    %3131 = vmatprep.subr.bf16.mxu0 %v2947
    %3132 = vmatpush2.bf16.msra.mxu0 %v2946
    %3133 = vmatprep.subr.bf16.mxu0 %v2943
    %3134 = vmatpush2.bf16.msra.mxu0 %v2942
    %3135 = vmatprep.subr.bf16.mxu0 %v2939
    %3136 = vmatpush2.bf16.msra.mxu0 %v2938
    %3137 = vmatprep.mubr.bf16.mxu0 %v1557
    %3138 = vmatmul.mubr.bf16.gmra.mxu0 %v1556
    %v3139 = vpop.f32.mrf.mxu0
    %v3140 = vadd.f32 0.0, %v3139
    %v3141 = vpop.f32.mrf.mxu0
    %v3142 = vadd.f32 0.0, %v3141
    %v3143 = vpop.f32.mrf.mxu0
    %v3144 = vadd.f32 0.0, %v3143
    %v3145 = vpop.f32.mrf.mxu0
    %v3146 = vadd.f32 0.0, %v3145
    %3147 = vmatprep.mubr.bf16.mxu0 %v1559
    %3148 = vmatmul.mubr.bf16.gmra.mxu0 %v1558
    %v3149 = vpop.f32.mrf.mxu0
    %v3150 = vadd.f32 0.0, %v3149
    %v3151 = vpop.f32.mrf.mxu0
    %v3152 = vadd.f32 0.0, %v3151
    %v3153 = vpop.f32.mrf.mxu0
    %v3154 = vadd.f32 0.0, %v3153
    %v3155 = vpop.f32.mrf.mxu0
    %v3156 = vadd.f32 0.0, %v3155
    %3157 = vmatprep.mubr.bf16.mxu0 %v1561
    %3158 = vmatmul.mubr.bf16.gmra.mxu0 %v1560
    %v3159 = vpop.f32.mrf.mxu0
    %v3160 = vadd.f32 0.0, %v3159
    %v3161 = vpop.f32.mrf.mxu0
    %v3162 = vadd.f32 0.0, %v3161
    %v3163 = vpop.f32.mrf.mxu0
    %v3164 = vadd.f32 0.0, %v3163
    %v3165 = vpop.f32.mrf.mxu0
    %v3166 = vadd.f32 0.0, %v3165
    %3167 = vmatprep.mubr.bf16.mxu0 %v2709
    %3168 = vmatmul.mubr.bf16.gmra.mxu0 %v2708
    %v3169 = vpop.f32.mrf.mxu0
    %v3170 = vadd.f32 0.0, %v3169
    %v3171 = vpop.f32.mrf.mxu0
    %v3172 = vadd.f32 0.0, %v3171
    %v3173 = vpop.f32.mrf.mxu0
    %v3174 = vadd.f32 0.0, %v3173
    %v3175 = vpop.f32.mrf.mxu0
    %v3176 = vadd.f32 0.0, %v3175
    %3177 = vdwg.mxu0
    %v3178 = vadd.f32 %v2607, %v3067
    %v3179 = vadd.f32 %v2608, %v3069
    %v3180 = vadd.f32 %v2609, %v3140
    %v3181 = vadd.f32 %v2610, %v3142
    %v3182 = vadd.f32 %v2611, %v3071
    %v3183 = vadd.f32 %v2612, %v3073
    %v3184 = vadd.f32 %v2613, %v3144
    %v3185 = vadd.f32 %v2614, %v3146
    %v3186 = vadd.f32 %v2615, %v3077
    %v3187 = vadd.f32 %v2616, %v3079
    %v3188 = vadd.f32 %v2617, %v3150
    %v3189 = vadd.f32 %v2618, %v3152
    %v3190 = vadd.f32 %v2619, %v3081
    %v3191 = vadd.f32 %v2620, %v3083
    %v3192 = vadd.f32 %v2621, %v3154
    %v3193 = vadd.f32 %v2622, %v3156
    %v3194 = vadd.f32 %v2623, %v3087
    %v3195 = vadd.f32 %v2624, %v3089
    %v3196 = vadd.f32 %v2625, %v3160
    %v3197 = vadd.f32 %v2626, %v3162
    %v3198 = vadd.f32 %v2627, %v3091
    %v3199 = vadd.f32 %v2628, %v3093
    %v3200 = vadd.f32 %v2629, %v3164
    %v3201 = vadd.f32 %v2630, %v3166
    %v3202 = vadd.f32 %v2631, %v3097
    %v3203 = vadd.f32 %v2632, %v3099
    %v3204 = vadd.f32 %v2633, %v3170
    %v3205 = vadd.f32 %v2634, %v3172
    %v3206 = vadd.f32 %v2635, %v3101
    %v3207 = vadd.f32 %v2636, %v3103
    %v3208 = vadd.f32 %v2637, %v3174
    %v3209 = vadd.f32 %v2638, %v3176
    %v3212 = vunpack.c.l.b16 %v851
    %v3213 = vunpack.c.l.b16 %v852
    %s3214 = scalar_lea.vmem %s3, 2048
    %v3215 = vld [vmem:[%s3214] sm:$0xff]
    %v3216 = vld [vmem:[%s3214 + $0x8] sm:$0xff]
    %v3217 = vld [vmem:[%s3214 + $0x10] sm:$0xff]
    %v3218 = vld [vmem:[%s3214 + $0x18] sm:$0xff]
    %v3219 = vld [vmem:[%s3214 + $0x20] sm:$0xff]
    %v3220 = vld [vmem:[%s3214 + $0x28] sm:$0xff]
    %v3221 = vld [vmem:[%s3214 + $0x30] sm:$0xff]
    %v3222 = vld [vmem:[%s3214 + $0x38] sm:$0xff]
    %v3223 = vld [vmem:[%s3214 + $0x40] sm:$0xff]
    %v3224 = vld [vmem:[%s3214 + $0x48] sm:$0xff]
    %v3225 = vld [vmem:[%s3214 + $0x50] sm:$0xff]
    %v3226 = vld [vmem:[%s3214 + $0x58] sm:$0xff]
    %v3227 = vld [vmem:[%s3214 + $0x60] sm:$0xff]
    %v3228 = vld [vmem:[%s3214 + $0x68] sm:$0xff]
    %v3229 = vld [vmem:[%s3214 + $0x70] sm:$0xff]
    %v3230 = vld [vmem:[%s3214 + $0x78] sm:$0xff]
    %v3231 = vld [vmem:[%s3214 + $0x80] sm:$0xff]
    %v3232 = vld [vmem:[%s3214 + $0x88] sm:$0xff]
    %v3233 = vld [vmem:[%s3214 + $0x90] sm:$0xff]
    %v3234 = vld [vmem:[%s3214 + $0x98] sm:$0xff]
    %v3235 = vld [vmem:[%s3214 + $0xa0] sm:$0xff]
    %v3236 = vld [vmem:[%s3214 + $0xa8] sm:$0xff]
    %v3237 = vld [vmem:[%s3214 + $0xb0] sm:$0xff]
    %v3238 = vld [vmem:[%s3214 + $0xb8] sm:$0xff]
    %v3239 = vld [vmem:[%s3214 + $0xc0] sm:$0xff]
    %v3240 = vld [vmem:[%s3214 + $0xc8] sm:$0xff]
    %v3241 = vld [vmem:[%s3214 + $0xd0] sm:$0xff]
    %v3242 = vld [vmem:[%s3214 + $0xd8] sm:$0xff]
    %v3243 = vld [vmem:[%s3214 + $0xe0] sm:$0xff]
    %v3244 = vld [vmem:[%s3214 + $0xe8] sm:$0xff]
    %v3245 = vld [vmem:[%s3214 + $0xf0] sm:$0xff]
    %v3246 = vld [vmem:[%s3214 + $0xf8] sm:$0xff]
    %v3247 = vld [vmem:[%s3214 + $0x100] sm:$0xff]
    %v3248 = vld [vmem:[%s3214 + $0x108] sm:$0xff]
    %v3249 = vld [vmem:[%s3214 + $0x110] sm:$0xff]
    %v3250 = vld [vmem:[%s3214 + $0x118] sm:$0xff]
    %v3251 = vld [vmem:[%s3214 + $0x120] sm:$0xff]
    %v3252 = vld [vmem:[%s3214 + $0x128] sm:$0xff]
    %v3253 = vld [vmem:[%s3214 + $0x130] sm:$0xff]
    %v3254 = vld [vmem:[%s3214 + $0x138] sm:$0xff]
    %v3255 = vld [vmem:[%s3214 + $0x140] sm:$0xff]
    %v3256 = vld [vmem:[%s3214 + $0x148] sm:$0xff]
    %v3257 = vld [vmem:[%s3214 + $0x150] sm:$0xff]
    %v3258 = vld [vmem:[%s3214 + $0x158] sm:$0xff]
    %v3259 = vld [vmem:[%s3214 + $0x160] sm:$0xff]
    %v3260 = vld [vmem:[%s3214 + $0x168] sm:$0xff]
    %v3261 = vld [vmem:[%s3214 + $0x170] sm:$0xff]
    %v3262 = vld [vmem:[%s3214 + $0x178] sm:$0xff]
    %v3263 = vld [vmem:[%s3214 + $0x180] sm:$0xff]
    %v3264 = vld [vmem:[%s3214 + $0x188] sm:$0xff]
    %v3265 = vld [vmem:[%s3214 + $0x190] sm:$0xff]
    %v3266 = vld [vmem:[%s3214 + $0x198] sm:$0xff]
    %v3267 = vld [vmem:[%s3214 + $0x1a0] sm:$0xff]
    %v3268 = vld [vmem:[%s3214 + $0x1a8] sm:$0xff]
    %v3269 = vld [vmem:[%s3214 + $0x1b0] sm:$0xff]
    %v3270 = vld [vmem:[%s3214 + $0x1b8] sm:$0xff]
    %v3271 = vld [vmem:[%s3214 + $0x1c0] sm:$0xff]
    %v3272 = vld [vmem:[%s3214 + $0x1c8] sm:$0xff]
    %v3273 = vld [vmem:[%s3214 + $0x1d0] sm:$0xff]
    %v3274 = vld [vmem:[%s3214 + $0x1d8] sm:$0xff]
    %v3275 = vld [vmem:[%s3214 + $0x1e0] sm:$0xff]
    %v3276 = vld [vmem:[%s3214 + $0x1e8] sm:$0xff]
    %v3277 = vld [vmem:[%s3214 + $0x1f0] sm:$0xff]
    %v3278 = vld [vmem:[%s3214 + $0x1f8] sm:$0xff]
    %v3279 = vpack.c.b16 %v3212, %v2641
    %v3280 = vpack.c.b16 %v3213, %v2642
    %v3347 = vunpack.c.l.b16 %v3215
    %v3348 = vunpack.c.h.b16 %v3215
    %v3349 = vunpack.c.l.b16 %v3216
    %v3350 = vunpack.c.h.b16 %v3216
    %v3351 = vunpack.c.l.b16 %v3217
    %v3352 = vunpack.c.h.b16 %v3217
    %v3353 = vunpack.c.l.b16 %v3218
    %v3354 = vunpack.c.h.b16 %v3218
    %v3355 = vunpack.c.l.b16 %v3219
    %v3356 = vunpack.c.h.b16 %v3219
    %v3357 = vunpack.c.l.b16 %v3220
    %v3358 = vunpack.c.h.b16 %v3220
    %v3359 = vunpack.c.l.b16 %v3221
    %v3360 = vunpack.c.h.b16 %v3221
    %v3361 = vunpack.c.l.b16 %v3222
    %v3362 = vunpack.c.h.b16 %v3222
    %v3363 = vunpack.c.l.b16 %v3223
    %v3364 = vunpack.c.h.b16 %v3223
    %v3365 = vunpack.c.l.b16 %v3224
    %v3366 = vunpack.c.h.b16 %v3224
    %v3367 = vunpack.c.l.b16 %v3225
    %v3368 = vunpack.c.h.b16 %v3225
    %v3369 = vunpack.c.l.b16 %v3226
    %v3370 = vunpack.c.h.b16 %v3226
    %v3371 = vunpack.c.l.b16 %v3227
    %v3372 = vunpack.c.h.b16 %v3227
    %v3373 = vunpack.c.l.b16 %v3228
    %v3374 = vunpack.c.h.b16 %v3228
    %v3375 = vunpack.c.l.b16 %v3229
    %v3376 = vunpack.c.h.b16 %v3229
    %v3377 = vunpack.c.l.b16 %v3230
    %v3378 = vunpack.c.h.b16 %v3230
    %v3379 = vunpack.c.l.b16 %v3231
    %v3380 = vunpack.c.h.b16 %v3231
    %v3381 = vunpack.c.l.b16 %v3232
    %v3382 = vunpack.c.h.b16 %v3232
    %v3383 = vunpack.c.l.b16 %v3233
    %v3384 = vunpack.c.h.b16 %v3233
    %v3385 = vunpack.c.l.b16 %v3234
    %v3386 = vunpack.c.h.b16 %v3234
    %v3387 = vunpack.c.l.b16 %v3235
    %v3388 = vunpack.c.h.b16 %v3235
    %v3389 = vunpack.c.l.b16 %v3236
    %v3390 = vunpack.c.h.b16 %v3236
    %v3391 = vunpack.c.l.b16 %v3237
    %v3392 = vunpack.c.h.b16 %v3237
    %v3393 = vunpack.c.l.b16 %v3238
    %v3394 = vunpack.c.h.b16 %v3238
    %v3395 = vunpack.c.l.b16 %v3239
    %v3396 = vunpack.c.h.b16 %v3239
    %v3397 = vunpack.c.l.b16 %v3240
    %v3398 = vunpack.c.h.b16 %v3240
    %v3399 = vunpack.c.l.b16 %v3241
    %v3400 = vunpack.c.h.b16 %v3241
    %v3401 = vunpack.c.l.b16 %v3242
    %v3402 = vunpack.c.h.b16 %v3242
    %v3403 = vunpack.c.l.b16 %v3243
    %v3404 = vunpack.c.h.b16 %v3243
    %v3405 = vunpack.c.l.b16 %v3244
    %v3406 = vunpack.c.h.b16 %v3244
    %v3407 = vunpack.c.l.b16 %v3245
    %v3408 = vunpack.c.h.b16 %v3245
    %v3409 = vunpack.c.l.b16 %v3246
    %v3410 = vunpack.c.h.b16 %v3246
    %v3411 = vunpack.c.l.b16 %v3247
    %v3412 = vunpack.c.h.b16 %v3247
    %v3413 = vunpack.c.l.b16 %v3248
    %v3414 = vunpack.c.h.b16 %v3248
    %v3415 = vunpack.c.l.b16 %v3249
    %v3416 = vunpack.c.h.b16 %v3249
    %v3417 = vunpack.c.l.b16 %v3250
    %v3418 = vunpack.c.h.b16 %v3250
    %v3419 = vunpack.c.l.b16 %v3251
    %v3420 = vunpack.c.h.b16 %v3251
    %v3421 = vunpack.c.l.b16 %v3252
    %v3422 = vunpack.c.h.b16 %v3252
    %v3423 = vunpack.c.l.b16 %v3253
    %v3424 = vunpack.c.h.b16 %v3253
    %v3425 = vunpack.c.l.b16 %v3254
    %v3426 = vunpack.c.h.b16 %v3254
    %v3427 = vunpack.c.l.b16 %v3255
    %v3428 = vunpack.c.h.b16 %v3255
    %v3429 = vunpack.c.l.b16 %v3256
    %v3430 = vunpack.c.h.b16 %v3256
    %v3431 = vunpack.c.l.b16 %v3257
    %v3432 = vunpack.c.h.b16 %v3257
    %v3433 = vunpack.c.l.b16 %v3258
    %v3434 = vunpack.c.h.b16 %v3258
    %v3435 = vunpack.c.l.b16 %v3259
    %v3436 = vunpack.c.h.b16 %v3259
    %v3437 = vunpack.c.l.b16 %v3260
    %v3438 = vunpack.c.h.b16 %v3260
    %v3439 = vunpack.c.l.b16 %v3261
    %v3440 = vunpack.c.h.b16 %v3261
    %v3441 = vunpack.c.l.b16 %v3262
    %v3442 = vunpack.c.h.b16 %v3262
    %v3443 = vunpack.c.l.b16 %v3263
    %v3444 = vunpack.c.h.b16 %v3263
    %v3445 = vunpack.c.l.b16 %v3264
    %v3446 = vunpack.c.h.b16 %v3264
    %v3447 = vunpack.c.l.b16 %v3265
    %v3448 = vunpack.c.h.b16 %v3265
    %v3449 = vunpack.c.l.b16 %v3266
    %v3450 = vunpack.c.h.b16 %v3266
    %v3451 = vunpack.c.l.b16 %v3267
    %v3452 = vunpack.c.h.b16 %v3267
    %v3453 = vunpack.c.l.b16 %v3268
    %v3454 = vunpack.c.h.b16 %v3268
    %v3455 = vunpack.c.l.b16 %v3269
    %v3456 = vunpack.c.h.b16 %v3269
    %v3457 = vunpack.c.l.b16 %v3270
    %v3458 = vunpack.c.h.b16 %v3270
    %v3459 = vunpack.c.l.b16 %v3271
    %v3460 = vunpack.c.h.b16 %v3271
    %v3461 = vunpack.c.l.b16 %v3272
    %v3462 = vunpack.c.h.b16 %v3272
    %v3463 = vunpack.c.l.b16 %v3273
    %v3464 = vunpack.c.h.b16 %v3273
    %v3465 = vunpack.c.l.b16 %v3274
    %v3466 = vunpack.c.h.b16 %v3274
    %v3467 = vunpack.c.l.b16 %v3275
    %v3468 = vunpack.c.h.b16 %v3275
    %v3469 = vunpack.c.l.b16 %v3276
    %v3470 = vunpack.c.h.b16 %v3276
    %v3471 = vunpack.c.l.b16 %v3277
    %v3472 = vunpack.c.h.b16 %v3277
    %v3473 = vunpack.c.l.b16 %v3278
    %v3474 = vunpack.c.h.b16 %v3278
    %v3475 = vpack.c.b16 %v3351, %v3347
    %v3476 = vpack.c.b16 %v3352, %v3348
    %v3477 = vpack.c.b16 %v3353, %v3349
    %v3478 = vpack.c.b16 %v3354, %v3350
    %v3479 = vpack.c.b16 %v3359, %v3355
    %v3480 = vpack.c.b16 %v3360, %v3356
    %v3481 = vpack.c.b16 %v3361, %v3357
    %v3482 = vpack.c.b16 %v3362, %v3358
    %v3483 = vpack.c.b16 %v3367, %v3363
    %v3484 = vpack.c.b16 %v3368, %v3364
    %v3485 = vpack.c.b16 %v3369, %v3365
    %v3486 = vpack.c.b16 %v3370, %v3366
    %v3487 = vpack.c.b16 %v3375, %v3371
    %v3488 = vpack.c.b16 %v3376, %v3372
    %v3489 = vpack.c.b16 %v3377, %v3373
    %v3490 = vpack.c.b16 %v3378, %v3374
    %v3491 = vpack.c.b16 %v3383, %v3379
    %v3492 = vpack.c.b16 %v3384, %v3380
    %v3493 = vpack.c.b16 %v3385, %v3381
    %v3494 = vpack.c.b16 %v3386, %v3382
    %v3495 = vpack.c.b16 %v3391, %v3387
    %v3496 = vpack.c.b16 %v3392, %v3388
    %v3497 = vpack.c.b16 %v3393, %v3389
    %v3498 = vpack.c.b16 %v3394, %v3390
    %v3499 = vpack.c.b16 %v3399, %v3395
    %v3500 = vpack.c.b16 %v3400, %v3396
    %v3501 = vpack.c.b16 %v3401, %v3397
    %v3502 = vpack.c.b16 %v3402, %v3398
    %v3503 = vpack.c.b16 %v3407, %v3403
    %v3504 = vpack.c.b16 %v3408, %v3404
    %v3505 = vpack.c.b16 %v3409, %v3405
    %v3506 = vpack.c.b16 %v3410, %v3406
    %v3507 = vpack.c.b16 %v3415, %v3411
    %v3508 = vpack.c.b16 %v3416, %v3412
    %v3509 = vpack.c.b16 %v3417, %v3413
    %v3510 = vpack.c.b16 %v3418, %v3414
    %v3511 = vpack.c.b16 %v3423, %v3419
    %v3512 = vpack.c.b16 %v3424, %v3420
    %v3513 = vpack.c.b16 %v3425, %v3421
    %v3514 = vpack.c.b16 %v3426, %v3422
    %v3515 = vpack.c.b16 %v3431, %v3427
    %v3516 = vpack.c.b16 %v3432, %v3428
    %v3517 = vpack.c.b16 %v3433, %v3429
    %v3518 = vpack.c.b16 %v3434, %v3430
    %v3519 = vpack.c.b16 %v3439, %v3435
    %v3520 = vpack.c.b16 %v3440, %v3436
    %v3521 = vpack.c.b16 %v3441, %v3437
    %v3522 = vpack.c.b16 %v3442, %v3438
    %v3523 = vpack.c.b16 %v3447, %v3443
    %v3524 = vpack.c.b16 %v3448, %v3444
    %v3525 = vpack.c.b16 %v3449, %v3445
    %v3526 = vpack.c.b16 %v3450, %v3446
    %v3527 = vpack.c.b16 %v3455, %v3451
    %v3528 = vpack.c.b16 %v3456, %v3452
    %v3529 = vpack.c.b16 %v3457, %v3453
    %v3530 = vpack.c.b16 %v3458, %v3454
    %v3531 = vpack.c.b16 %v3463, %v3459
    %v3532 = vpack.c.b16 %v3464, %v3460
    %v3533 = vpack.c.b16 %v3465, %v3461
    %v3534 = vpack.c.b16 %v3466, %v3462
    %v3535 = vpack.c.b16 %v3471, %v3467
    %v3536 = vpack.c.b16 %v3472, %v3468
    %v3537 = vpack.c.b16 %v3473, %v3469
    %v3538 = vpack.c.b16 %v3474, %v3470
    %3603 = vmatprep.subr.bf16.mxu0 %v3504
    %3604 = vmatpush1.bf16.msra.mxu0 %v3503
    %3605 = vmatprep.subr.bf16.mxu0 %v3500
    %3606 = vmatpush1.bf16.msra.mxu0 %v3499
    %3607 = vmatprep.subr.bf16.mxu0 %v3496
    %3608 = vmatpush1.bf16.msra.mxu0 %v3495
    %3609 = vmatprep.subr.bf16.mxu0 %v3492
    %3610 = vmatpush1.bf16.msra.mxu0 %v3491
    %3611 = vmatprep.subr.bf16.mxu0 %v3488
    %3612 = vmatpush1.bf16.msra.mxu0 %v3487
    %3613 = vmatprep.subr.bf16.mxu0 %v3484
    %3614 = vmatpush1.bf16.msra.mxu0 %v3483
    %3615 = vmatprep.subr.bf16.mxu0 %v3480
    %3616 = vmatpush1.bf16.msra.mxu0 %v3479
    %3617 = vmatprep.subr.bf16.mxu0 %v3476
    %3618 = vmatpush1.bf16.msra.mxu0 %v3475
    %3619 = vmatprep.subr.bf16.mxu0 %v3536
    %3620 = vmatpush2.bf16.msra.mxu0 %v3535
    %3621 = vmatprep.subr.bf16.mxu0 %v3532
    %3622 = vmatpush2.bf16.msra.mxu0 %v3531
    %3623 = vmatprep.subr.bf16.mxu0 %v3528
    %3624 = vmatpush2.bf16.msra.mxu0 %v3527
    %3625 = vmatprep.subr.bf16.mxu0 %v3524
    %3626 = vmatpush2.bf16.msra.mxu0 %v3523
    %3627 = vmatprep.subr.bf16.mxu0 %v3520
    %3628 = vmatpush2.bf16.msra.mxu0 %v3519
    %3629 = vmatprep.subr.bf16.mxu0 %v3516
    %3630 = vmatpush2.bf16.msra.mxu0 %v3515
    %3631 = vmatprep.subr.bf16.mxu0 %v3512
    %3632 = vmatpush2.bf16.msra.mxu0 %v3511
    %3633 = vmatprep.subr.bf16.mxu0 %v3508
    %3634 = vmatpush2.bf16.msra.mxu0 %v3507
    %3635 = vmatprep.mubr.bf16.mxu0 %v955
    %3636 = vmatmul.mubr.bf16.gmra.mxu0 %v954
    %v3637 = vpop.f32.mrf.mxu0
    %v3638 = vadd.f32 0.0, %v3637
    %v3639 = vpop.f32.mrf.mxu0
    %v3640 = vadd.f32 0.0, %v3639
    %v3641 = vpop.f32.mrf.mxu0
    %v3642 = vadd.f32 0.0, %v3641
    %v3643 = vpop.f32.mrf.mxu0
    %v3644 = vadd.f32 0.0, %v3643
    %3645 = vmatprep.mubr.bf16.mxu0 %v957
    %3646 = vmatmul.mubr.bf16.gmra.mxu0 %v956
    %v3647 = vpop.f32.mrf.mxu0
    %v3648 = vadd.f32 0.0, %v3647
    %v3649 = vpop.f32.mrf.mxu0
    %v3650 = vadd.f32 0.0, %v3649
    %v3651 = vpop.f32.mrf.mxu0
    %v3652 = vadd.f32 0.0, %v3651
    %v3653 = vpop.f32.mrf.mxu0
    %v3654 = vadd.f32 0.0, %v3653
    %3655 = vmatprep.mubr.bf16.mxu0 %v2138
    %3656 = vmatmul.mubr.bf16.gmra.mxu0 %v2137
    %v3657 = vpop.f32.mrf.mxu0
    %v3658 = vadd.f32 0.0, %v3657
    %v3659 = vpop.f32.mrf.mxu0
    %v3660 = vadd.f32 0.0, %v3659
    %v3661 = vpop.f32.mrf.mxu0
    %v3662 = vadd.f32 0.0, %v3661
    %v3663 = vpop.f32.mrf.mxu0
    %v3664 = vadd.f32 0.0, %v3663
    %3665 = vmatprep.mubr.bf16.mxu0 %v3280
    %3666 = vmatmul.mubr.bf16.gmra.mxu0 %v3279
    %v3667 = vpop.f32.mrf.mxu0
    %v3668 = vadd.f32 0.0, %v3667
    %v3669 = vpop.f32.mrf.mxu0
    %v3670 = vadd.f32 0.0, %v3669
    %v3671 = vpop.f32.mrf.mxu0
    %v3672 = vadd.f32 0.0, %v3671
    %v3673 = vpop.f32.mrf.mxu0
    %v3674 = vadd.f32 0.0, %v3673
    %3675 = vdwg.mxu0
    %3676 = vmatprep.subr.bf16.mxu0 %v3506
    %3677 = vmatpush1.bf16.msra.mxu0 %v3505
    %3678 = vmatprep.subr.bf16.mxu0 %v3502
    %3679 = vmatpush1.bf16.msra.mxu0 %v3501
    %3680 = vmatprep.subr.bf16.mxu0 %v3498
    %3681 = vmatpush1.bf16.msra.mxu0 %v3497
    %3682 = vmatprep.subr.bf16.mxu0 %v3494
    %3683 = vmatpush1.bf16.msra.mxu0 %v3493
    %3684 = vmatprep.subr.bf16.mxu0 %v3490
    %3685 = vmatpush1.bf16.msra.mxu0 %v3489
    %3686 = vmatprep.subr.bf16.mxu0 %v3486
    %3687 = vmatpush1.bf16.msra.mxu0 %v3485
    %3688 = vmatprep.subr.bf16.mxu0 %v3482
    %3689 = vmatpush1.bf16.msra.mxu0 %v3481
    %3690 = vmatprep.subr.bf16.mxu0 %v3478
    %3691 = vmatpush1.bf16.msra.mxu0 %v3477
    %3692 = vmatprep.subr.bf16.mxu0 %v3538
    %3693 = vmatpush2.bf16.msra.mxu0 %v3537
    %3694 = vmatprep.subr.bf16.mxu0 %v3534
    %3695 = vmatpush2.bf16.msra.mxu0 %v3533
    %3696 = vmatprep.subr.bf16.mxu0 %v3530
    %3697 = vmatpush2.bf16.msra.mxu0 %v3529
    %3698 = vmatprep.subr.bf16.mxu0 %v3526
    %3699 = vmatpush2.bf16.msra.mxu0 %v3525
    %3700 = vmatprep.subr.bf16.mxu0 %v3522
    %3701 = vmatpush2.bf16.msra.mxu0 %v3521
    %3702 = vmatprep.subr.bf16.mxu0 %v3518
    %3703 = vmatpush2.bf16.msra.mxu0 %v3517
    %3704 = vmatprep.subr.bf16.mxu0 %v3514
    %3705 = vmatpush2.bf16.msra.mxu0 %v3513
    %3706 = vmatprep.subr.bf16.mxu0 %v3510
    %3707 = vmatpush2.bf16.msra.mxu0 %v3509
    %3708 = vmatprep.mubr.bf16.mxu0 %v955
    %3709 = vmatmul.mubr.bf16.gmra.mxu0 %v954
    %v3710 = vpop.f32.mrf.mxu0
    %v3711 = vadd.f32 0.0, %v3710
    %v3712 = vpop.f32.mrf.mxu0
    %v3713 = vadd.f32 0.0, %v3712
    %v3714 = vpop.f32.mrf.mxu0
    %v3715 = vadd.f32 0.0, %v3714
    %v3716 = vpop.f32.mrf.mxu0
    %v3717 = vadd.f32 0.0, %v3716
    %3718 = vmatprep.mubr.bf16.mxu0 %v957
    %3719 = vmatmul.mubr.bf16.gmra.mxu0 %v956
    %v3720 = vpop.f32.mrf.mxu0
    %v3721 = vadd.f32 0.0, %v3720
    %v3722 = vpop.f32.mrf.mxu0
    %v3723 = vadd.f32 0.0, %v3722
    %v3724 = vpop.f32.mrf.mxu0
    %v3725 = vadd.f32 0.0, %v3724
    %v3726 = vpop.f32.mrf.mxu0
    %v3727 = vadd.f32 0.0, %v3726
    %3728 = vmatprep.mubr.bf16.mxu0 %v2138
    %3729 = vmatmul.mubr.bf16.gmra.mxu0 %v2137
    %v3730 = vpop.f32.mrf.mxu0
    %v3731 = vadd.f32 0.0, %v3730
    %v3732 = vpop.f32.mrf.mxu0
    %v3733 = vadd.f32 0.0, %v3732
    %v3734 = vpop.f32.mrf.mxu0
    %v3735 = vadd.f32 0.0, %v3734
    %v3736 = vpop.f32.mrf.mxu0
    %v3737 = vadd.f32 0.0, %v3736
    %3738 = vmatprep.mubr.bf16.mxu0 %v3280
    %3739 = vmatmul.mubr.bf16.gmra.mxu0 %v3279
    %v3740 = vpop.f32.mrf.mxu0
    %v3741 = vadd.f32 0.0, %v3740
    %v3742 = vpop.f32.mrf.mxu0
    %v3743 = vadd.f32 0.0, %v3742
    %v3744 = vpop.f32.mrf.mxu0
    %v3745 = vadd.f32 0.0, %v3744
    %v3746 = vpop.f32.mrf.mxu0
    %v3747 = vadd.f32 0.0, %v3746
    %3748 = vdwg.mxu0
    %v3749 = vadd.f32 %v3178, %v3638
    %v3750 = vadd.f32 %v3179, %v3640
    %v3751 = vadd.f32 %v3180, %v3711
    %v3752 = vadd.f32 %v3181, %v3713
    %v3753 = vadd.f32 %v3182, %v3642
    %v3754 = vadd.f32 %v3183, %v3644
    %v3755 = vadd.f32 %v3184, %v3715
    %v3756 = vadd.f32 %v3185, %v3717
    %v3757 = vadd.f32 %v3186, %v3648
    %v3758 = vadd.f32 %v3187, %v3650
    %v3759 = vadd.f32 %v3188, %v3721
    %v3760 = vadd.f32 %v3189, %v3723
    %v3761 = vadd.f32 %v3190, %v3652
    %v3762 = vadd.f32 %v3191, %v3654
    %v3763 = vadd.f32 %v3192, %v3725
    %v3764 = vadd.f32 %v3193, %v3727
    %v3765 = vadd.f32 %v3194, %v3658
    %v3766 = vadd.f32 %v3195, %v3660
    %v3767 = vadd.f32 %v3196, %v3731
    %v3768 = vadd.f32 %v3197, %v3733
    %v3769 = vadd.f32 %v3198, %v3662
    %v3770 = vadd.f32 %v3199, %v3664
    %v3771 = vadd.f32 %v3200, %v3735
    %v3772 = vadd.f32 %v3201, %v3737
    %v3773 = vadd.f32 %v3202, %v3668
    %v3774 = vadd.f32 %v3203, %v3670
    %v3775 = vadd.f32 %v3204, %v3741
    %v3776 = vadd.f32 %v3205, %v3743
    %v3777 = vadd.f32 %v3206, %v3672
    %v3778 = vadd.f32 %v3207, %v3674
    %v3779 = vadd.f32 %v3208, %v3745
    %v3780 = vadd.f32 %v3209, %v3747
    %v3781 = vmax.f32 %v3749, %v3751
    %v3782 = vmax.f32 %v3750, %v3752
    %v3783 = vmax.f32 %v3753, %v3755
    %v3784 = vmax.f32 %v3754, %v3756
    %v3785 = vmax.f32 %v3757, %v3759
    %v3786 = vmax.f32 %v3758, %v3760
    %v3787 = vmax.f32 %v3761, %v3763
    %v3788 = vmax.f32 %v3762, %v3764
    %v3789 = vmax.f32 %v3765, %v3767
    %v3790 = vmax.f32 %v3766, %v3768
    %v3791 = vmax.f32 %v3769, %v3771
    %v3792 = vmax.f32 %v3770, %v3772
    %v3793 = vmax.f32 %v3773, %v3775
    %v3794 = vmax.f32 %v3774, %v3776
    %v3795 = vmax.f32 %v3777, %v3779
    %v3796 = vmax.f32 %v3778, %v3780
    %v3797 = vmax.f32 %v3781, 0.0
    %v3798 = vmax.f32 %v3782, 0.0
    %v3799 = vmax.f32 %v3783, 0.0
    %v3800 = vmax.f32 %v3784, 0.0
    %v3801 = vmax.f32 %v3785, 0.0
    %v3802 = vmax.f32 %v3786, 0.0
    %v3803 = vmax.f32 %v3787, 0.0
    %v3804 = vmax.f32 %v3788, 0.0
    %v3805 = vmax.f32 %v3789, 0.0
    %v3806 = vmax.f32 %v3790, 0.0
    %v3807 = vmax.f32 %v3791, 0.0
    %v3808 = vmax.f32 %v3792, 0.0
    %v3809 = vmax.f32 %v3793, 0.0
    %v3810 = vmax.f32 %v3794, 0.0
    %v3811 = vmax.f32 %v3795, 0.0
    %v3812 = vmax.f32 %v3796, 0.0
    %v3813 = vmax.f32 %v3797, %v3799
    %v3814 = vmax.f32 %v3798, %v3800
    %v3815 = vmax.f32 %v3801, %v3803
    %v3816 = vmax.f32 %v3802, %v3804
    %v3817 = vmax.f32 %v3805, %v3807
    %v3818 = vmax.f32 %v3806, %v3808
    %v3819 = vmax.f32 %v3809, %v3811
    %v3820 = vmax.f32 %v3810, %v3812
    %v3821 = vpack.c.bf16 %v3813, %v3813
    %v3822 = vpack.c.bf16 %v3814, %v3814
    %v3823 = vpack.c.bf16 %v3815, %v3815
    %v3824 = vpack.c.bf16 %v3816, %v3816
    %v3825 = vpack.c.bf16 %v3817, %v3817
    %v3826 = vpack.c.bf16 %v3818, %v3818
    %v3827 = vpack.c.bf16 %v3819, %v3819
    %v3828 = vpack.c.bf16 %v3820, %v3820
    %v3829 = vld [vmem:[%s6] sm:$0xf]
    %v3830 = vld [vmem:[#allocation2] sm:$0xff]
    %v3831 = vld [vmem:[#allocation2 + $0x8] sm:$0xff]
    %v3832 = vld [vmem:[#allocation2 + $0x10] sm:$0xff]
    %v3833 = vld [vmem:[#allocation2 + $0x18] sm:$0xff]
    %v3834 = vld [vmem:[#allocation2 + $0x20] sm:$0xff]
    %v3835 = vld [vmem:[#allocation2 + $0x28] sm:$0xff]
    %v3836 = vld [vmem:[#allocation2 + $0x30] sm:$0xff]
    %v3837 = vld [vmem:[#allocation2 + $0x38] sm:$0xff]
    %v3838 = vld [vmem:[#allocation2 + $0x40] sm:$0xff]
    %v3839 = vld [vmem:[#allocation2 + $0x48] sm:$0xff]
    %v3840 = vld [vmem:[#allocation2 + $0x50] sm:$0xff]
    %v3841 = vld [vmem:[#allocation2 + $0x58] sm:$0xff]
    %v3842 = vld [vmem:[#allocation2 + $0x60] sm:$0xff]
    %v3843 = vld [vmem:[#allocation2 + $0x68] sm:$0xff]
    %v3844 = vld [vmem:[#allocation2 + $0x70] sm:$0xff]
    %v3845 = vld [vmem:[#allocation2 + $0x78] sm:$0xff]
    %v3846 = vld [vmem:[#allocation2 + $0x80] sm:$0xff]
    %v3847 = vld [vmem:[#allocation2 + $0x88] sm:$0xff]
    %v3848 = vld [vmem:[#allocation2 + $0x90] sm:$0xff]
    %v3849 = vld [vmem:[#allocation2 + $0x98] sm:$0xff]
    %v3850 = vld [vmem:[#allocation2 + $0xa0] sm:$0xff]
    %v3851 = vld [vmem:[#allocation2 + $0xa8] sm:$0xff]
    %v3852 = vld [vmem:[#allocation2 + $0xb0] sm:$0xff]
    %v3853 = vld [vmem:[#allocation2 + $0xb8] sm:$0xff]
    %v3854 = vld [vmem:[#allocation2 + $0xc0] sm:$0xff]
    %v3855 = vld [vmem:[#allocation2 + $0xc8] sm:$0xff]
    %v3856 = vld [vmem:[#allocation2 + $0xd0] sm:$0xff]
    %v3857 = vld [vmem:[#allocation2 + $0xd8] sm:$0xff]
    %v3858 = vld [vmem:[#allocation2 + $0xe0] sm:$0xff]
    %v3859 = vld [vmem:[#allocation2 + $0xe8] sm:$0xff]
    %v3860 = vld [vmem:[#allocation2 + $0xf0] sm:$0xff]
    %v3861 = vld [vmem:[#allocation2 + $0xf8] sm:$0xff]
    %v3862 = vld [vmem:[#allocation2 + $0x100] sm:$0xff]
    %v3863 = vld [vmem:[#allocation2 + $0x108] sm:$0xff]
    %v3864 = vld [vmem:[#allocation2 + $0x110] sm:$0xff]
    %v3865 = vld [vmem:[#allocation2 + $0x118] sm:$0xff]
    %v3866 = vld [vmem:[#allocation2 + $0x120] sm:$0xff]
    %v3867 = vld [vmem:[#allocation2 + $0x128] sm:$0xff]
    %v3868 = vld [vmem:[#allocation2 + $0x130] sm:$0xff]
    %v3869 = vld [vmem:[#allocation2 + $0x138] sm:$0xff]
    %v3870 = vld [vmem:[#allocation2 + $0x140] sm:$0xff]
    %v3871 = vld [vmem:[#allocation2 + $0x148] sm:$0xff]
    %v3872 = vld [vmem:[#allocation2 + $0x150] sm:$0xff]
    %v3873 = vld [vmem:[#allocation2 + $0x158] sm:$0xff]
    %v3874 = vld [vmem:[#allocation2 + $0x160] sm:$0xff]
    %v3875 = vld [vmem:[#allocation2 + $0x168] sm:$0xff]
    %v3876 = vld [vmem:[#allocation2 + $0x170] sm:$0xff]
    %v3877 = vld [vmem:[#allocation2 + $0x178] sm:$0xff]
    %v3878 = vld [vmem:[#allocation2 + $0x180] sm:$0xff]
    %v3879 = vld [vmem:[#allocation2 + $0x188] sm:$0xff]
    %v3880 = vld [vmem:[#allocation2 + $0x190] sm:$0xff]
    %v3881 = vld [vmem:[#allocation2 + $0x198] sm:$0xff]
    %v3882 = vld [vmem:[#allocation2 + $0x1a0] sm:$0xff]
    %v3883 = vld [vmem:[#allocation2 + $0x1a8] sm:$0xff]
    %v3884 = vld [vmem:[#allocation2 + $0x1b0] sm:$0xff]
    %v3885 = vld [vmem:[#allocation2 + $0x1b8] sm:$0xff]
    %v3886 = vld [vmem:[#allocation2 + $0x1c0] sm:$0xff]
    %v3887 = vld [vmem:[#allocation2 + $0x1c8] sm:$0xff]
    %v3888 = vld [vmem:[#allocation2 + $0x1d0] sm:$0xff]
    %v3889 = vld [vmem:[#allocation2 + $0x1d8] sm:$0xff]
    %v3890 = vld [vmem:[#allocation2 + $0x1e0] sm:$0xff]
    %v3891 = vld [vmem:[#allocation2 + $0x1e8] sm:$0xff]
    %v3892 = vld [vmem:[#allocation2 + $0x1f0] sm:$0xff]
    %v3893 = vld [vmem:[#allocation2 + $0x1f8] sm:$0xff]
    %v3958 = vunpack.c.l.b16 %v3830
    %v3959 = vunpack.c.h.b16 %v3830
    %v3960 = vunpack.c.l.b16 %v3831
    %v3961 = vunpack.c.h.b16 %v3831
    %v3962 = vunpack.c.l.b16 %v3832
    %v3963 = vunpack.c.h.b16 %v3832
    %v3964 = vunpack.c.l.b16 %v3833
    %v3965 = vunpack.c.h.b16 %v3833
    %v3966 = vunpack.c.l.b16 %v3834
    %v3967 = vunpack.c.h.b16 %v3834
    %v3968 = vunpack.c.l.b16 %v3835
    %v3969 = vunpack.c.h.b16 %v3835
    %v3970 = vunpack.c.l.b16 %v3836
    %v3971 = vunpack.c.h.b16 %v3836
    %v3972 = vunpack.c.l.b16 %v3837
    %v3973 = vunpack.c.h.b16 %v3837
    %v3974 = vunpack.c.l.b16 %v3838
    %v3975 = vunpack.c.h.b16 %v3838
    %v3976 = vunpack.c.l.b16 %v3839
    %v3977 = vunpack.c.h.b16 %v3839
    %v3978 = vunpack.c.l.b16 %v3840
    %v3979 = vunpack.c.h.b16 %v3840
    %v3980 = vunpack.c.l.b16 %v3841
    %v3981 = vunpack.c.h.b16 %v3841
    %v3982 = vunpack.c.l.b16 %v3842
    %v3983 = vunpack.c.h.b16 %v3842
    %v3984 = vunpack.c.l.b16 %v3843
    %v3985 = vunpack.c.h.b16 %v3843
    %v3986 = vunpack.c.l.b16 %v3844
    %v3987 = vunpack.c.h.b16 %v3844
    %v3988 = vunpack.c.l.b16 %v3845
    %v3989 = vunpack.c.h.b16 %v3845
    %v3990 = vunpack.c.l.b16 %v3846
    %v3991 = vunpack.c.h.b16 %v3846
    %v3992 = vunpack.c.l.b16 %v3847
    %v3993 = vunpack.c.h.b16 %v3847
    %v3994 = vunpack.c.l.b16 %v3848
    %v3995 = vunpack.c.h.b16 %v3848
    %v3996 = vunpack.c.l.b16 %v3849
    %v3997 = vunpack.c.h.b16 %v3849
    %v3998 = vunpack.c.l.b16 %v3850
    %v3999 = vunpack.c.h.b16 %v3850
    %v4000 = vunpack.c.l.b16 %v3851
    %v4001 = vunpack.c.h.b16 %v3851
    %v4002 = vunpack.c.l.b16 %v3852
    %v4003 = vunpack.c.h.b16 %v3852
    %v4004 = vunpack.c.l.b16 %v3853
    %v4005 = vunpack.c.h.b16 %v3853
    %v4006 = vunpack.c.l.b16 %v3854
    %v4007 = vunpack.c.h.b16 %v3854
    %v4008 = vunpack.c.l.b16 %v3855
    %v4009 = vunpack.c.h.b16 %v3855
    %v4010 = vunpack.c.l.b16 %v3856
    %v4011 = vunpack.c.h.b16 %v3856
    %v4012 = vunpack.c.l.b16 %v3857
    %v4013 = vunpack.c.h.b16 %v3857
    %v4014 = vunpack.c.l.b16 %v3858
    %v4015 = vunpack.c.h.b16 %v3858
    %v4016 = vunpack.c.l.b16 %v3859
    %v4017 = vunpack.c.h.b16 %v3859
    %v4018 = vunpack.c.l.b16 %v3860
    %v4019 = vunpack.c.h.b16 %v3860
    %v4020 = vunpack.c.l.b16 %v3861
    %v4021 = vunpack.c.h.b16 %v3861
    %v4022 = vunpack.c.l.b16 %v3862
    %v4023 = vunpack.c.h.b16 %v3862
    %v4024 = vunpack.c.l.b16 %v3863
    %v4025 = vunpack.c.h.b16 %v3863
    %v4026 = vunpack.c.l.b16 %v3864
    %v4027 = vunpack.c.h.b16 %v3864
    %v4028 = vunpack.c.l.b16 %v3865
    %v4029 = vunpack.c.h.b16 %v3865
    %v4030 = vunpack.c.l.b16 %v3866
    %v4031 = vunpack.c.h.b16 %v3866
    %v4032 = vunpack.c.l.b16 %v3867
    %v4033 = vunpack.c.h.b16 %v3867
    %v4034 = vunpack.c.l.b16 %v3868
    %v4035 = vunpack.c.h.b16 %v3868
    %v4036 = vunpack.c.l.b16 %v3869
    %v4037 = vunpack.c.h.b16 %v3869
    %v4038 = vunpack.c.l.b16 %v3870
    %v4039 = vunpack.c.h.b16 %v3870
    %v4040 = vunpack.c.l.b16 %v3871
    %v4041 = vunpack.c.h.b16 %v3871
    %v4042 = vunpack.c.l.b16 %v3872
    %v4043 = vunpack.c.h.b16 %v3872
    %v4044 = vunpack.c.l.b16 %v3873
    %v4045 = vunpack.c.h.b16 %v3873
    %v4046 = vunpack.c.l.b16 %v3874
    %v4047 = vunpack.c.h.b16 %v3874
    %v4048 = vunpack.c.l.b16 %v3875
    %v4049 = vunpack.c.h.b16 %v3875
    %v4050 = vunpack.c.l.b16 %v3876
    %v4051 = vunpack.c.h.b16 %v3876
    %v4052 = vunpack.c.l.b16 %v3877
    %v4053 = vunpack.c.h.b16 %v3877
    %v4054 = vunpack.c.l.b16 %v3878
    %v4055 = vunpack.c.h.b16 %v3878
    %v4056 = vunpack.c.l.b16 %v3879
    %v4057 = vunpack.c.h.b16 %v3879
    %v4058 = vunpack.c.l.b16 %v3880
    %v4059 = vunpack.c.h.b16 %v3880
    %v4060 = vunpack.c.l.b16 %v3881
    %v4061 = vunpack.c.h.b16 %v3881
    %v4062 = vunpack.c.l.b16 %v3882
    %v4063 = vunpack.c.h.b16 %v3882
    %v4064 = vunpack.c.l.b16 %v3883
    %v4065 = vunpack.c.h.b16 %v3883
    %v4066 = vunpack.c.l.b16 %v3884
    %v4067 = vunpack.c.h.b16 %v3884
    %v4068 = vunpack.c.l.b16 %v3885
    %v4069 = vunpack.c.h.b16 %v3885
    %v4070 = vunpack.c.l.b16 %v3886
    %v4071 = vunpack.c.h.b16 %v3886
    %v4072 = vunpack.c.l.b16 %v3887
    %v4073 = vunpack.c.h.b16 %v3887
    %v4074 = vunpack.c.l.b16 %v3888
    %v4075 = vunpack.c.h.b16 %v3888
    %v4076 = vunpack.c.l.b16 %v3889
    %v4077 = vunpack.c.h.b16 %v3889
    %v4078 = vunpack.c.l.b16 %v3890
    %v4079 = vunpack.c.h.b16 %v3890
    %v4080 = vunpack.c.l.b16 %v3891
    %v4081 = vunpack.c.h.b16 %v3891
    %v4082 = vunpack.c.l.b16 %v3892
    %v4083 = vunpack.c.h.b16 %v3892
    %v4084 = vunpack.c.l.b16 %v3893
    %v4085 = vunpack.c.h.b16 %v3893
    %v4086 = vpack.c.b16 %v3962, %v3958
    %v4087 = vpack.c.b16 %v3963, %v3959
    %v4088 = vpack.c.b16 %v3964, %v3960
    %v4089 = vpack.c.b16 %v3965, %v3961
    %v4090 = vpack.c.b16 %v3970, %v3966
    %v4091 = vpack.c.b16 %v3971, %v3967
    %v4092 = vpack.c.b16 %v3972, %v3968
    %v4093 = vpack.c.b16 %v3973, %v3969
    %v4094 = vpack.c.b16 %v3978, %v3974
    %v4095 = vpack.c.b16 %v3979, %v3975
    %v4096 = vpack.c.b16 %v3980, %v3976
    %v4097 = vpack.c.b16 %v3981, %v3977
    %v4098 = vpack.c.b16 %v3986, %v3982
    %v4099 = vpack.c.b16 %v3987, %v3983
    %v4100 = vpack.c.b16 %v3988, %v3984
    %v4101 = vpack.c.b16 %v3989, %v3985
    %v4102 = vpack.c.b16 %v3994, %v3990
    %v4103 = vpack.c.b16 %v3995, %v3991
    %v4104 = vpack.c.b16 %v3996, %v3992
    %v4105 = vpack.c.b16 %v3997, %v3993
    %v4106 = vpack.c.b16 %v4002, %v3998
    %v4107 = vpack.c.b16 %v4003, %v3999
    %v4108 = vpack.c.b16 %v4004, %v4000
    %v4109 = vpack.c.b16 %v4005, %v4001
    %v4110 = vpack.c.b16 %v4010, %v4006
    %v4111 = vpack.c.b16 %v4011, %v4007
    %v4112 = vpack.c.b16 %v4012, %v4008
    %v4113 = vpack.c.b16 %v4013, %v4009
    %v4114 = vpack.c.b16 %v4018, %v4014
    %v4115 = vpack.c.b16 %v4019, %v4015
    %v4116 = vpack.c.b16 %v4020, %v4016
    %v4117 = vpack.c.b16 %v4021, %v4017
    %v4118 = vpack.c.b16 %v4026, %v4022
    %v4119 = vpack.c.b16 %v4027, %v4023
    %v4120 = vpack.c.b16 %v4028, %v4024
    %v4121 = vpack.c.b16 %v4029, %v4025
    %v4122 = vpack.c.b16 %v4034, %v4030
    %v4123 = vpack.c.b16 %v4035, %v4031
    %v4124 = vpack.c.b16 %v4036, %v4032
    %v4125 = vpack.c.b16 %v4037, %v4033
    %v4126 = vpack.c.b16 %v4042, %v4038
    %v4127 = vpack.c.b16 %v4043, %v4039
    %v4128 = vpack.c.b16 %v4044, %v4040
    %v4129 = vpack.c.b16 %v4045, %v4041
    %v4130 = vpack.c.b16 %v4050, %v4046
    %v4131 = vpack.c.b16 %v4051, %v4047
    %v4132 = vpack.c.b16 %v4052, %v4048
    %v4133 = vpack.c.b16 %v4053, %v4049
    %v4134 = vpack.c.b16 %v4058, %v4054
    %v4135 = vpack.c.b16 %v4059, %v4055
    %v4136 = vpack.c.b16 %v4060, %v4056
    %v4137 = vpack.c.b16 %v4061, %v4057
    %v4138 = vpack.c.b16 %v4066, %v4062
    %v4139 = vpack.c.b16 %v4067, %v4063
    %v4140 = vpack.c.b16 %v4068, %v4064
    %v4141 = vpack.c.b16 %v4069, %v4065
    %v4142 = vpack.c.b16 %v4074, %v4070
    %v4143 = vpack.c.b16 %v4075, %v4071
    %v4144 = vpack.c.b16 %v4076, %v4072
    %v4145 = vpack.c.b16 %v4077, %v4073
    %v4146 = vpack.c.b16 %v4082, %v4078
    %v4147 = vpack.c.b16 %v4083, %v4079
    %v4148 = vpack.c.b16 %v4084, %v4080
    %v4149 = vpack.c.b16 %v4085, %v4081
    %4214 = vmatprep.subr.bf16.mxu0 %v4115
    %4215 = vmatpush1.bf16.msra.mxu0 %v4114
    %4216 = vmatprep.subr.bf16.mxu0 %v4111
    %4217 = vmatpush1.bf16.msra.mxu0 %v4110
    %4218 = vmatprep.subr.bf16.mxu0 %v4107
    %4219 = vmatpush1.bf16.msra.mxu0 %v4106
    %4220 = vmatprep.subr.bf16.mxu0 %v4103
    %4221 = vmatpush1.bf16.msra.mxu0 %v4102
    %4222 = vmatprep.subr.bf16.mxu0 %v4099
    %4223 = vmatpush1.bf16.msra.mxu0 %v4098
    %4224 = vmatprep.subr.bf16.mxu0 %v4095
    %4225 = vmatpush1.bf16.msra.mxu0 %v4094
    %4226 = vmatprep.subr.bf16.mxu0 %v4091
    %4227 = vmatpush1.bf16.msra.mxu0 %v4090
    %4228 = vmatprep.subr.bf16.mxu0 %v4087
    %4229 = vmatpush1.bf16.msra.mxu0 %v4086
    %4230 = vmatprep.subr.bf16.mxu0 %v4147
    %4231 = vmatpush2.bf16.msra.mxu0 %v4146
    %4232 = vmatprep.subr.bf16.mxu0 %v4143
    %4233 = vmatpush2.bf16.msra.mxu0 %v4142
    %4234 = vmatprep.subr.bf16.mxu0 %v4139
    %4235 = vmatpush2.bf16.msra.mxu0 %v4138
    %4236 = vmatprep.subr.bf16.mxu0 %v4135
    %4237 = vmatpush2.bf16.msra.mxu0 %v4134
    %4238 = vmatprep.subr.bf16.mxu0 %v4131
    %4239 = vmatpush2.bf16.msra.mxu0 %v4130
    %4240 = vmatprep.subr.bf16.mxu0 %v4127
    %4241 = vmatpush2.bf16.msra.mxu0 %v4126
    %4242 = vmatprep.subr.bf16.mxu0 %v4123
    %4243 = vmatpush2.bf16.msra.mxu0 %v4122
    %4244 = vmatprep.subr.bf16.mxu0 %v4119
    %4245 = vmatpush2.bf16.msra.mxu0 %v4118
    %4246 = vmatprep.mubr.bf16.mxu0 %v3822
    %4247 = vmatmul.mubr.bf16.gmra.mxu0 %v3821
    %v4248 = vpop.f32.mrf.mxu0
    %v4249 = vadd.f32 0.0, %v4248
    %v4250 = vpop.f32.mrf.mxu0
    %v4251 = vadd.f32 0.0, %v4250
    %v4252 = vpop.f32.mrf.mxu0
    %v4253 = vpop.f32.mrf.mxu0
    %4254 = vdwg.mxu0
    %4255 = vmatprep.subr.bf16.mxu0 %v4117
    %4256 = vmatpush1.bf16.msra.mxu0 %v4116
    %4257 = vmatprep.subr.bf16.mxu0 %v4113
    %4258 = vmatpush1.bf16.msra.mxu0 %v4112
    %4259 = vmatprep.subr.bf16.mxu0 %v4109
    %4260 = vmatpush1.bf16.msra.mxu0 %v4108
    %4261 = vmatprep.subr.bf16.mxu0 %v4105
    %4262 = vmatpush1.bf16.msra.mxu0 %v4104
    %4263 = vmatprep.subr.bf16.mxu0 %v4101
    %4264 = vmatpush1.bf16.msra.mxu0 %v4100
    %4265 = vmatprep.subr.bf16.mxu0 %v4097
    %4266 = vmatpush1.bf16.msra.mxu0 %v4096
    %4267 = vmatprep.subr.bf16.mxu0 %v4093
    %4268 = vmatpush1.bf16.msra.mxu0 %v4092
    %4269 = vmatprep.subr.bf16.mxu0 %v4089
    %4270 = vmatpush1.bf16.msra.mxu0 %v4088
    %4271 = vmatprep.subr.bf16.mxu0 %v4149
    %4272 = vmatpush2.bf16.msra.mxu0 %v4148
    %4273 = vmatprep.subr.bf16.mxu0 %v4145
    %4274 = vmatpush2.bf16.msra.mxu0 %v4144
    %4275 = vmatprep.subr.bf16.mxu0 %v4141
    %4276 = vmatpush2.bf16.msra.mxu0 %v4140
    %4277 = vmatprep.subr.bf16.mxu0 %v4137
    %4278 = vmatpush2.bf16.msra.mxu0 %v4136
    %4279 = vmatprep.subr.bf16.mxu0 %v4133
    %4280 = vmatpush2.bf16.msra.mxu0 %v4132
    %4281 = vmatprep.subr.bf16.mxu0 %v4129
    %4282 = vmatpush2.bf16.msra.mxu0 %v4128
    %4283 = vmatprep.subr.bf16.mxu0 %v4125
    %4284 = vmatpush2.bf16.msra.mxu0 %v4124
    %4285 = vmatprep.subr.bf16.mxu0 %v4121
    %4286 = vmatpush2.bf16.msra.mxu0 %v4120
    %4287 = vmatprep.mubr.bf16.mxu0 %v3822
    %4288 = vmatmul.mubr.bf16.gmra.mxu0 %v3821
    %v4289 = vpop.f32.mrf.mxu0
    %v4290 = vadd.f32 0.0, %v4289
    %v4291 = vpop.f32.mrf.mxu0
    %v4292 = vadd.f32 0.0, %v4291
    %v4293 = vpop.f32.mrf.mxu0
    %v4294 = vpop.f32.mrf.mxu0
    %4295 = vdwg.mxu0
    %v4297 = vlaneseq
    %v4298 = vshrl.u32 %v4297, 7
    %v4299 = vsub.s32 0, %v4298
    %v4300 = vrot.slane %v3829, %v4299
    %v4301 = vlaneseq
    %v4302 = vshrl.u32 %v4301, 7
    %v4303 = vsub.s32 1, %v4302
    %v4304 = vrot.slane %v3829, %v4303
    %v4305 = vlaneseq
    %v4306 = vshrl.u32 %v4305, 7
    %v4307 = vsub.s32 2, %v4306
    %v4308 = vrot.slane %v3829, %v4307
    %v4309 = vlaneseq
    %v4310 = vshrl.u32 %v4309, 7
    %v4311 = vsub.s32 3, %v4310
    %v4312 = vrot.slane %v3829, %v4311
    %v4317 = vadd.f32 %v4300, %v4249
    %v4318 = vadd.f32 %v4304, %v4251
    %v4319 = vadd.f32 %v4308, %v4290
    %v4320 = vadd.f32 %v4312, %v4292
    %s4321 = scalar_lea.vmem [#allocation2], 512
    %v4322 = vld [vmem:[%s4321] sm:$0xff]
    %v4323 = vld [vmem:[%s4321 + $0x8] sm:$0xff]
    %v4324 = vld [vmem:[%s4321 + $0x10] sm:$0xff]
    %v4325 = vld [vmem:[%s4321 + $0x18] sm:$0xff]
    %v4326 = vld [vmem:[%s4321 + $0x20] sm:$0xff]
    %v4327 = vld [vmem:[%s4321 + $0x28] sm:$0xff]
    %v4328 = vld [vmem:[%s4321 + $0x30] sm:$0xff]
    %v4329 = vld [vmem:[%s4321 + $0x38] sm:$0xff]
    %v4330 = vld [vmem:[%s4321 + $0x40] sm:$0xff]
    %v4331 = vld [vmem:[%s4321 + $0x48] sm:$0xff]
    %v4332 = vld [vmem:[%s4321 + $0x50] sm:$0xff]
    %v4333 = vld [vmem:[%s4321 + $0x58] sm:$0xff]
    %v4334 = vld [vmem:[%s4321 + $0x60] sm:$0xff]
    %v4335 = vld [vmem:[%s4321 + $0x68] sm:$0xff]
    %v4336 = vld [vmem:[%s4321 + $0x70] sm:$0xff]
    %v4337 = vld [vmem:[%s4321 + $0x78] sm:$0xff]
    %v4338 = vld [vmem:[%s4321 + $0x80] sm:$0xff]
    %v4339 = vld [vmem:[%s4321 + $0x88] sm:$0xff]
    %v4340 = vld [vmem:[%s4321 + $0x90] sm:$0xff]
    %v4341 = vld [vmem:[%s4321 + $0x98] sm:$0xff]
    %v4342 = vld [vmem:[%s4321 + $0xa0] sm:$0xff]
    %v4343 = vld [vmem:[%s4321 + $0xa8] sm:$0xff]
    %v4344 = vld [vmem:[%s4321 + $0xb0] sm:$0xff]
    %v4345 = vld [vmem:[%s4321 + $0xb8] sm:$0xff]
    %v4346 = vld [vmem:[%s4321 + $0xc0] sm:$0xff]
    %v4347 = vld [vmem:[%s4321 + $0xc8] sm:$0xff]
    %v4348 = vld [vmem:[%s4321 + $0xd0] sm:$0xff]
    %v4349 = vld [vmem:[%s4321 + $0xd8] sm:$0xff]
    %v4350 = vld [vmem:[%s4321 + $0xe0] sm:$0xff]
    %v4351 = vld [vmem:[%s4321 + $0xe8] sm:$0xff]
    %v4352 = vld [vmem:[%s4321 + $0xf0] sm:$0xff]
    %v4353 = vld [vmem:[%s4321 + $0xf8] sm:$0xff]
    %v4354 = vld [vmem:[%s4321 + $0x100] sm:$0xff]
    %v4355 = vld [vmem:[%s4321 + $0x108] sm:$0xff]
    %v4356 = vld [vmem:[%s4321 + $0x110] sm:$0xff]
    %v4357 = vld [vmem:[%s4321 + $0x118] sm:$0xff]
    %v4358 = vld [vmem:[%s4321 + $0x120] sm:$0xff]
    %v4359 = vld [vmem:[%s4321 + $0x128] sm:$0xff]
    %v4360 = vld [vmem:[%s4321 + $0x130] sm:$0xff]
    %v4361 = vld [vmem:[%s4321 + $0x138] sm:$0xff]
    %v4362 = vld [vmem:[%s4321 + $0x140] sm:$0xff]
    %v4363 = vld [vmem:[%s4321 + $0x148] sm:$0xff]
    %v4364 = vld [vmem:[%s4321 + $0x150] sm:$0xff]
    %v4365 = vld [vmem:[%s4321 + $0x158] sm:$0xff]
    %v4366 = vld [vmem:[%s4321 + $0x160] sm:$0xff]
    %v4367 = vld [vmem:[%s4321 + $0x168] sm:$0xff]
    %v4368 = vld [vmem:[%s4321 + $0x170] sm:$0xff]
    %v4369 = vld [vmem:[%s4321 + $0x178] sm:$0xff]
    %v4370 = vld [vmem:[%s4321 + $0x180] sm:$0xff]
    %v4371 = vld [vmem:[%s4321 + $0x188] sm:$0xff]
    %v4372 = vld [vmem:[%s4321 + $0x190] sm:$0xff]
    %v4373 = vld [vmem:[%s4321 + $0x198] sm:$0xff]
    %v4374 = vld [vmem:[%s4321 + $0x1a0] sm:$0xff]
    %v4375 = vld [vmem:[%s4321 + $0x1a8] sm:$0xff]
    %v4376 = vld [vmem:[%s4321 + $0x1b0] sm:$0xff]
    %v4377 = vld [vmem:[%s4321 + $0x1b8] sm:$0xff]
    %v4378 = vld [vmem:[%s4321 + $0x1c0] sm:$0xff]
    %v4379 = vld [vmem:[%s4321 + $0x1c8] sm:$0xff]
    %v4380 = vld [vmem:[%s4321 + $0x1d0] sm:$0xff]
    %v4381 = vld [vmem:[%s4321 + $0x1d8] sm:$0xff]
    %v4382 = vld [vmem:[%s4321 + $0x1e0] sm:$0xff]
    %v4383 = vld [vmem:[%s4321 + $0x1e8] sm:$0xff]
    %v4384 = vld [vmem:[%s4321 + $0x1f0] sm:$0xff]
    %v4385 = vld [vmem:[%s4321 + $0x1f8] sm:$0xff]
    %v4450 = vunpack.c.l.b16 %v4322
    %v4451 = vunpack.c.h.b16 %v4322
    %v4452 = vunpack.c.l.b16 %v4323
    %v4453 = vunpack.c.h.b16 %v4323
    %v4454 = vunpack.c.l.b16 %v4324
    %v4455 = vunpack.c.h.b16 %v4324
    %v4456 = vunpack.c.l.b16 %v4325
    %v4457 = vunpack.c.h.b16 %v4325
    %v4458 = vunpack.c.l.b16 %v4326
    %v4459 = vunpack.c.h.b16 %v4326
    %v4460 = vunpack.c.l.b16 %v4327
    %v4461 = vunpack.c.h.b16 %v4327
    %v4462 = vunpack.c.l.b16 %v4328
    %v4463 = vunpack.c.h.b16 %v4328
    %v4464 = vunpack.c.l.b16 %v4329
    %v4465 = vunpack.c.h.b16 %v4329
    %v4466 = vunpack.c.l.b16 %v4330
    %v4467 = vunpack.c.h.b16 %v4330
    %v4468 = vunpack.c.l.b16 %v4331
    %v4469 = vunpack.c.h.b16 %v4331
    %v4470 = vunpack.c.l.b16 %v4332
    %v4471 = vunpack.c.h.b16 %v4332
    %v4472 = vunpack.c.l.b16 %v4333
    %v4473 = vunpack.c.h.b16 %v4333
    %v4474 = vunpack.c.l.b16 %v4334
    %v4475 = vunpack.c.h.b16 %v4334
    %v4476 = vunpack.c.l.b16 %v4335
    %v4477 = vunpack.c.h.b16 %v4335
    %v4478 = vunpack.c.l.b16 %v4336
    %v4479 = vunpack.c.h.b16 %v4336
    %v4480 = vunpack.c.l.b16 %v4337
    %v4481 = vunpack.c.h.b16 %v4337
    %v4482 = vunpack.c.l.b16 %v4338
    %v4483 = vunpack.c.h.b16 %v4338
    %v4484 = vunpack.c.l.b16 %v4339
    %v4485 = vunpack.c.h.b16 %v4339
    %v4486 = vunpack.c.l.b16 %v4340
    %v4487 = vunpack.c.h.b16 %v4340
    %v4488 = vunpack.c.l.b16 %v4341
    %v4489 = vunpack.c.h.b16 %v4341
    %v4490 = vunpack.c.l.b16 %v4342
    %v4491 = vunpack.c.h.b16 %v4342
    %v4492 = vunpack.c.l.b16 %v4343
    %v4493 = vunpack.c.h.b16 %v4343
    %v4494 = vunpack.c.l.b16 %v4344
    %v4495 = vunpack.c.h.b16 %v4344
    %v4496 = vunpack.c.l.b16 %v4345
    %v4497 = vunpack.c.h.b16 %v4345
    %v4498 = vunpack.c.l.b16 %v4346
    %v4499 = vunpack.c.h.b16 %v4346
    %v4500 = vunpack.c.l.b16 %v4347
    %v4501 = vunpack.c.h.b16 %v4347
    %v4502 = vunpack.c.l.b16 %v4348
    %v4503 = vunpack.c.h.b16 %v4348
    %v4504 = vunpack.c.l.b16 %v4349
    %v4505 = vunpack.c.h.b16 %v4349
    %v4506 = vunpack.c.l.b16 %v4350
    %v4507 = vunpack.c.h.b16 %v4350
    %v4508 = vunpack.c.l.b16 %v4351
    %v4509 = vunpack.c.h.b16 %v4351
    %v4510 = vunpack.c.l.b16 %v4352
    %v4511 = vunpack.c.h.b16 %v4352
    %v4512 = vunpack.c.l.b16 %v4353
    %v4513 = vunpack.c.h.b16 %v4353
    %v4514 = vunpack.c.l.b16 %v4354
    %v4515 = vunpack.c.h.b16 %v4354
    %v4516 = vunpack.c.l.b16 %v4355
    %v4517 = vunpack.c.h.b16 %v4355
    %v4518 = vunpack.c.l.b16 %v4356
    %v4519 = vunpack.c.h.b16 %v4356
    %v4520 = vunpack.c.l.b16 %v4357
    %v4521 = vunpack.c.h.b16 %v4357
    %v4522 = vunpack.c.l.b16 %v4358
    %v4523 = vunpack.c.h.b16 %v4358
    %v4524 = vunpack.c.l.b16 %v4359
    %v4525 = vunpack.c.h.b16 %v4359
    %v4526 = vunpack.c.l.b16 %v4360
    %v4527 = vunpack.c.h.b16 %v4360
    %v4528 = vunpack.c.l.b16 %v4361
    %v4529 = vunpack.c.h.b16 %v4361
    %v4530 = vunpack.c.l.b16 %v4362
    %v4531 = vunpack.c.h.b16 %v4362
    %v4532 = vunpack.c.l.b16 %v4363
    %v4533 = vunpack.c.h.b16 %v4363
    %v4534 = vunpack.c.l.b16 %v4364
    %v4535 = vunpack.c.h.b16 %v4364
    %v4536 = vunpack.c.l.b16 %v4365
    %v4537 = vunpack.c.h.b16 %v4365
    %v4538 = vunpack.c.l.b16 %v4366
    %v4539 = vunpack.c.h.b16 %v4366
    %v4540 = vunpack.c.l.b16 %v4367
    %v4541 = vunpack.c.h.b16 %v4367
    %v4542 = vunpack.c.l.b16 %v4368
    %v4543 = vunpack.c.h.b16 %v4368
    %v4544 = vunpack.c.l.b16 %v4369
    %v4545 = vunpack.c.h.b16 %v4369
    %v4546 = vunpack.c.l.b16 %v4370
    %v4547 = vunpack.c.h.b16 %v4370
    %v4548 = vunpack.c.l.b16 %v4371
    %v4549 = vunpack.c.h.b16 %v4371
    %v4550 = vunpack.c.l.b16 %v4372
    %v4551 = vunpack.c.h.b16 %v4372
    %v4552 = vunpack.c.l.b16 %v4373
    %v4553 = vunpack.c.h.b16 %v4373
    %v4554 = vunpack.c.l.b16 %v4374
    %v4555 = vunpack.c.h.b16 %v4374
    %v4556 = vunpack.c.l.b16 %v4375
    %v4557 = vunpack.c.h.b16 %v4375
    %v4558 = vunpack.c.l.b16 %v4376
    %v4559 = vunpack.c.h.b16 %v4376
    %v4560 = vunpack.c.l.b16 %v4377
    %v4561 = vunpack.c.h.b16 %v4377
    %v4562 = vunpack.c.l.b16 %v4378
    %v4563 = vunpack.c.h.b16 %v4378
    %v4564 = vunpack.c.l.b16 %v4379
    %v4565 = vunpack.c.h.b16 %v4379
    %v4566 = vunpack.c.l.b16 %v4380
    %v4567 = vunpack.c.h.b16 %v4380
    %v4568 = vunpack.c.l.b16 %v4381
    %v4569 = vunpack.c.h.b16 %v4381
    %v4570 = vunpack.c.l.b16 %v4382
    %v4571 = vunpack.c.h.b16 %v4382
    %v4572 = vunpack.c.l.b16 %v4383
    %v4573 = vunpack.c.h.b16 %v4383
    %v4574 = vunpack.c.l.b16 %v4384
    %v4575 = vunpack.c.h.b16 %v4384
    %v4576 = vunpack.c.l.b16 %v4385
    %v4577 = vunpack.c.h.b16 %v4385
    %v4578 = vpack.c.b16 %v4454, %v4450
    %v4579 = vpack.c.b16 %v4455, %v4451
    %v4580 = vpack.c.b16 %v4456, %v4452
    %v4581 = vpack.c.b16 %v4457, %v4453
    %v4582 = vpack.c.b16 %v4462, %v4458
    %v4583 = vpack.c.b16 %v4463, %v4459
    %v4584 = vpack.c.b16 %v4464, %v4460
    %v4585 = vpack.c.b16 %v4465, %v4461
    %v4586 = vpack.c.b16 %v4470, %v4466
    %v4587 = vpack.c.b16 %v4471, %v4467
    %v4588 = vpack.c.b16 %v4472, %v4468
    %v4589 = vpack.c.b16 %v4473, %v4469
    %v4590 = vpack.c.b16 %v4478, %v4474
    %v4591 = vpack.c.b16 %v4479, %v4475
    %v4592 = vpack.c.b16 %v4480, %v4476
    %v4593 = vpack.c.b16 %v4481, %v4477
    %v4594 = vpack.c.b16 %v4486, %v4482
    %v4595 = vpack.c.b16 %v4487, %v4483
    %v4596 = vpack.c.b16 %v4488, %v4484
    %v4597 = vpack.c.b16 %v4489, %v4485
    %v4598 = vpack.c.b16 %v4494, %v4490
    %v4599 = vpack.c.b16 %v4495, %v4491
    %v4600 = vpack.c.b16 %v4496, %v4492
    %v4601 = vpack.c.b16 %v4497, %v4493
    %v4602 = vpack.c.b16 %v4502, %v4498
    %v4603 = vpack.c.b16 %v4503, %v4499
    %v4604 = vpack.c.b16 %v4504, %v4500
    %v4605 = vpack.c.b16 %v4505, %v4501
    %v4606 = vpack.c.b16 %v4510, %v4506
    %v4607 = vpack.c.b16 %v4511, %v4507
    %v4608 = vpack.c.b16 %v4512, %v4508
    %v4609 = vpack.c.b16 %v4513, %v4509
    %v4610 = vpack.c.b16 %v4518, %v4514
    %v4611 = vpack.c.b16 %v4519, %v4515
    %v4612 = vpack.c.b16 %v4520, %v4516
    %v4613 = vpack.c.b16 %v4521, %v4517
    %v4614 = vpack.c.b16 %v4526, %v4522
    %v4615 = vpack.c.b16 %v4527, %v4523
    %v4616 = vpack.c.b16 %v4528, %v4524
    %v4617 = vpack.c.b16 %v4529, %v4525
    %v4618 = vpack.c.b16 %v4534, %v4530
    %v4619 = vpack.c.b16 %v4535, %v4531
    %v4620 = vpack.c.b16 %v4536, %v4532
    %v4621 = vpack.c.b16 %v4537, %v4533
    %v4622 = vpack.c.b16 %v4542, %v4538
    %v4623 = vpack.c.b16 %v4543, %v4539
    %v4624 = vpack.c.b16 %v4544, %v4540
    %v4625 = vpack.c.b16 %v4545, %v4541
    %v4626 = vpack.c.b16 %v4550, %v4546
    %v4627 = vpack.c.b16 %v4551, %v4547
    %v4628 = vpack.c.b16 %v4552, %v4548
    %v4629 = vpack.c.b16 %v4553, %v4549
    %v4630 = vpack.c.b16 %v4558, %v4554
    %v4631 = vpack.c.b16 %v4559, %v4555
    %v4632 = vpack.c.b16 %v4560, %v4556
    %v4633 = vpack.c.b16 %v4561, %v4557
    %v4634 = vpack.c.b16 %v4566, %v4562
    %v4635 = vpack.c.b16 %v4567, %v4563
    %v4636 = vpack.c.b16 %v4568, %v4564
    %v4637 = vpack.c.b16 %v4569, %v4565
    %v4638 = vpack.c.b16 %v4574, %v4570
    %v4639 = vpack.c.b16 %v4575, %v4571
    %v4640 = vpack.c.b16 %v4576, %v4572
    %v4641 = vpack.c.b16 %v4577, %v4573
    %4706 = vmatprep.subr.bf16.mxu0 %v4607
    %4707 = vmatpush1.bf16.msra.mxu0 %v4606
    %4708 = vmatprep.subr.bf16.mxu0 %v4603
    %4709 = vmatpush1.bf16.msra.mxu0 %v4602
    %4710 = vmatprep.subr.bf16.mxu0 %v4599
    %4711 = vmatpush1.bf16.msra.mxu0 %v4598
    %4712 = vmatprep.subr.bf16.mxu0 %v4595
    %4713 = vmatpush1.bf16.msra.mxu0 %v4594
    %4714 = vmatprep.subr.bf16.mxu0 %v4591
    %4715 = vmatpush1.bf16.msra.mxu0 %v4590
    %4716 = vmatprep.subr.bf16.mxu0 %v4587
    %4717 = vmatpush1.bf16.msra.mxu0 %v4586
    %4718 = vmatprep.subr.bf16.mxu0 %v4583
    %4719 = vmatpush1.bf16.msra.mxu0 %v4582
    %4720 = vmatprep.subr.bf16.mxu0 %v4579
    %4721 = vmatpush1.bf16.msra.mxu0 %v4578
    %4722 = vmatprep.subr.bf16.mxu0 %v4639
    %4723 = vmatpush2.bf16.msra.mxu0 %v4638
    %4724 = vmatprep.subr.bf16.mxu0 %v4635
    %4725 = vmatpush2.bf16.msra.mxu0 %v4634
    %4726 = vmatprep.subr.bf16.mxu0 %v4631
    %4727 = vmatpush2.bf16.msra.mxu0 %v4630
    %4728 = vmatprep.subr.bf16.mxu0 %v4627
    %4729 = vmatpush2.bf16.msra.mxu0 %v4626
    %4730 = vmatprep.subr.bf16.mxu0 %v4623
    %4731 = vmatpush2.bf16.msra.mxu0 %v4622
    %4732 = vmatprep.subr.bf16.mxu0 %v4619
    %4733 = vmatpush2.bf16.msra.mxu0 %v4618
    %4734 = vmatprep.subr.bf16.mxu0 %v4615
    %4735 = vmatpush2.bf16.msra.mxu0 %v4614
    %4736 = vmatprep.subr.bf16.mxu0 %v4611
    %4737 = vmatpush2.bf16.msra.mxu0 %v4610
    %4738 = vmatprep.mubr.bf16.mxu0 %v3824
    %4739 = vmatmul.mubr.bf16.gmra.mxu0 %v3823
    %v4740 = vpop.f32.mrf.mxu0
    %v4741 = vadd.f32 0.0, %v4740
    %v4742 = vpop.f32.mrf.mxu0
    %v4743 = vadd.f32 0.0, %v4742
    %v4744 = vpop.f32.mrf.mxu0
    %v4745 = vpop.f32.mrf.mxu0
    %4746 = vdwg.mxu0
    %4747 = vmatprep.subr.bf16.mxu0 %v4609
    %4748 = vmatpush1.bf16.msra.mxu0 %v4608
    %4749 = vmatprep.subr.bf16.mxu0 %v4605
    %4750 = vmatpush1.bf16.msra.mxu0 %v4604
    %4751 = vmatprep.subr.bf16.mxu0 %v4601
    %4752 = vmatpush1.bf16.msra.mxu0 %v4600
    %4753 = vmatprep.subr.bf16.mxu0 %v4597
    %4754 = vmatpush1.bf16.msra.mxu0 %v4596
    %4755 = vmatprep.subr.bf16.mxu0 %v4593
    %4756 = vmatpush1.bf16.msra.mxu0 %v4592
    %4757 = vmatprep.subr.bf16.mxu0 %v4589
    %4758 = vmatpush1.bf16.msra.mxu0 %v4588
    %4759 = vmatprep.subr.bf16.mxu0 %v4585
    %4760 = vmatpush1.bf16.msra.mxu0 %v4584
    %4761 = vmatprep.subr.bf16.mxu0 %v4581
    %4762 = vmatpush1.bf16.msra.mxu0 %v4580
    %4763 = vmatprep.subr.bf16.mxu0 %v4641
    %4764 = vmatpush2.bf16.msra.mxu0 %v4640
    %4765 = vmatprep.subr.bf16.mxu0 %v4637
    %4766 = vmatpush2.bf16.msra.mxu0 %v4636
    %4767 = vmatprep.subr.bf16.mxu0 %v4633
    %4768 = vmatpush2.bf16.msra.mxu0 %v4632
    %4769 = vmatprep.subr.bf16.mxu0 %v4629
    %4770 = vmatpush2.bf16.msra.mxu0 %v4628
    %4771 = vmatprep.subr.bf16.mxu0 %v4625
    %4772 = vmatpush2.bf16.msra.mxu0 %v4624
    %4773 = vmatprep.subr.bf16.mxu0 %v4621
    %4774 = vmatpush2.bf16.msra.mxu0 %v4620
    %4775 = vmatprep.subr.bf16.mxu0 %v4617
    %4776 = vmatpush2.bf16.msra.mxu0 %v4616
    %4777 = vmatprep.subr.bf16.mxu0 %v4613
    %4778 = vmatpush2.bf16.msra.mxu0 %v4612
    %4779 = vmatprep.mubr.bf16.mxu0 %v3824
    %4780 = vmatmul.mubr.bf16.gmra.mxu0 %v3823
    %v4781 = vpop.f32.mrf.mxu0
    %v4782 = vadd.f32 0.0, %v4781
    %v4783 = vpop.f32.mrf.mxu0
    %v4784 = vadd.f32 0.0, %v4783
    %v4785 = vpop.f32.mrf.mxu0
    %v4786 = vpop.f32.mrf.mxu0
    %4787 = vdwg.mxu0
    %v4788 = vadd.f32 %v4317, %v4741
    %v4789 = vadd.f32 %v4318, %v4743
    %v4790 = vadd.f32 %v4319, %v4782
    %v4791 = vadd.f32 %v4320, %v4784
    %s4792 = scalar_lea.vmem [#allocation2], 1024
    %v4793 = vld [vmem:[%s4792] sm:$0xff]
    %v4794 = vld [vmem:[%s4792 + $0x8] sm:$0xff]
    %v4795 = vld [vmem:[%s4792 + $0x10] sm:$0xff]
    %v4796 = vld [vmem:[%s4792 + $0x18] sm:$0xff]
    %v4797 = vld [vmem:[%s4792 + $0x20] sm:$0xff]
    %v4798 = vld [vmem:[%s4792 + $0x28] sm:$0xff]
    %v4799 = vld [vmem:[%s4792 + $0x30] sm:$0xff]
    %v4800 = vld [vmem:[%s4792 + $0x38] sm:$0xff]
    %v4801 = vld [vmem:[%s4792 + $0x40] sm:$0xff]
    %v4802 = vld [vmem:[%s4792 + $0x48] sm:$0xff]
    %v4803 = vld [vmem:[%s4792 + $0x50] sm:$0xff]
    %v4804 = vld [vmem:[%s4792 + $0x58] sm:$0xff]
    %v4805 = vld [vmem:[%s4792 + $0x60] sm:$0xff]
    %v4806 = vld [vmem:[%s4792 + $0x68] sm:$0xff]
    %v4807 = vld [vmem:[%s4792 + $0x70] sm:$0xff]
    %v4808 = vld [vmem:[%s4792 + $0x78] sm:$0xff]
    %v4809 = vld [vmem:[%s4792 + $0x80] sm:$0xff]
    %v4810 = vld [vmem:[%s4792 + $0x88] sm:$0xff]
    %v4811 = vld [vmem:[%s4792 + $0x90] sm:$0xff]
    %v4812 = vld [vmem:[%s4792 + $0x98] sm:$0xff]
    %v4813 = vld [vmem:[%s4792 + $0xa0] sm:$0xff]
    %v4814 = vld [vmem:[%s4792 + $0xa8] sm:$0xff]
    %v4815 = vld [vmem:[%s4792 + $0xb0] sm:$0xff]
    %v4816 = vld [vmem:[%s4792 + $0xb8] sm:$0xff]
    %v4817 = vld [vmem:[%s4792 + $0xc0] sm:$0xff]
    %v4818 = vld [vmem:[%s4792 + $0xc8] sm:$0xff]
    %v4819 = vld [vmem:[%s4792 + $0xd0] sm:$0xff]
    %v4820 = vld [vmem:[%s4792 + $0xd8] sm:$0xff]
    %v4821 = vld [vmem:[%s4792 + $0xe0] sm:$0xff]
    %v4822 = vld [vmem:[%s4792 + $0xe8] sm:$0xff]
    %v4823 = vld [vmem:[%s4792 + $0xf0] sm:$0xff]
    %v4824 = vld [vmem:[%s4792 + $0xf8] sm:$0xff]
    %v4825 = vld [vmem:[%s4792 + $0x100] sm:$0xff]
    %v4826 = vld [vmem:[%s4792 + $0x108] sm:$0xff]
    %v4827 = vld [vmem:[%s4792 + $0x110] sm:$0xff]
    %v4828 = vld [vmem:[%s4792 + $0x118] sm:$0xff]
    %v4829 = vld [vmem:[%s4792 + $0x120] sm:$0xff]
    %v4830 = vld [vmem:[%s4792 + $0x128] sm:$0xff]
    %v4831 = vld [vmem:[%s4792 + $0x130] sm:$0xff]
    %v4832 = vld [vmem:[%s4792 + $0x138] sm:$0xff]
    %v4833 = vld [vmem:[%s4792 + $0x140] sm:$0xff]
    %v4834 = vld [vmem:[%s4792 + $0x148] sm:$0xff]
    %v4835 = vld [vmem:[%s4792 + $0x150] sm:$0xff]
    %v4836 = vld [vmem:[%s4792 + $0x158] sm:$0xff]
    %v4837 = vld [vmem:[%s4792 + $0x160] sm:$0xff]
    %v4838 = vld [vmem:[%s4792 + $0x168] sm:$0xff]
    %v4839 = vld [vmem:[%s4792 + $0x170] sm:$0xff]
    %v4840 = vld [vmem:[%s4792 + $0x178] sm:$0xff]
    %v4841 = vld [vmem:[%s4792 + $0x180] sm:$0xff]
    %v4842 = vld [vmem:[%s4792 + $0x188] sm:$0xff]
    %v4843 = vld [vmem:[%s4792 + $0x190] sm:$0xff]
    %v4844 = vld [vmem:[%s4792 + $0x198] sm:$0xff]
    %v4845 = vld [vmem:[%s4792 + $0x1a0] sm:$0xff]
    %v4846 = vld [vmem:[%s4792 + $0x1a8] sm:$0xff]
    %v4847 = vld [vmem:[%s4792 + $0x1b0] sm:$0xff]
    %v4848 = vld [vmem:[%s4792 + $0x1b8] sm:$0xff]
    %v4849 = vld [vmem:[%s4792 + $0x1c0] sm:$0xff]
    %v4850 = vld [vmem:[%s4792 + $0x1c8] sm:$0xff]
    %v4851 = vld [vmem:[%s4792 + $0x1d0] sm:$0xff]
    %v4852 = vld [vmem:[%s4792 + $0x1d8] sm:$0xff]
    %v4853 = vld [vmem:[%s4792 + $0x1e0] sm:$0xff]
    %v4854 = vld [vmem:[%s4792 + $0x1e8] sm:$0xff]
    %v4855 = vld [vmem:[%s4792 + $0x1f0] sm:$0xff]
    %v4856 = vld [vmem:[%s4792 + $0x1f8] sm:$0xff]
    %v4921 = vunpack.c.l.b16 %v4793
    %v4922 = vunpack.c.h.b16 %v4793
    %v4923 = vunpack.c.l.b16 %v4794
    %v4924 = vunpack.c.h.b16 %v4794
    %v4925 = vunpack.c.l.b16 %v4795
    %v4926 = vunpack.c.h.b16 %v4795
    %v4927 = vunpack.c.l.b16 %v4796
    %v4928 = vunpack.c.h.b16 %v4796
    %v4929 = vunpack.c.l.b16 %v4797
    %v4930 = vunpack.c.h.b16 %v4797
    %v4931 = vunpack.c.l.b16 %v4798
    %v4932 = vunpack.c.h.b16 %v4798
    %v4933 = vunpack.c.l.b16 %v4799
    %v4934 = vunpack.c.h.b16 %v4799
    %v4935 = vunpack.c.l.b16 %v4800
    %v4936 = vunpack.c.h.b16 %v4800
    %v4937 = vunpack.c.l.b16 %v4801
    %v4938 = vunpack.c.h.b16 %v4801
    %v4939 = vunpack.c.l.b16 %v4802
    %v4940 = vunpack.c.h.b16 %v4802
    %v4941 = vunpack.c.l.b16 %v4803
    %v4942 = vunpack.c.h.b16 %v4803
    %v4943 = vunpack.c.l.b16 %v4804
    %v4944 = vunpack.c.h.b16 %v4804
    %v4945 = vunpack.c.l.b16 %v4805
    %v4946 = vunpack.c.h.b16 %v4805
    %v4947 = vunpack.c.l.b16 %v4806
    %v4948 = vunpack.c.h.b16 %v4806
    %v4949 = vunpack.c.l.b16 %v4807
    %v4950 = vunpack.c.h.b16 %v4807
    %v4951 = vunpack.c.l.b16 %v4808
    %v4952 = vunpack.c.h.b16 %v4808
    %v4953 = vunpack.c.l.b16 %v4809
    %v4954 = vunpack.c.h.b16 %v4809
    %v4955 = vunpack.c.l.b16 %v4810
    %v4956 = vunpack.c.h.b16 %v4810
    %v4957 = vunpack.c.l.b16 %v4811
    %v4958 = vunpack.c.h.b16 %v4811
    %v4959 = vunpack.c.l.b16 %v4812
    %v4960 = vunpack.c.h.b16 %v4812
    %v4961 = vunpack.c.l.b16 %v4813
    %v4962 = vunpack.c.h.b16 %v4813
    %v4963 = vunpack.c.l.b16 %v4814
    %v4964 = vunpack.c.h.b16 %v4814
    %v4965 = vunpack.c.l.b16 %v4815
    %v4966 = vunpack.c.h.b16 %v4815
    %v4967 = vunpack.c.l.b16 %v4816
    %v4968 = vunpack.c.h.b16 %v4816
    %v4969 = vunpack.c.l.b16 %v4817
    %v4970 = vunpack.c.h.b16 %v4817
    %v4971 = vunpack.c.l.b16 %v4818
    %v4972 = vunpack.c.h.b16 %v4818
    %v4973 = vunpack.c.l.b16 %v4819
    %v4974 = vunpack.c.h.b16 %v4819
    %v4975 = vunpack.c.l.b16 %v4820
    %v4976 = vunpack.c.h.b16 %v4820
    %v4977 = vunpack.c.l.b16 %v4821
    %v4978 = vunpack.c.h.b16 %v4821
    %v4979 = vunpack.c.l.b16 %v4822
    %v4980 = vunpack.c.h.b16 %v4822
    %v4981 = vunpack.c.l.b16 %v4823
    %v4982 = vunpack.c.h.b16 %v4823
    %v4983 = vunpack.c.l.b16 %v4824
    %v4984 = vunpack.c.h.b16 %v4824
    %v4985 = vunpack.c.l.b16 %v4825
    %v4986 = vunpack.c.h.b16 %v4825
    %v4987 = vunpack.c.l.b16 %v4826
    %v4988 = vunpack.c.h.b16 %v4826
    %v4989 = vunpack.c.l.b16 %v4827
    %v4990 = vunpack.c.h.b16 %v4827
    %v4991 = vunpack.c.l.b16 %v4828
    %v4992 = vunpack.c.h.b16 %v4828
    %v4993 = vunpack.c.l.b16 %v4829
    %v4994 = vunpack.c.h.b16 %v4829
    %v4995 = vunpack.c.l.b16 %v4830
    %v4996 = vunpack.c.h.b16 %v4830
    %v4997 = vunpack.c.l.b16 %v4831
    %v4998 = vunpack.c.h.b16 %v4831
    %v4999 = vunpack.c.l.b16 %v4832
    %v5000 = vunpack.c.h.b16 %v4832
    %v5001 = vunpack.c.l.b16 %v4833
    %v5002 = vunpack.c.h.b16 %v4833
    %v5003 = vunpack.c.l.b16 %v4834
    %v5004 = vunpack.c.h.b16 %v4834
    %v5005 = vunpack.c.l.b16 %v4835
    %v5006 = vunpack.c.h.b16 %v4835
    %v5007 = vunpack.c.l.b16 %v4836
    %v5008 = vunpack.c.h.b16 %v4836
    %v5009 = vunpack.c.l.b16 %v4837
    %v5010 = vunpack.c.h.b16 %v4837
    %v5011 = vunpack.c.l.b16 %v4838
    %v5012 = vunpack.c.h.b16 %v4838
    %v5013 = vunpack.c.l.b16 %v4839
    %v5014 = vunpack.c.h.b16 %v4839
    %v5015 = vunpack.c.l.b16 %v4840
    %v5016 = vunpack.c.h.b16 %v4840
    %v5017 = vunpack.c.l.b16 %v4841
    %v5018 = vunpack.c.h.b16 %v4841
    %v5019 = vunpack.c.l.b16 %v4842
    %v5020 = vunpack.c.h.b16 %v4842
    %v5021 = vunpack.c.l.b16 %v4843
    %v5022 = vunpack.c.h.b16 %v4843
    %v5023 = vunpack.c.l.b16 %v4844
    %v5024 = vunpack.c.h.b16 %v4844
    %v5025 = vunpack.c.l.b16 %v4845
    %v5026 = vunpack.c.h.b16 %v4845
    %v5027 = vunpack.c.l.b16 %v4846
    %v5028 = vunpack.c.h.b16 %v4846
    %v5029 = vunpack.c.l.b16 %v4847
    %v5030 = vunpack.c.h.b16 %v4847
    %v5031 = vunpack.c.l.b16 %v4848
    %v5032 = vunpack.c.h.b16 %v4848
    %v5033 = vunpack.c.l.b16 %v4849
    %v5034 = vunpack.c.h.b16 %v4849
    %v5035 = vunpack.c.l.b16 %v4850
    %v5036 = vunpack.c.h.b16 %v4850
    %v5037 = vunpack.c.l.b16 %v4851
    %v5038 = vunpack.c.h.b16 %v4851
    %v5039 = vunpack.c.l.b16 %v4852
    %v5040 = vunpack.c.h.b16 %v4852
    %v5041 = vunpack.c.l.b16 %v4853
    %v5042 = vunpack.c.h.b16 %v4853
    %v5043 = vunpack.c.l.b16 %v4854
    %v5044 = vunpack.c.h.b16 %v4854
    %v5045 = vunpack.c.l.b16 %v4855
    %v5046 = vunpack.c.h.b16 %v4855
    %v5047 = vunpack.c.l.b16 %v4856
    %v5048 = vunpack.c.h.b16 %v4856
    %v5049 = vpack.c.b16 %v4925, %v4921
    %v5050 = vpack.c.b16 %v4926, %v4922
    %v5051 = vpack.c.b16 %v4927, %v4923
    %v5052 = vpack.c.b16 %v4928, %v4924
    %v5053 = vpack.c.b16 %v4933, %v4929
    %v5054 = vpack.c.b16 %v4934, %v4930
    %v5055 = vpack.c.b16 %v4935, %v4931
    %v5056 = vpack.c.b16 %v4936, %v4932
    %v5057 = vpack.c.b16 %v4941, %v4937
    %v5058 = vpack.c.b16 %v4942, %v4938
    %v5059 = vpack.c.b16 %v4943, %v4939
    %v5060 = vpack.c.b16 %v4944, %v4940
    %v5061 = vpack.c.b16 %v4949, %v4945
    %v5062 = vpack.c.b16 %v4950, %v4946
    %v5063 = vpack.c.b16 %v4951, %v4947
    %v5064 = vpack.c.b16 %v4952, %v4948
    %v5065 = vpack.c.b16 %v4957, %v4953
    %v5066 = vpack.c.b16 %v4958, %v4954
    %v5067 = vpack.c.b16 %v4959, %v4955
    %v5068 = vpack.c.b16 %v4960, %v4956
    %v5069 = vpack.c.b16 %v4965, %v4961
    %v5070 = vpack.c.b16 %v4966, %v4962
    %v5071 = vpack.c.b16 %v4967, %v4963
    %v5072 = vpack.c.b16 %v4968, %v4964
    %v5073 = vpack.c.b16 %v4973, %v4969
    %v5074 = vpack.c.b16 %v4974, %v4970
    %v5075 = vpack.c.b16 %v4975, %v4971
    %v5076 = vpack.c.b16 %v4976, %v4972
    %v5077 = vpack.c.b16 %v4981, %v4977
    %v5078 = vpack.c.b16 %v4982, %v4978
    %v5079 = vpack.c.b16 %v4983, %v4979
    %v5080 = vpack.c.b16 %v4984, %v4980
    %v5081 = vpack.c.b16 %v4989, %v4985
    %v5082 = vpack.c.b16 %v4990, %v4986
    %v5083 = vpack.c.b16 %v4991, %v4987
    %v5084 = vpack.c.b16 %v4992, %v4988
    %v5085 = vpack.c.b16 %v4997, %v4993
    %v5086 = vpack.c.b16 %v4998, %v4994
    %v5087 = vpack.c.b16 %v4999, %v4995
    %v5088 = vpack.c.b16 %v5000, %v4996
    %v5089 = vpack.c.b16 %v5005, %v5001
    %v5090 = vpack.c.b16 %v5006, %v5002
    %v5091 = vpack.c.b16 %v5007, %v5003
    %v5092 = vpack.c.b16 %v5008, %v5004
    %v5093 = vpack.c.b16 %v5013, %v5009
    %v5094 = vpack.c.b16 %v5014, %v5010
    %v5095 = vpack.c.b16 %v5015, %v5011
    %v5096 = vpack.c.b16 %v5016, %v5012
    %v5097 = vpack.c.b16 %v5021, %v5017
    %v5098 = vpack.c.b16 %v5022, %v5018
    %v5099 = vpack.c.b16 %v5023, %v5019
    %v5100 = vpack.c.b16 %v5024, %v5020
    %v5101 = vpack.c.b16 %v5029, %v5025
    %v5102 = vpack.c.b16 %v5030, %v5026
    %v5103 = vpack.c.b16 %v5031, %v5027
    %v5104 = vpack.c.b16 %v5032, %v5028
    %v5105 = vpack.c.b16 %v5037, %v5033
    %v5106 = vpack.c.b16 %v5038, %v5034
    %v5107 = vpack.c.b16 %v5039, %v5035
    %v5108 = vpack.c.b16 %v5040, %v5036
    %v5109 = vpack.c.b16 %v5045, %v5041
    %v5110 = vpack.c.b16 %v5046, %v5042
    %v5111 = vpack.c.b16 %v5047, %v5043
    %v5112 = vpack.c.b16 %v5048, %v5044
    %5177 = vmatprep.subr.bf16.mxu0 %v5078
    %5178 = vmatpush1.bf16.msra.mxu0 %v5077
    %5179 = vmatprep.subr.bf16.mxu0 %v5074
    %5180 = vmatpush1.bf16.msra.mxu0 %v5073
    %5181 = vmatprep.subr.bf16.mxu0 %v5070
    %5182 = vmatpush1.bf16.msra.mxu0 %v5069
    %5183 = vmatprep.subr.bf16.mxu0 %v5066
    %5184 = vmatpush1.bf16.msra.mxu0 %v5065
    %5185 = vmatprep.subr.bf16.mxu0 %v5062
    %5186 = vmatpush1.bf16.msra.mxu0 %v5061
    %5187 = vmatprep.subr.bf16.mxu0 %v5058
    %5188 = vmatpush1.bf16.msra.mxu0 %v5057
    %5189 = vmatprep.subr.bf16.mxu0 %v5054
    %5190 = vmatpush1.bf16.msra.mxu0 %v5053
    %5191 = vmatprep.subr.bf16.mxu0 %v5050
    %5192 = vmatpush1.bf16.msra.mxu0 %v5049
    %5193 = vmatprep.subr.bf16.mxu0 %v5110
    %5194 = vmatpush2.bf16.msra.mxu0 %v5109
    %5195 = vmatprep.subr.bf16.mxu0 %v5106
    %5196 = vmatpush2.bf16.msra.mxu0 %v5105
    %5197 = vmatprep.subr.bf16.mxu0 %v5102
    %5198 = vmatpush2.bf16.msra.mxu0 %v5101
    %5199 = vmatprep.subr.bf16.mxu0 %v5098
    %5200 = vmatpush2.bf16.msra.mxu0 %v5097
    %5201 = vmatprep.subr.bf16.mxu0 %v5094
    %5202 = vmatpush2.bf16.msra.mxu0 %v5093
    %5203 = vmatprep.subr.bf16.mxu0 %v5090
    %5204 = vmatpush2.bf16.msra.mxu0 %v5089
    %5205 = vmatprep.subr.bf16.mxu0 %v5086
    %5206 = vmatpush2.bf16.msra.mxu0 %v5085
    %5207 = vmatprep.subr.bf16.mxu0 %v5082
    %5208 = vmatpush2.bf16.msra.mxu0 %v5081
    %5209 = vmatprep.mubr.bf16.mxu0 %v3826
    %5210 = vmatmul.mubr.bf16.gmra.mxu0 %v3825
    %v5211 = vpop.f32.mrf.mxu0
    %v5212 = vadd.f32 0.0, %v5211
    %v5213 = vpop.f32.mrf.mxu0
    %v5214 = vadd.f32 0.0, %v5213
    %v5215 = vpop.f32.mrf.mxu0
    %v5216 = vpop.f32.mrf.mxu0
    %5217 = vdwg.mxu0
    %5218 = vmatprep.subr.bf16.mxu0 %v5080
    %5219 = vmatpush1.bf16.msra.mxu0 %v5079
    %5220 = vmatprep.subr.bf16.mxu0 %v5076
    %5221 = vmatpush1.bf16.msra.mxu0 %v5075
    %5222 = vmatprep.subr.bf16.mxu0 %v5072
    %5223 = vmatpush1.bf16.msra.mxu0 %v5071
    %5224 = vmatprep.subr.bf16.mxu0 %v5068
    %5225 = vmatpush1.bf16.msra.mxu0 %v5067
    %5226 = vmatprep.subr.bf16.mxu0 %v5064
    %5227 = vmatpush1.bf16.msra.mxu0 %v5063
    %5228 = vmatprep.subr.bf16.mxu0 %v5060
    %5229 = vmatpush1.bf16.msra.mxu0 %v5059
    %5230 = vmatprep.subr.bf16.mxu0 %v5056
    %5231 = vmatpush1.bf16.msra.mxu0 %v5055
    %5232 = vmatprep.subr.bf16.mxu0 %v5052
    %5233 = vmatpush1.bf16.msra.mxu0 %v5051
    %5234 = vmatprep.subr.bf16.mxu0 %v5112
    %5235 = vmatpush2.bf16.msra.mxu0 %v5111
    %5236 = vmatprep.subr.bf16.mxu0 %v5108
    %5237 = vmatpush2.bf16.msra.mxu0 %v5107
    %5238 = vmatprep.subr.bf16.mxu0 %v5104
    %5239 = vmatpush2.bf16.msra.mxu0 %v5103
    %5240 = vmatprep.subr.bf16.mxu0 %v5100
    %5241 = vmatpush2.bf16.msra.mxu0 %v5099
    %5242 = vmatprep.subr.bf16.mxu0 %v5096
    %5243 = vmatpush2.bf16.msra.mxu0 %v5095
    %5244 = vmatprep.subr.bf16.mxu0 %v5092
    %5245 = vmatpush2.bf16.msra.mxu0 %v5091
    %5246 = vmatprep.subr.bf16.mxu0 %v5088
    %5247 = vmatpush2.bf16.msra.mxu0 %v5087
    %5248 = vmatprep.subr.bf16.mxu0 %v5084
    %5249 = vmatpush2.bf16.msra.mxu0 %v5083
    %5250 = vmatprep.mubr.bf16.mxu0 %v3826
    %5251 = vmatmul.mubr.bf16.gmra.mxu0 %v3825
    %v5252 = vpop.f32.mrf.mxu0
    %v5253 = vadd.f32 0.0, %v5252
    %v5254 = vpop.f32.mrf.mxu0
    %v5255 = vadd.f32 0.0, %v5254
    %v5256 = vpop.f32.mrf.mxu0
    %v5257 = vpop.f32.mrf.mxu0
    %5258 = vdwg.mxu0
    %v5259 = vadd.f32 %v4788, %v5212
    %v5260 = vadd.f32 %v4789, %v5214
    %v5261 = vadd.f32 %v4790, %v5253
    %v5262 = vadd.f32 %v4791, %v5255
    %s5263 = scalar_lea.vmem [#allocation2], 1536
    %v5264 = vld [vmem:[%s5263] sm:$0xff]
    %v5265 = vld [vmem:[%s5263 + $0x8] sm:$0xff]
    %v5266 = vld [vmem:[%s5263 + $0x10] sm:$0xff]
    %v5267 = vld [vmem:[%s5263 + $0x18] sm:$0xff]
    %v5268 = vld [vmem:[%s5263 + $0x20] sm:$0xff]
    %v5269 = vld [vmem:[%s5263 + $0x28] sm:$0xff]
    %v5270 = vld [vmem:[%s5263 + $0x30] sm:$0xff]
    %v5271 = vld [vmem:[%s5263 + $0x38] sm:$0xff]
    %v5272 = vld [vmem:[%s5263 + $0x40] sm:$0xff]
    %v5273 = vld [vmem:[%s5263 + $0x48] sm:$0xff]
    %v5274 = vld [vmem:[%s5263 + $0x50] sm:$0xff]
    %v5275 = vld [vmem:[%s5263 + $0x58] sm:$0xff]
    %v5276 = vld [vmem:[%s5263 + $0x60] sm:$0xff]
    %v5277 = vld [vmem:[%s5263 + $0x68] sm:$0xff]
    %v5278 = vld [vmem:[%s5263 + $0x70] sm:$0xff]
    %v5279 = vld [vmem:[%s5263 + $0x78] sm:$0xff]
    %v5280 = vld [vmem:[%s5263 + $0x80] sm:$0xff]
    %v5281 = vld [vmem:[%s5263 + $0x88] sm:$0xff]
    %v5282 = vld [vmem:[%s5263 + $0x90] sm:$0xff]
    %v5283 = vld [vmem:[%s5263 + $0x98] sm:$0xff]
    %v5284 = vld [vmem:[%s5263 + $0xa0] sm:$0xff]
    %v5285 = vld [vmem:[%s5263 + $0xa8] sm:$0xff]
    %v5286 = vld [vmem:[%s5263 + $0xb0] sm:$0xff]
    %v5287 = vld [vmem:[%s5263 + $0xb8] sm:$0xff]
    %v5288 = vld [vmem:[%s5263 + $0xc0] sm:$0xff]
    %v5289 = vld [vmem:[%s5263 + $0xc8] sm:$0xff]
    %v5290 = vld [vmem:[%s5263 + $0xd0] sm:$0xff]
    %v5291 = vld [vmem:[%s5263 + $0xd8] sm:$0xff]
    %v5292 = vld [vmem:[%s5263 + $0xe0] sm:$0xff]
    %v5293 = vld [vmem:[%s5263 + $0xe8] sm:$0xff]
    %v5294 = vld [vmem:[%s5263 + $0xf0] sm:$0xff]
    %v5295 = vld [vmem:[%s5263 + $0xf8] sm:$0xff]
    %v5296 = vld [vmem:[%s5263 + $0x100] sm:$0xff]
    %v5297 = vld [vmem:[%s5263 + $0x108] sm:$0xff]
    %v5298 = vld [vmem:[%s5263 + $0x110] sm:$0xff]
    %v5299 = vld [vmem:[%s5263 + $0x118] sm:$0xff]
    %v5300 = vld [vmem:[%s5263 + $0x120] sm:$0xff]
    %v5301 = vld [vmem:[%s5263 + $0x128] sm:$0xff]
    %v5302 = vld [vmem:[%s5263 + $0x130] sm:$0xff]
    %v5303 = vld [vmem:[%s5263 + $0x138] sm:$0xff]
    %v5304 = vld [vmem:[%s5263 + $0x140] sm:$0xff]
    %v5305 = vld [vmem:[%s5263 + $0x148] sm:$0xff]
    %v5306 = vld [vmem:[%s5263 + $0x150] sm:$0xff]
    %v5307 = vld [vmem:[%s5263 + $0x158] sm:$0xff]
    %v5308 = vld [vmem:[%s5263 + $0x160] sm:$0xff]
    %v5309 = vld [vmem:[%s5263 + $0x168] sm:$0xff]
    %v5310 = vld [vmem:[%s5263 + $0x170] sm:$0xff]
    %v5311 = vld [vmem:[%s5263 + $0x178] sm:$0xff]
    %v5312 = vld [vmem:[%s5263 + $0x180] sm:$0xff]
    %v5313 = vld [vmem:[%s5263 + $0x188] sm:$0xff]
    %v5314 = vld [vmem:[%s5263 + $0x190] sm:$0xff]
    %v5315 = vld [vmem:[%s5263 + $0x198] sm:$0xff]
    %v5316 = vld [vmem:[%s5263 + $0x1a0] sm:$0xff]
    %v5317 = vld [vmem:[%s5263 + $0x1a8] sm:$0xff]
    %v5318 = vld [vmem:[%s5263 + $0x1b0] sm:$0xff]
    %v5319 = vld [vmem:[%s5263 + $0x1b8] sm:$0xff]
    %v5320 = vld [vmem:[%s5263 + $0x1c0] sm:$0xff]
    %v5321 = vld [vmem:[%s5263 + $0x1c8] sm:$0xff]
    %v5322 = vld [vmem:[%s5263 + $0x1d0] sm:$0xff]
    %v5323 = vld [vmem:[%s5263 + $0x1d8] sm:$0xff]
    %v5324 = vld [vmem:[%s5263 + $0x1e0] sm:$0xff]
    %v5325 = vld [vmem:[%s5263 + $0x1e8] sm:$0xff]
    %v5326 = vld [vmem:[%s5263 + $0x1f0] sm:$0xff]
    %v5327 = vld [vmem:[%s5263 + $0x1f8] sm:$0xff]
    %v5392 = vunpack.c.l.b16 %v5264
    %v5393 = vunpack.c.h.b16 %v5264
    %v5394 = vunpack.c.l.b16 %v5265
    %v5395 = vunpack.c.h.b16 %v5265
    %v5396 = vunpack.c.l.b16 %v5266
    %v5397 = vunpack.c.h.b16 %v5266
    %v5398 = vunpack.c.l.b16 %v5267
    %v5399 = vunpack.c.h.b16 %v5267
    %v5400 = vunpack.c.l.b16 %v5268
    %v5401 = vunpack.c.h.b16 %v5268
    %v5402 = vunpack.c.l.b16 %v5269
    %v5403 = vunpack.c.h.b16 %v5269
    %v5404 = vunpack.c.l.b16 %v5270
    %v5405 = vunpack.c.h.b16 %v5270
    %v5406 = vunpack.c.l.b16 %v5271
    %v5407 = vunpack.c.h.b16 %v5271
    %v5408 = vunpack.c.l.b16 %v5272
    %v5409 = vunpack.c.h.b16 %v5272
    %v5410 = vunpack.c.l.b16 %v5273
    %v5411 = vunpack.c.h.b16 %v5273
    %v5412 = vunpack.c.l.b16 %v5274
    %v5413 = vunpack.c.h.b16 %v5274
    %v5414 = vunpack.c.l.b16 %v5275
    %v5415 = vunpack.c.h.b16 %v5275
    %v5416 = vunpack.c.l.b16 %v5276
    %v5417 = vunpack.c.h.b16 %v5276
    %v5418 = vunpack.c.l.b16 %v5277
    %v5419 = vunpack.c.h.b16 %v5277
    %v5420 = vunpack.c.l.b16 %v5278
    %v5421 = vunpack.c.h.b16 %v5278
    %v5422 = vunpack.c.l.b16 %v5279
    %v5423 = vunpack.c.h.b16 %v5279
    %v5424 = vunpack.c.l.b16 %v5280
    %v5425 = vunpack.c.h.b16 %v5280
    %v5426 = vunpack.c.l.b16 %v5281
    %v5427 = vunpack.c.h.b16 %v5281
    %v5428 = vunpack.c.l.b16 %v5282
    %v5429 = vunpack.c.h.b16 %v5282
    %v5430 = vunpack.c.l.b16 %v5283
    %v5431 = vunpack.c.h.b16 %v5283
    %v5432 = vunpack.c.l.b16 %v5284
    %v5433 = vunpack.c.h.b16 %v5284
    %v5434 = vunpack.c.l.b16 %v5285
    %v5435 = vunpack.c.h.b16 %v5285
    %v5436 = vunpack.c.l.b16 %v5286
    %v5437 = vunpack.c.h.b16 %v5286
    %v5438 = vunpack.c.l.b16 %v5287
    %v5439 = vunpack.c.h.b16 %v5287
    %v5440 = vunpack.c.l.b16 %v5288
    %v5441 = vunpack.c.h.b16 %v5288
    %v5442 = vunpack.c.l.b16 %v5289
    %v5443 = vunpack.c.h.b16 %v5289
    %v5444 = vunpack.c.l.b16 %v5290
    %v5445 = vunpack.c.h.b16 %v5290
    %v5446 = vunpack.c.l.b16 %v5291
    %v5447 = vunpack.c.h.b16 %v5291
    %v5448 = vunpack.c.l.b16 %v5292
    %v5449 = vunpack.c.h.b16 %v5292
    %v5450 = vunpack.c.l.b16 %v5293
    %v5451 = vunpack.c.h.b16 %v5293
    %v5452 = vunpack.c.l.b16 %v5294
    %v5453 = vunpack.c.h.b16 %v5294
    %v5454 = vunpack.c.l.b16 %v5295
    %v5455 = vunpack.c.h.b16 %v5295
    %v5456 = vunpack.c.l.b16 %v5296
    %v5457 = vunpack.c.h.b16 %v5296
    %v5458 = vunpack.c.l.b16 %v5297
    %v5459 = vunpack.c.h.b16 %v5297
    %v5460 = vunpack.c.l.b16 %v5298
    %v5461 = vunpack.c.h.b16 %v5298
    %v5462 = vunpack.c.l.b16 %v5299
    %v5463 = vunpack.c.h.b16 %v5299
    %v5464 = vunpack.c.l.b16 %v5300
    %v5465 = vunpack.c.h.b16 %v5300
    %v5466 = vunpack.c.l.b16 %v5301
    %v5467 = vunpack.c.h.b16 %v5301
    %v5468 = vunpack.c.l.b16 %v5302
    %v5469 = vunpack.c.h.b16 %v5302
    %v5470 = vunpack.c.l.b16 %v5303
    %v5471 = vunpack.c.h.b16 %v5303
    %v5472 = vunpack.c.l.b16 %v5304
    %v5473 = vunpack.c.h.b16 %v5304
    %v5474 = vunpack.c.l.b16 %v5305
    %v5475 = vunpack.c.h.b16 %v5305
    %v5476 = vunpack.c.l.b16 %v5306
    %v5477 = vunpack.c.h.b16 %v5306
    %v5478 = vunpack.c.l.b16 %v5307
    %v5479 = vunpack.c.h.b16 %v5307
    %v5480 = vunpack.c.l.b16 %v5308
    %v5481 = vunpack.c.h.b16 %v5308
    %v5482 = vunpack.c.l.b16 %v5309
    %v5483 = vunpack.c.h.b16 %v5309
    %v5484 = vunpack.c.l.b16 %v5310
    %v5485 = vunpack.c.h.b16 %v5310
    %v5486 = vunpack.c.l.b16 %v5311
    %v5487 = vunpack.c.h.b16 %v5311
    %v5488 = vunpack.c.l.b16 %v5312
    %v5489 = vunpack.c.h.b16 %v5312
    %v5490 = vunpack.c.l.b16 %v5313
    %v5491 = vunpack.c.h.b16 %v5313
    %v5492 = vunpack.c.l.b16 %v5314
    %v5493 = vunpack.c.h.b16 %v5314
    %v5494 = vunpack.c.l.b16 %v5315
    %v5495 = vunpack.c.h.b16 %v5315
    %v5496 = vunpack.c.l.b16 %v5316
    %v5497 = vunpack.c.h.b16 %v5316
    %v5498 = vunpack.c.l.b16 %v5317
    %v5499 = vunpack.c.h.b16 %v5317
    %v5500 = vunpack.c.l.b16 %v5318
    %v5501 = vunpack.c.h.b16 %v5318
    %v5502 = vunpack.c.l.b16 %v5319
    %v5503 = vunpack.c.h.b16 %v5319
    %v5504 = vunpack.c.l.b16 %v5320
    %v5505 = vunpack.c.h.b16 %v5320
    %v5506 = vunpack.c.l.b16 %v5321
    %v5507 = vunpack.c.h.b16 %v5321
    %v5508 = vunpack.c.l.b16 %v5322
    %v5509 = vunpack.c.h.b16 %v5322
    %v5510 = vunpack.c.l.b16 %v5323
    %v5511 = vunpack.c.h.b16 %v5323
    %v5512 = vunpack.c.l.b16 %v5324
    %v5513 = vunpack.c.h.b16 %v5324
    %v5514 = vunpack.c.l.b16 %v5325
    %v5515 = vunpack.c.h.b16 %v5325
    %v5516 = vunpack.c.l.b16 %v5326
    %v5517 = vunpack.c.h.b16 %v5326
    %v5518 = vunpack.c.l.b16 %v5327
    %v5519 = vunpack.c.h.b16 %v5327
    %v5520 = vpack.c.b16 %v5396, %v5392
    %v5521 = vpack.c.b16 %v5397, %v5393
    %v5522 = vpack.c.b16 %v5398, %v5394
    %v5523 = vpack.c.b16 %v5399, %v5395
    %v5524 = vpack.c.b16 %v5404, %v5400
    %v5525 = vpack.c.b16 %v5405, %v5401
    %v5526 = vpack.c.b16 %v5406, %v5402
    %v5527 = vpack.c.b16 %v5407, %v5403
    %v5528 = vpack.c.b16 %v5412, %v5408
    %v5529 = vpack.c.b16 %v5413, %v5409
    %v5530 = vpack.c.b16 %v5414, %v5410
    %v5531 = vpack.c.b16 %v5415, %v5411
    %v5532 = vpack.c.b16 %v5420, %v5416
    %v5533 = vpack.c.b16 %v5421, %v5417
    %v5534 = vpack.c.b16 %v5422, %v5418
    %v5535 = vpack.c.b16 %v5423, %v5419
    %v5536 = vpack.c.b16 %v5428, %v5424
    %v5537 = vpack.c.b16 %v5429, %v5425
    %v5538 = vpack.c.b16 %v5430, %v5426
    %v5539 = vpack.c.b16 %v5431, %v5427
    %v5540 = vpack.c.b16 %v5436, %v5432
    %v5541 = vpack.c.b16 %v5437, %v5433
    %v5542 = vpack.c.b16 %v5438, %v5434
    %v5543 = vpack.c.b16 %v5439, %v5435
    %v5544 = vpack.c.b16 %v5444, %v5440
    %v5545 = vpack.c.b16 %v5445, %v5441
    %v5546 = vpack.c.b16 %v5446, %v5442
    %v5547 = vpack.c.b16 %v5447, %v5443
    %v5548 = vpack.c.b16 %v5452, %v5448
    %v5549 = vpack.c.b16 %v5453, %v5449
    %v5550 = vpack.c.b16 %v5454, %v5450
    %v5551 = vpack.c.b16 %v5455, %v5451
    %v5552 = vpack.c.b16 %v5460, %v5456
    %v5553 = vpack.c.b16 %v5461, %v5457
    %v5554 = vpack.c.b16 %v5462, %v5458
    %v5555 = vpack.c.b16 %v5463, %v5459
    %v5556 = vpack.c.b16 %v5468, %v5464
    %v5557 = vpack.c.b16 %v5469, %v5465
    %v5558 = vpack.c.b16 %v5470, %v5466
    %v5559 = vpack.c.b16 %v5471, %v5467
    %v5560 = vpack.c.b16 %v5476, %v5472
    %v5561 = vpack.c.b16 %v5477, %v5473
    %v5562 = vpack.c.b16 %v5478, %v5474
    %v5563 = vpack.c.b16 %v5479, %v5475
    %v5564 = vpack.c.b16 %v5484, %v5480
    %v5565 = vpack.c.b16 %v5485, %v5481
    %v5566 = vpack.c.b16 %v5486, %v5482
    %v5567 = vpack.c.b16 %v5487, %v5483
    %v5568 = vpack.c.b16 %v5492, %v5488
    %v5569 = vpack.c.b16 %v5493, %v5489
    %v5570 = vpack.c.b16 %v5494, %v5490
    %v5571 = vpack.c.b16 %v5495, %v5491
    %v5572 = vpack.c.b16 %v5500, %v5496
    %v5573 = vpack.c.b16 %v5501, %v5497
    %v5574 = vpack.c.b16 %v5502, %v5498
    %v5575 = vpack.c.b16 %v5503, %v5499
    %v5576 = vpack.c.b16 %v5508, %v5504
    %v5577 = vpack.c.b16 %v5509, %v5505
    %v5578 = vpack.c.b16 %v5510, %v5506
    %v5579 = vpack.c.b16 %v5511, %v5507
    %v5580 = vpack.c.b16 %v5516, %v5512
    %v5581 = vpack.c.b16 %v5517, %v5513
    %v5582 = vpack.c.b16 %v5518, %v5514
    %v5583 = vpack.c.b16 %v5519, %v5515
    %5648 = vmatprep.subr.bf16.mxu0 %v5549
    %5649 = vmatpush1.bf16.msra.mxu0 %v5548
    %5650 = vmatprep.subr.bf16.mxu0 %v5545
    %5651 = vmatpush1.bf16.msra.mxu0 %v5544
    %5652 = vmatprep.subr.bf16.mxu0 %v5541
    %5653 = vmatpush1.bf16.msra.mxu0 %v5540
    %5654 = vmatprep.subr.bf16.mxu0 %v5537
    %5655 = vmatpush1.bf16.msra.mxu0 %v5536
    %5656 = vmatprep.subr.bf16.mxu0 %v5533
    %5657 = vmatpush1.bf16.msra.mxu0 %v5532
    %5658 = vmatprep.subr.bf16.mxu0 %v5529
    %5659 = vmatpush1.bf16.msra.mxu0 %v5528
    %5660 = vmatprep.subr.bf16.mxu0 %v5525
    %5661 = vmatpush1.bf16.msra.mxu0 %v5524
    %5662 = vmatprep.subr.bf16.mxu0 %v5521
    %5663 = vmatpush1.bf16.msra.mxu0 %v5520
    %5664 = vmatprep.subr.bf16.mxu0 %v5581
    %5665 = vmatpush2.bf16.msra.mxu0 %v5580
    %5666 = vmatprep.subr.bf16.mxu0 %v5577
    %5667 = vmatpush2.bf16.msra.mxu0 %v5576
    %5668 = vmatprep.subr.bf16.mxu0 %v5573
    %5669 = vmatpush2.bf16.msra.mxu0 %v5572
    %5670 = vmatprep.subr.bf16.mxu0 %v5569
    %5671 = vmatpush2.bf16.msra.mxu0 %v5568
    %5672 = vmatprep.subr.bf16.mxu0 %v5565
    %5673 = vmatpush2.bf16.msra.mxu0 %v5564
    %5674 = vmatprep.subr.bf16.mxu0 %v5561
    %5675 = vmatpush2.bf16.msra.mxu0 %v5560
    %5676 = vmatprep.subr.bf16.mxu0 %v5557
    %5677 = vmatpush2.bf16.msra.mxu0 %v5556
    %5678 = vmatprep.subr.bf16.mxu0 %v5553
    %5679 = vmatpush2.bf16.msra.mxu0 %v5552
    %5680 = vmatprep.mubr.bf16.mxu0 %v3828
    %5681 = vmatmul.mubr.bf16.gmra.mxu0 %v3827
    %v5682 = vpop.f32.mrf.mxu0
    %v5683 = vadd.f32 0.0, %v5682
    %v5684 = vpop.f32.mrf.mxu0
    %v5685 = vadd.f32 0.0, %v5684
    %v5686 = vpop.f32.mrf.mxu0
    %v5687 = vpop.f32.mrf.mxu0
    %5688 = vdwg.mxu0
    %5689 = vmatprep.subr.bf16.mxu0 %v5551
    %5690 = vmatpush1.bf16.msra.mxu0 %v5550
    %5691 = vmatprep.subr.bf16.mxu0 %v5547
    %5692 = vmatpush1.bf16.msra.mxu0 %v5546
    %5693 = vmatprep.subr.bf16.mxu0 %v5543
    %5694 = vmatpush1.bf16.msra.mxu0 %v5542
    %5695 = vmatprep.subr.bf16.mxu0 %v5539
    %5696 = vmatpush1.bf16.msra.mxu0 %v5538
    %5697 = vmatprep.subr.bf16.mxu0 %v5535
    %5698 = vmatpush1.bf16.msra.mxu0 %v5534
    %5699 = vmatprep.subr.bf16.mxu0 %v5531
    %5700 = vmatpush1.bf16.msra.mxu0 %v5530
    %5701 = vmatprep.subr.bf16.mxu0 %v5527
    %5702 = vmatpush1.bf16.msra.mxu0 %v5526
    %5703 = vmatprep.subr.bf16.mxu0 %v5523
    %5704 = vmatpush1.bf16.msra.mxu0 %v5522
    %5705 = vmatprep.subr.bf16.mxu0 %v5583
    %5706 = vmatpush2.bf16.msra.mxu0 %v5582
    %5707 = vmatprep.subr.bf16.mxu0 %v5579
    %5708 = vmatpush2.bf16.msra.mxu0 %v5578
    %5709 = vmatprep.subr.bf16.mxu0 %v5575
    %5710 = vmatpush2.bf16.msra.mxu0 %v5574
    %5711 = vmatprep.subr.bf16.mxu0 %v5571
    %5712 = vmatpush2.bf16.msra.mxu0 %v5570
    %5713 = vmatprep.subr.bf16.mxu0 %v5567
    %5714 = vmatpush2.bf16.msra.mxu0 %v5566
    %5715 = vmatprep.subr.bf16.mxu0 %v5563
    %5716 = vmatpush2.bf16.msra.mxu0 %v5562
    %5717 = vmatprep.subr.bf16.mxu0 %v5559
    %5718 = vmatpush2.bf16.msra.mxu0 %v5558
    %5719 = vmatprep.subr.bf16.mxu0 %v5555
    %5720 = vmatpush2.bf16.msra.mxu0 %v5554
    %5721 = vmatprep.mubr.bf16.mxu0 %v3828
    %5722 = vmatmul.mubr.bf16.gmra.mxu0 %v3827
    %v5723 = vpop.f32.mrf.mxu0
    %v5724 = vadd.f32 0.0, %v5723
    %v5725 = vpop.f32.mrf.mxu0
    %v5726 = vadd.f32 0.0, %v5725
    %v5727 = vpop.f32.mrf.mxu0
    %v5728 = vpop.f32.mrf.mxu0
    %5729 = vdwg.mxu0
    %v5730 = vadd.f32 %v5259, %v5683
    %v5731 = vadd.f32 %v5260, %v5685
    %v5732 = vadd.f32 %v5261, %v5724
    %v5733 = vadd.f32 %v5262, %v5726
    %v5734 = vmax.f32 %v5730, 0.0
    %v5735 = vmax.f32 %v5731, 0.0
    %v5736 = vmax.f32 %v5732, 0.0
    %v5737 = vmax.f32 %v5733, 0.0
    %v5738 = vpack.c.bf16 %v5734, %v5734
    %v5739 = vpack.c.bf16 %v5735, %v5735
    %v5740 = vpack.c.bf16 %v5736, %v5736
    %v5741 = vpack.c.bf16 %v5737, %v5737
    %v5742 = vld [vmem:[%s7] sm:$0xf]
    %v5743 = vld [vmem:[%s7 + $0x4] sm:$0xf]
    %v5744 = vld [vmem:[%s7 + $0x8] sm:$0xf]
    %v5745 = vld [vmem:[%s7 + $0xc] sm:$0xf]
    %v5746 = vld [vmem:[%s7 + $0x10] sm:$0xf]
    %v5747 = vld [vmem:[%s7 + $0x14] sm:$0xf]
    %v5748 = vld [vmem:[%s7 + $0x18] sm:$0xf]
    %v5749 = vld [vmem:[%s7 + $0x1c] sm:$0xf]
    %v5750 = vld [vmem:[%s7 + $0x20] sm:$0xf]
    %v5751 = vld [vmem:[%s7 + $0x24] sm:$0xf]
    %v5752 = vld [vmem:[%s7 + $0x28] sm:$0xf]
    %v5753 = vld [vmem:[%s7 + $0x2c] sm:$0xf]
    %v5754 = vld [vmem:[%s7 + $0x30] sm:$0xf]
    %v5755 = vld [vmem:[%s7 + $0x34] sm:$0xf]
    %v5756 = vld [vmem:[%s7 + $0x38] sm:$0xf]
    %v5757 = vld [vmem:[%s7 + $0x3c] sm:$0xf]
    %v5758 = vld [vmem:[%s7 + $0x40] sm:$0xf]
    %v5759 = vld [vmem:[%s7 + $0x44] sm:$0xf]
    %v5760 = vld [vmem:[%s7 + $0x48] sm:$0xf]
    %v5761 = vld [vmem:[%s7 + $0x4c] sm:$0xf]
    %v5762 = vld [vmem:[%s7 + $0x50] sm:$0xf]
    %v5763 = vld [vmem:[%s7 + $0x54] sm:$0xf]
    %v5764 = vld [vmem:[%s7 + $0x58] sm:$0xf]
    %v5765 = vld [vmem:[%s7 + $0x5c] sm:$0xf]
    %v5766 = vld [vmem:[%s7 + $0x60] sm:$0xf]
    %v5767 = vld [vmem:[%s7 + $0x64] sm:$0xf]
    %v5768 = vld [vmem:[%s7 + $0x68] sm:$0xf]
    %v5769 = vld [vmem:[%s7 + $0x6c] sm:$0xf]
    %v5770 = vld [vmem:[%s7 + $0x70] sm:$0xf]
    %v5771 = vld [vmem:[%s7 + $0x74] sm:$0xf]
    %v5772 = vld [vmem:[%s7 + $0x78] sm:$0xf]
    %v5773 = vld [vmem:[%s7 + $0x7c] sm:$0xf]
    %v5774 = vld [vmem:[%s7 + $0x80] sm:$0xf]
    %v5775 = vld [vmem:[%s7 + $0x84] sm:$0xf]
    %v5776 = vld [vmem:[%s7 + $0x88] sm:$0xf]
    %v5777 = vld [vmem:[%s7 + $0x8c] sm:$0xf]
    %v5778 = vld [vmem:[%s7 + $0x90] sm:$0xf]
    %v5779 = vld [vmem:[%s7 + $0x94] sm:$0xf]
    %v5780 = vld [vmem:[%s7 + $0x98] sm:$0xf]
    %v5781 = vld [vmem:[%s7 + $0x9c] sm:$0xf]
    %v5782 = vld [vmem:[%s7 + $0xa0] sm:$0xf]
    %v5783 = vld [vmem:[%s7 + $0xa4] sm:$0xf]
    %v5784 = vld [vmem:[%s7 + $0xa8] sm:$0xf]
    %v5785 = vld [vmem:[%s7 + $0xac] sm:$0xf]
    %v5786 = vld [vmem:[%s7 + $0xb0] sm:$0xf]
    %v5787 = vld [vmem:[%s7 + $0xb4] sm:$0xf]
    %v5788 = vld [vmem:[%s7 + $0xb8] sm:$0xf]
    %v5789 = vld [vmem:[%s7 + $0xbc] sm:$0xf]
    %v5790 = vld [vmem:[%s7 + $0xc0] sm:$0xf]
    %v5791 = vld [vmem:[%s7 + $0xc4] sm:$0xf]
    %v5792 = vld [vmem:[%s7 + $0xc8] sm:$0xf]
    %v5793 = vld [vmem:[%s7 + $0xcc] sm:$0xf]
    %v5794 = vld [vmem:[%s7 + $0xd0] sm:$0xf]
    %v5795 = vld [vmem:[%s7 + $0xd4] sm:$0xf]
    %v5796 = vld [vmem:[%s7 + $0xd8] sm:$0xf]
    %v5797 = vld [vmem:[%s7 + $0xdc] sm:$0xf]
    %v5798 = vld [vmem:[%s7 + $0xe0] sm:$0xf]
    %v5799 = vld [vmem:[%s7 + $0xe4] sm:$0xf]
    %v5800 = vld [vmem:[%s7 + $0xe8] sm:$0xf]
    %v5801 = vld [vmem:[%s7 + $0xec] sm:$0xf]
    %v5802 = vld [vmem:[%s7 + $0xf0] sm:$0xf]
    %v5803 = vld [vmem:[%s7 + $0xf4] sm:$0xf]
    %v5804 = vld [vmem:[%s7 + $0xf8] sm:$0xf]
    %v5805 = vld [vmem:[%s7 + $0xfc] sm:$0xf]
    %v5806 = vld [vmem:[%s8] sm:$0x1]
    %v5808 = vlaneseq
    %v5809 = vshrl.u32 %v5808, 7
    %v5810 = vsub.s32 0, %v5809
    %v5811 = vrot.slane %v5806, %v5810
    %v5877 = vunpack.c.l.b16 %v5742
    %v5878 = vunpack.c.l.b16 %v5743
    %v5879 = vunpack.c.l.b16 %v5744
    %v5880 = vunpack.c.l.b16 %v5745
    %v5881 = vunpack.c.l.b16 %v5746
    %v5882 = vunpack.c.l.b16 %v5747
    %v5883 = vunpack.c.l.b16 %v5748
    %v5884 = vunpack.c.l.b16 %v5749
    %v5885 = vunpack.c.l.b16 %v5750
    %v5886 = vunpack.c.l.b16 %v5751
    %v5887 = vunpack.c.l.b16 %v5752
    %v5888 = vunpack.c.l.b16 %v5753
    %v5889 = vunpack.c.l.b16 %v5754
    %v5890 = vunpack.c.l.b16 %v5755
    %v5891 = vunpack.c.l.b16 %v5756
    %v5892 = vunpack.c.l.b16 %v5757
    %v5893 = vunpack.c.l.b16 %v5758
    %v5894 = vunpack.c.l.b16 %v5759
    %v5895 = vunpack.c.l.b16 %v5760
    %v5896 = vunpack.c.l.b16 %v5761
    %v5897 = vunpack.c.l.b16 %v5762
    %v5898 = vunpack.c.l.b16 %v5763
    %v5899 = vunpack.c.l.b16 %v5764
    %v5900 = vunpack.c.l.b16 %v5765
    %v5901 = vunpack.c.l.b16 %v5766
    %v5902 = vunpack.c.l.b16 %v5767
    %v5903 = vunpack.c.l.b16 %v5768
    %v5904 = vunpack.c.l.b16 %v5769
    %v5905 = vunpack.c.l.b16 %v5770
    %v5906 = vunpack.c.l.b16 %v5771
    %v5907 = vunpack.c.l.b16 %v5772
    %v5908 = vunpack.c.l.b16 %v5773
    %v5909 = vunpack.c.l.b16 %v5774
    %v5910 = vunpack.c.l.b16 %v5775
    %v5911 = vunpack.c.l.b16 %v5776
    %v5912 = vunpack.c.l.b16 %v5777
    %v5913 = vunpack.c.l.b16 %v5778
    %v5914 = vunpack.c.l.b16 %v5779
    %v5915 = vunpack.c.l.b16 %v5780
    %v5916 = vunpack.c.l.b16 %v5781
    %v5917 = vunpack.c.l.b16 %v5782
    %v5918 = vunpack.c.l.b16 %v5783
    %v5919 = vunpack.c.l.b16 %v5784
    %v5920 = vunpack.c.l.b16 %v5785
    %v5921 = vunpack.c.l.b16 %v5786
    %v5922 = vunpack.c.l.b16 %v5787
    %v5923 = vunpack.c.l.b16 %v5788
    %v5924 = vunpack.c.l.b16 %v5789
    %v5925 = vunpack.c.l.b16 %v5790
    %v5926 = vunpack.c.l.b16 %v5791
    %v5927 = vunpack.c.l.b16 %v5792
    %v5928 = vunpack.c.l.b16 %v5793
    %v5929 = vunpack.c.l.b16 %v5794
    %v5930 = vunpack.c.l.b16 %v5795
    %v5931 = vunpack.c.l.b16 %v5796
    %v5932 = vunpack.c.l.b16 %v5797
    %v5933 = vunpack.c.l.b16 %v5798
    %v5934 = vunpack.c.l.b16 %v5799
    %v5935 = vunpack.c.l.b16 %v5800
    %v5936 = vunpack.c.l.b16 %v5801
    %v5937 = vunpack.c.l.b16 %v5802
    %v5938 = vunpack.c.l.b16 %v5803
    %v5939 = vunpack.c.l.b16 %v5804
    %v5940 = vunpack.c.l.b16 %v5805
    %v5941 = vpack.c.b16 %v5878, %v5877
    %v5942 = vpack.c.b16 %v5880, %v5879
    %v5943 = vpack.c.b16 %v5882, %v5881
    %v5944 = vpack.c.b16 %v5884, %v5883
    %v5945 = vpack.c.b16 %v5886, %v5885
    %v5946 = vpack.c.b16 %v5888, %v5887
    %v5947 = vpack.c.b16 %v5890, %v5889
    %v5948 = vpack.c.b16 %v5892, %v5891
    %v5949 = vpack.c.b16 %v5894, %v5893
    %v5950 = vpack.c.b16 %v5896, %v5895
    %v5951 = vpack.c.b16 %v5898, %v5897
    %v5952 = vpack.c.b16 %v5900, %v5899
    %v5953 = vpack.c.b16 %v5902, %v5901
    %v5954 = vpack.c.b16 %v5904, %v5903
    %v5955 = vpack.c.b16 %v5906, %v5905
    %v5956 = vpack.c.b16 %v5908, %v5907
    %v5957 = vpack.c.b16 %v5910, %v5909
    %v5958 = vpack.c.b16 %v5912, %v5911
    %v5959 = vpack.c.b16 %v5914, %v5913
    %v5960 = vpack.c.b16 %v5916, %v5915
    %v5961 = vpack.c.b16 %v5918, %v5917
    %v5962 = vpack.c.b16 %v5920, %v5919
    %v5963 = vpack.c.b16 %v5922, %v5921
    %v5964 = vpack.c.b16 %v5924, %v5923
    %v5965 = vpack.c.b16 %v5926, %v5925
    %v5966 = vpack.c.b16 %v5928, %v5927
    %v5967 = vpack.c.b16 %v5930, %v5929
    %v5968 = vpack.c.b16 %v5932, %v5931
    %v5969 = vpack.c.b16 %v5934, %v5933
    %v5970 = vpack.c.b16 %v5936, %v5935
    %v5971 = vpack.c.b16 %v5938, %v5937
    %v5972 = vpack.c.b16 %v5940, %v5939
    %6005 = vmatprep.subr.bf16.mxu0 0
    %6006 = vmatpush1.bf16.msra.mxu0 %v5948
    %6007 = vmatprep.subr.bf16.mxu0 0
    %6008 = vmatpush1.bf16.msra.mxu0 %v5947
    %6009 = vmatprep.subr.bf16.mxu0 0
    %6010 = vmatpush1.bf16.msra.mxu0 %v5946
    %6011 = vmatprep.subr.bf16.mxu0 0
    %6012 = vmatpush1.bf16.msra.mxu0 %v5945
    %6013 = vmatprep.subr.bf16.mxu0 0
    %6014 = vmatpush1.bf16.msra.mxu0 %v5944
    %6015 = vmatprep.subr.bf16.mxu0 0
    %6016 = vmatpush1.bf16.msra.mxu0 %v5943
    %6017 = vmatprep.subr.bf16.mxu0 0
    %6018 = vmatpush1.bf16.msra.mxu0 %v5942
    %6019 = vmatprep.subr.bf16.mxu0 0
    %6020 = vmatpush1.bf16.msra.mxu0 %v5941
    %6021 = vmatprep.subr.bf16.mxu0 0
    %6022 = vmatpush2.bf16.msra.mxu0 %v5956
    %6023 = vmatprep.subr.bf16.mxu0 0
    %6024 = vmatpush2.bf16.msra.mxu0 %v5955
    %6025 = vmatprep.subr.bf16.mxu0 0
    %6026 = vmatpush2.bf16.msra.mxu0 %v5954
    %6027 = vmatprep.subr.bf16.mxu0 0
    %6028 = vmatpush2.bf16.msra.mxu0 %v5953
    %6029 = vmatprep.subr.bf16.mxu0 0
    %6030 = vmatpush2.bf16.msra.mxu0 %v5952
    %6031 = vmatprep.subr.bf16.mxu0 0
    %6032 = vmatpush2.bf16.msra.mxu0 %v5951
    %6033 = vmatprep.subr.bf16.mxu0 0
    %6034 = vmatpush2.bf16.msra.mxu0 %v5950
    %6035 = vmatprep.subr.bf16.mxu0 0
    %6036 = vmatpush2.bf16.msra.mxu0 %v5949
    %6037 = vmatprep.mubr.bf16.mxu0 %v5739
    %6038 = vmatmul.mubr.bf16.gmra.mxu0 %v5738
    %v6039 = vpop.f32.mrf.mxu0
    %v6040 = vadd.f32 %v5811, %v6039
    %v6041 = vpop.f32.mrf.mxu0
    %v6042 = vpop.f32.mrf.mxu0
    %v6043 = vpop.f32.mrf.mxu0
    %6044 = vdwg.mxu0
    %6045 = vmatprep.subr.bf16.mxu0 0
    %6046 = vmatpush1.bf16.msra.mxu0 %v5964
    %6047 = vmatprep.subr.bf16.mxu0 0
    %6048 = vmatpush1.bf16.msra.mxu0 %v5963
    %6049 = vmatprep.subr.bf16.mxu0 0
    %6050 = vmatpush1.bf16.msra.mxu0 %v5962
    %6051 = vmatprep.subr.bf16.mxu0 0
    %6052 = vmatpush1.bf16.msra.mxu0 %v5961
    %6053 = vmatprep.subr.bf16.mxu0 0
    %6054 = vmatpush1.bf16.msra.mxu0 %v5960
    %6055 = vmatprep.subr.bf16.mxu0 0
    %6056 = vmatpush1.bf16.msra.mxu0 %v5959
    %6057 = vmatprep.subr.bf16.mxu0 0
    %6058 = vmatpush1.bf16.msra.mxu0 %v5958
    %6059 = vmatprep.subr.bf16.mxu0 0
    %6060 = vmatpush1.bf16.msra.mxu0 %v5957
    %6061 = vmatprep.subr.bf16.mxu0 0
    %6062 = vmatpush2.bf16.msra.mxu0 %v5972
    %6063 = vmatprep.subr.bf16.mxu0 0
    %6064 = vmatpush2.bf16.msra.mxu0 %v5971
    %6065 = vmatprep.subr.bf16.mxu0 0
    %6066 = vmatpush2.bf16.msra.mxu0 %v5970
    %6067 = vmatprep.subr.bf16.mxu0 0
    %6068 = vmatpush2.bf16.msra.mxu0 %v5969
    %6069 = vmatprep.subr.bf16.mxu0 0
    %6070 = vmatpush2.bf16.msra.mxu0 %v5968
    %6071 = vmatprep.subr.bf16.mxu0 0
    %6072 = vmatpush2.bf16.msra.mxu0 %v5967
    %6073 = vmatprep.subr.bf16.mxu0 0
    %6074 = vmatpush2.bf16.msra.mxu0 %v5966
    %6075 = vmatprep.subr.bf16.mxu0 0
    %6076 = vmatpush2.bf16.msra.mxu0 %v5965
    %6077 = vmatprep.mubr.bf16.mxu0 %v5741
    %6078 = vmatmul.mubr.bf16.gmra.mxu0 %v5740
    %v6079 = vpop.f32.mrf.mxu0
    %v6080 = vadd.f32 %v6040, %v6079
    %v6081 = vpop.f32.mrf.mxu0
    %v6082 = vpop.f32.mrf.mxu0
    %v6083 = vpop.f32.mrf.mxu0
    %6084 = vdwg.mxu0
    %6085 = vst [vmem:[%s9] sm:$0xff] %v6080
    // Predicated region
    $region42: #{lenet_forward.1} parent=1 // pred_check
      _
    $region43: #{lenet_forward.1} parent=1 // pred_check_branch
      %6087 = sbr.rel (0) target = $region45
    $region44: #{lenet_forward.1} parent=1 // pred_region
      _
    $region45: #{lenet_forward.1} parent=1 // pred_fallthru
      _
    // Predicated region
    $region46: #{lenet_forward.1} parent=1 // pred_check
      _
    $region47: #{lenet_forward.1} parent=1 // pred_check_branch
      %6089 = sbr.rel (0) target = $region49
    $region48: #{lenet_forward.1} parent=1 // pred_region
      _
    $region49: #{lenet_forward.1} parent=1 // pred_fallthru
      _
    %6090 = vsyncpa [#allocation3], 1

</llo_original>
